<compile_context>
chip_gen: v7x
topology: tpu7x:2x2x1
jax: 0.10.0
libtpu: 0.0.40
codegen_flags: <defaults>
</compile_context>

<pallas_src>
import functools
import math

import jax
import jax.numpy as jnp
from jax import lax
from jax.experimental import pallas as pl
from jax.experimental.pallas import tpu as pltpu


# ---------------------------------------------------------------------------
# Pallas kernel: full chain of ConvNext blocks for Nb images (grid over batch)
# ---------------------------------------------------------------------------
def _convnext_chain_kernel(x_ref, dwm_ref, cvec_ref, ivec_ref, w1_ref, w2_ref,
                           o_ref, *, num_blocks, Nb, C, inter, W, HW,
                           ln_eps=1e-5, grn_eps=1e-6):
    x = x_ref[...].astype(jnp.float32)                # (Nb*C, HW) running activation
    inv_sqrt2 = 1.0 / math.sqrt(2.0)

    for blk in range(num_blocks):
        # ---- per-block parameter staging: once per block per grid step ----
        dwb = cvec_ref[blk, 0]                        # (Nb*C, 1)  depthwise bias
        lng = cvec_ref[blk, 1]                        # (Nb*C, 1)  LN gamma
        lnb = cvec_ref[blk, 2]                        # (Nb*C, 1)  LN beta
        b2  = cvec_ref[blk, 3]                        # (Nb*C, 1)  linear2 bias
        b1  = ivec_ref[blk, 0]                        # (Nb*inter, 1)
        gg  = ivec_ref[blk, 1]                        # (Nb*inter, 1)  GRN gamma
        gb  = ivec_ref[blk, 2]                        # (Nb*inter, 1)  GRN beta
        w1  = w1_ref[blk]                             # (Nb*inter, Nb*C) block-diag
        w2  = w2_ref[blk]                             # (Nb*C, Nb*inter) block-diag

        # ---- depthwise 7x7 conv: 49 lane rolls; padding masks are pre-folded
        #      into dwm so each tap is a single mul+add; 4 partial accumulators
        #      break the serial dependence chain (f32 reassociation only).
        accs = [None, None, None, None]
        for k in range(49):
            s = (k // 7 - 3) * W + (k % 7 - 3)
            shifted = x if s == 0 else pltpu.roll(x, (-s) % HW, axis=1)
            term = shifted * dwm_ref[blk, k]          # (Nb*C, HW)
            a = k & 3
            accs[a] = term if accs[a] is None else accs[a] + term
        acc = ((accs[0] + accs[1]) + (accs[2] + accs[3])) + dwb

        # ---- LayerNorm over channels (exact f32, per image) ----
        xln_parts = []
        for n in range(Nb):
            a_n = acc[n * C:(n + 1) * C]              # (C, HW) tile-aligned slice
            mu = jnp.mean(a_n, axis=0, keepdims=True)
            d = a_n - mu
            var = jnp.mean(d * d, axis=0, keepdims=True)
            xln_parts.append(d * lax.rsqrt(var + ln_eps))
        xln = jnp.concatenate(xln_parts, axis=0) * lng + lnb    # (Nb*C, HW)

        # ---- pointwise Linear C -> inter (block-diagonal MXU matmul) + GELU
        h = jnp.dot(w1, xln, preferred_element_type=jnp.float32) + b1  # (Nb*inter, HW)
        h = 0.5 * h * (1.0 + lax.erf(h * inv_sqrt2))
        # TODO(synk): jax.nn.gelu(approximate=True) would move this onto the
        # idle EUP, at the cost of ~1e-3 deviation from nn.GELU()'s exact erf.

        # ---- Global Response Normalization (spatial L2 per channel, per image)
        gx = jnp.sqrt(jnp.sum(h * h, axis=1, keepdims=True))   # (Nb*inter, 1)
        parts = []
        for n in range(Nb):
            g_n = gx[n * inter:(n + 1) * inter]
            parts.append(jnp.broadcast_to(
                jnp.mean(g_n, axis=0, keepdims=True), (inter, 1)))
        gxm = jnp.concatenate(parts, axis=0)                    # (Nb*inter, 1)
        nx = gx / (gxm + grn_eps)                               # exact divide
        h = gg * (h * nx) + gb + h

        # ---- pointwise Linear inter -> C (block-diagonal matmul) + residual
        y = jnp.dot(w2, h, preferred_element_type=jnp.float32) + b2    # (Nb*C, HW)
        x = y + x

    o_ref[...] = x.astype(o_ref.dtype)


# ---------------------------------------------------------------------------
# Host-side parameter preprocessing (done once; independent of the batch)
# ---------------------------------------------------------------------------
def _block_diag(m, nb):
    """(R, S) -> (nb*R, nb*S) block-diagonal replication."""
    R, S = m.shape
    eye = jnp.eye(nb, dtype=m.dtype)
    return (eye[:, None, :, None] * m[None, :, None, :]).reshape(nb * R, nb * S)


def _pack_params(block_params, C, inter, H, W, Nb):
    HW = H * W
    # 49 spatial validity masks for 7x7/pad=3, folded into the tap weights.
    q = jnp.arange(HW, dtype=jnp.int32)
    hh, ww = q // W, q % W
    masks = []
    for i in range(7):
        for j in range(7):
            dh, dw = i - 3, j - 3
            m = (hh + dh >= 0) & (hh + dh < H) & (ww + dw >= 0) & (ww + dw < W)
            masks.append(m)
    mask49 = jnp.stack(masks).astype(jnp.float32)                      # (49, HW)

    w49 = jnp.stack([p["dw_w"].reshape(49, C) for p in block_params])  # (B,49,C)
    dwm = w49[:, :, :, None] * mask49[None, :, None, :]                # (B,49,C,HW)
    dwm = jnp.tile(dwm, (1, 1, Nb, 1))                                 # (B,49,Nb*C,HW)

    def tile_c(v):   # (1,C) -> (Nb*C, 1), sublane-aligned, pre-tiled over images
        return jnp.tile(v.reshape(C, 1), (Nb, 1))

    def tile_i(v):   # (1,inter) -> (Nb*inter, 1)
        return jnp.tile(v.reshape(inter, 1), (Nb, 1))

    cvec = jnp.stack([jnp.stack([tile_c(p["dw_b"]), tile_c(p["ln_g"]),
                                 tile_c(p["ln_b"]), tile_c(p["b2"])])
                      for p in block_params])                          # (B,4,Nb*C,1)
    ivec = jnp.stack([jnp.stack([tile_i(p["b1"]), tile_i(p["grn_g"]),
                                 tile_i(p["grn_b"])])
                      for p in block_params])                          # (B,3,Nb*inter,1)

    w1bd = jnp.stack([_block_diag(p["w1"].T, Nb) for p in block_params])  # (B,Nb*inter,Nb*C)
    w2bd = jnp.stack([_block_diag(p["w2"].T, Nb) for p in block_params])  # (B,Nb*C,Nb*inter)
    return dwm, cvec, ivec, w1bd, w2bd


def _pick_images_per_step(N, C, target=8):
    """Largest divisor of N that keeps the grid length >= 2 (v7x megacore),
    keeps the row block (Nb*C) sublane-tile aligned, and is <= target."""
    cands = [d for d in range(1, N + 1)
             if N % d == 0 and d <= target and (d * C) % 8 == 0 and N // d >= 2]
    if cands:
        return max(cands)
    return N   # single full-extent block (always legal), grid length 1


# ---------------------------------------------------------------------------
# Wrapper: pack params, build grid/BlockSpecs, call pallas_call once
# ---------------------------------------------------------------------------
def convnext_blocks_pallas(x_nchw, block_params, *, images_per_step=None):
    """ConvNextBlocks forward. Input/output are NCHW like the PyTorch module."""
    N, C, H, W = x_nchw.shape
    HW = H * W
    num_blocks = len(block_params)
    inter = block_params[0]["w1"].shape[1]

    Nb = images_per_step or _pick_images_per_step(N, C)
    assert N % Nb == 0, "images_per_step must divide the batch"
    NbC, NbI = Nb * C, Nb * inter

    dwm, cvec, ivec, w1bd, w2bd = _pack_params(block_params, C, inter, H, W, Nb)

    kern = functools.partial(_convnext_chain_kernel, num_blocks=num_blocks,
                             Nb=Nb, C=C, inter=inter, W=W, HW=HW)

    grid_spec = pltpu.PrefetchScalarGridSpec(
        num_scalar_prefetch=0,
        grid=(N // Nb,),
        in_specs=[
            pl.BlockSpec((NbC, HW), lambda n: (n, 0)),                        # activations
            pl.BlockSpec((num_blocks, 49, NbC, HW), lambda n: (0, 0, 0, 0)),  # masked taps
            pl.BlockSpec((num_blocks, 4, NbC, 1), lambda n: (0, 0, 0, 0)),    # C-sized vecs
            pl.BlockSpec((num_blocks, 3, NbI, 1), lambda n: (0, 0, 0, 0)),    # inter-sized vecs
            pl.BlockSpec((num_blocks, NbI, NbC), lambda n: (0, 0, 0)),        # W1 block-diag
            pl.BlockSpec((num_blocks, NbC, NbI), lambda n: (0, 0, 0)),        # W2 block-diag
        ],
        out_specs=pl.BlockSpec((NbC, HW), lambda n: (n, 0)),
    )

    out = pl.pallas_call(
        kern,
        out_shape=jax.ShapeDtypeStruct((N * C, HW), x_nchw.dtype),
        grid_spec=grid_spec,
        compiler_params=pltpu.CompilerParams(
            dimension_semantics=("parallel",),
            vmem_limit_bytes=32 * 1024 * 1024),
    )(x_nchw.reshape(N * C, HW), dwm, cvec, ivec, w1bd, w2bd)
    return out.reshape(N, C, H, W)


# ---------------------------------------------------------------------------
# Pure-JAX reference (same math as the PyTorch module) for a correctness check
# ---------------------------------------------------------------------------
def _block_ref(x_nhwc, p, ln_eps=1e-5, grn_eps=1e-6):
    N, H, W, C = x_nhwc.shape
    xpad = jnp.pad(x_nhwc, ((0, 0), (3, 3), (3, 3), (0, 0)))
    acc = jnp.zeros((N, H, W, C), jnp.float32)
    for dh in range(7):
        for dw in range(7):
            acc = acc + xpad[:, dh:dh + H, dw:dw + W, :] * p["dw_w"][dh, dw, :]
    acc = acc + p["dw_b"][0]
    mu = acc.mean(-1, keepdims=True)
    var = ((acc - mu) ** 2).mean(-1, keepdims=True)
    h = (acc - mu) * lax.rsqrt(var + ln_eps) * p["ln_g"][0] + p["ln_b"][0]
    h = h @ p["w1"] + p["b1"][0]
    h = 0.5 * h * (1.0 + lax.erf(h / math.sqrt(2.0)))
    gx = jnp.sqrt(jnp.sum(h * h, axis=(1, 2), keepdims=True))
    nx = gx / (gx.mean(-1, keepdims=True) + grn_eps)
    h = p["grn_g"][0] * (h * nx) + p["grn_b"][0] + h
    y = h @ p["w2"] + p["b2"][0]
    return y + x_nhwc


def convnext_blocks_ref(x_nchw, block_params):
    x = jnp.transpose(x_nchw, (0, 2, 3, 1))
    for p in block_params:
        x = _block_ref(x, p)
    return jnp.transpose(x, (0, 3, 1, 2))


# ---------------------------------------------------------------------------
# Deterministic parameter construction (shapes from the module's __init__)
# ---------------------------------------------------------------------------
def make_block_params(key, dim, inter_dim):
    ks = jax.random.split(key, 12)
    s = 0.1
    return {
        "dw_w": s * jax.random.normal(ks[0], (7, 7, dim), jnp.float32),
        "dw_b": s * jax.random.normal(ks[1], (1, dim), jnp.float32),
        "ln_g": 1.0 + s * jax.random.normal(ks[2], (1, dim), jnp.float32),
        "ln_b": s * jax.random.normal(ks[3], (1, dim), jnp.float32),
        "w1":   s * jax.random.normal(ks[4], (dim, inter_dim), jnp.float32),
        "b1":   s * jax.random.normal(ks[5], (1, inter_dim), jnp.float32),
        "grn_g": s * jax.random.normal(ks[6], (1, inter_dim), jnp.float32),
        "grn_b": s * jax.random.normal(ks[7], (1, inter_dim), jnp.float32),
        "w2":   s * jax.random.normal(ks[8], (inter_dim, dim), jnp.float32),
        "b2":   s * jax.random.normal(ks[9], (1, dim), jnp.float32),
    }


if __name__ == "__main__":
    # embedding_dim=8, H*W=256 lane-dense; N=4 so Nb=2 images/step, grid=2.
    N, C, H, W = 4, 8, 16, 16
    num_blocks = 2
    inter = C * 4

    root = jax.random.PRNGKey(0)
    kx, *kblocks = jax.random.split(root, 1 + num_blocks)
    x = jax.random.normal(kx, (N, C, H, W), jnp.float32)
    params = [make_block_params(k, C, inter) for k in kblocks]

    out = convnext_blocks_pallas(x, params)
    out = jax.block_until_ready(out)

    ref = jax.block_until_ready(convnext_blocks_ref(x, params))
    assert out.shape == (N, C, H, W)
    err = float(jnp.max(jnp.abs(out - ref)))
    assert jnp.allclose(out, ref, rtol=2e-3, atol=2e-3), f"max err {err}"

    print("KERNEL_OK")
</pallas_src>

<mosaic_0001>
module attributes {stable_mosaic.version = 11 : i64} {
  func.func @_convnext_chain_kernel(%arg0: i32, %arg1: memref<16x256xf32, #tpu.memory_space<vmem>>, %arg2: memref<2x49x16x256xf32, #tpu.memory_space<vmem>>, %arg3: memref<2x4x16x1xf32, #tpu.memory_space<vmem>>, %arg4: memref<2x3x64x1xf32, #tpu.memory_space<vmem>>, %arg5: memref<2x64x16xf32, #tpu.memory_space<vmem>>, %arg6: memref<2x16x64xf32, #tpu.memory_space<vmem>>, %arg7: memref<16x256xf32, #tpu.memory_space<vmem>>) attributes {dimension_semantics = [#tpu.dimension_semantics<parallel>], iteration_bounds = array<i64: 2>, scalar_prefetch = 0 : i64, scratch_operands = 0 : i64, tpu.core_type = #tpu.core_type<tc>, window_params = [{transform_indices = @transform_0, window_bounds = array<i64: 16, 256>}, {pipeline_mode = #tpu.pipeline_mode<synchronous>, transform_indices = @transform_1, window_bounds = array<i64: 2, 49, 16, 256>}, {pipeline_mode = #tpu.pipeline_mode<synchronous>, transform_indices = @transform_2, window_bounds = array<i64: 2, 4, 16, 1>}, {pipeline_mode = #tpu.pipeline_mode<synchronous>, transform_indices = @transform_3, window_bounds = array<i64: 2, 3, 64, 1>}, {pipeline_mode = #tpu.pipeline_mode<synchronous>, transform_indices = @transform_4, window_bounds = array<i64: 2, 64, 16>}, {pipeline_mode = #tpu.pipeline_mode<synchronous>, transform_indices = @transform_5, window_bounds = array<i64: 2, 16, 64>}, {transform_indices = @transform_6, window_bounds = array<i64: 16, 256>}]} {
    %c0 = arith.constant 0 : index
    %c0_0 = arith.constant 0 : index
    %0 = vector.load %arg1[%c0, %c0_0] : memref<16x256xf32, #tpu.memory_space<vmem>>, vector<16x256xf32>
    %c0_1 = arith.constant 0 : index
    %c0_2 = arith.constant 0 : index
    %c0_3 = arith.constant 0 : index
    %c0_4 = arith.constant 0 : index
    %1 = vector.load %arg3[%c0_1, %c0_2, %c0_3, %c0_4] : memref<2x4x16x1xf32, #tpu.memory_space<vmem>>, vector<1x1x16x1xf32>
    %2 = vector.shape_cast %1 : vector<1x1x16x1xf32> to vector<16x1xf32>
    %c0_5 = arith.constant 0 : index
    %c1 = arith.constant 1 : index
    %c0_6 = arith.constant 0 : index
    %c0_7 = arith.constant 0 : index
    %3 = vector.load %arg3[%c0_5, %c1, %c0_6, %c0_7] : memref<2x4x16x1xf32, #tpu.memory_space<vmem>>, vector<1x1x16x1xf32>
    %4 = vector.shape_cast %3 : vector<1x1x16x1xf32> to vector<16x1xf32>
    %c0_8 = arith.constant 0 : index
    %c2 = arith.constant 2 : index
    %c0_9 = arith.constant 0 : index
    %c0_10 = arith.constant 0 : index
    %5 = vector.load %arg3[%c0_8, %c2, %c0_9, %c0_10] : memref<2x4x16x1xf32, #tpu.memory_space<vmem>>, vector<1x1x16x1xf32>
    %6 = vector.shape_cast %5 : vector<1x1x16x1xf32> to vector<16x1xf32>
    %c0_11 = arith.constant 0 : index
    %c3 = arith.constant 3 : index
    %c0_12 = arith.constant 0 : index
    %c0_13 = arith.constant 0 : index
    %7 = vector.load %arg3[%c0_11, %c3, %c0_12, %c0_13] : memref<2x4x16x1xf32, #tpu.memory_space<vmem>>, vector<1x1x16x1xf32>
    %8 = vector.shape_cast %7 : vector<1x1x16x1xf32> to vector<16x1xf32>
    %c0_14 = arith.constant 0 : index
    %c0_15 = arith.constant 0 : index
    %c0_16 = arith.constant 0 : index
    %c0_17 = arith.constant 0 : index
    %9 = vector.load %arg4[%c0_14, %c0_15, %c0_16, %c0_17] : memref<2x3x64x1xf32, #tpu.memory_space<vmem>>, vector<1x1x64x1xf32>
    %10 = vector.shape_cast %9 : vector<1x1x64x1xf32> to vector<64x1xf32>
    %c0_18 = arith.constant 0 : index
    %c1_19 = arith.constant 1 : index
    %c0_20 = arith.constant 0 : index
    %c0_21 = arith.constant 0 : index
    %11 = vector.load %arg4[%c0_18, %c1_19, %c0_20, %c0_21] : memref<2x3x64x1xf32, #tpu.memory_space<vmem>>, vector<1x1x64x1xf32>
    %12 = vector.shape_cast %11 : vector<1x1x64x1xf32> to vector<64x1xf32>
    %c0_22 = arith.constant 0 : index
    %c2_23 = arith.constant 2 : index
    %c0_24 = arith.constant 0 : index
    %c0_25 = arith.constant 0 : index
    %13 = vector.load %arg4[%c0_22, %c2_23, %c0_24, %c0_25] : memref<2x3x64x1xf32, #tpu.memory_space<vmem>>, vector<1x1x64x1xf32>
    %14 = vector.shape_cast %13 : vector<1x1x64x1xf32> to vector<64x1xf32>
    %c0_26 = arith.constant 0 : index
    %c0_27 = arith.constant 0 : index
    %c0_28 = arith.constant 0 : index
    %15 = vector.load %arg5[%c0_26, %c0_27, %c0_28] : memref<2x64x16xf32, #tpu.memory_space<vmem>>, vector<1x64x16xf32>
    %16 = vector.shape_cast %15 : vector<1x64x16xf32> to vector<64x16xf32>
    %c0_29 = arith.constant 0 : index
    %c0_30 = arith.constant 0 : index
    %c0_31 = arith.constant 0 : index
    %17 = vector.load %arg6[%c0_29, %c0_30, %c0_31] : memref<2x16x64xf32, #tpu.memory_space<vmem>>, vector<1x16x64xf32>
    %18 = vector.shape_cast %17 : vector<1x16x64xf32> to vector<16x64xf32>
    %c51_i32 = arith.constant 51 : i32
    %19 = tpu.dynamic_rotate %0 by %c51_i32 dim 1 : vector<16x256xf32>, i32 -> vector<16x256xf32>
    %c0_32 = arith.constant 0 : index
    %c0_33 = arith.constant 0 : index
    %c0_34 = arith.constant 0 : index
    %c0_35 = arith.constant 0 : index
    %20 = vector.load %arg2[%c0_32, %c0_33, %c0_34, %c0_35] : memref<2x49x16x256xf32, #tpu.memory_space<vmem>>, vector<1x1x16x256xf32>
    %21 = vector.shape_cast %20 : vector<1x1x16x256xf32> to vector<16x256xf32>
    %22 = arith.mulf %19, %21 : vector<16x256xf32>
    %c50_i32 = arith.constant 50 : i32
    %23 = tpu.dynamic_rotate %0 by %c50_i32 dim 1 : vector<16x256xf32>, i32 -> vector<16x256xf32>
    %c0_36 = arith.constant 0 : index
    %c1_37 = arith.constant 1 : index
    %c0_38 = arith.constant 0 : index
    %c0_39 = arith.constant 0 : index
    %24 = vector.load %arg2[%c0_36, %c1_37, %c0_38, %c0_39] : memref<2x49x16x256xf32, #tpu.memory_space<vmem>>, vector<1x1x16x256xf32>
    %25 = vector.shape_cast %24 : vector<1x1x16x256xf32> to vector<16x256xf32>
    %26 = arith.mulf %23, %25 : vector<16x256xf32>
    %c49_i32 = arith.constant 49 : i32
    %27 = tpu.dynamic_rotate %0 by %c49_i32 dim 1 : vector<16x256xf32>, i32 -> vector<16x256xf32>
    %c0_40 = arith.constant 0 : index
    %c2_41 = arith.constant 2 : index
    %c0_42 = arith.constant 0 : index
    %c0_43 = arith.constant 0 : index
    %28 = vector.load %arg2[%c0_40, %c2_41, %c0_42, %c0_43] : memref<2x49x16x256xf32, #tpu.memory_space<vmem>>, vector<1x1x16x256xf32>
    %29 = vector.shape_cast %28 : vector<1x1x16x256xf32> to vector<16x256xf32>
    %30 = arith.mulf %27, %29 : vector<16x256xf32>
    %c48_i32 = arith.constant 48 : i32
    %31 = tpu.dynamic_rotate %0 by %c48_i32 dim 1 : vector<16x256xf32>, i32 -> vector<16x256xf32>
    %c0_44 = arith.constant 0 : index
    %c3_45 = arith.constant 3 : index
    %c0_46 = arith.constant 0 : index
    %c0_47 = arith.constant 0 : index
    %32 = vector.load %arg2[%c0_44, %c3_45, %c0_46, %c0_47] : memref<2x49x16x256xf32, #tpu.memory_space<vmem>>, vector<1x1x16x256xf32>
    %33 = vector.shape_cast %32 : vector<1x1x16x256xf32> to vector<16x256xf32>
    %34 = arith.mulf %31, %33 : vector<16x256xf32>
    %c47_i32 = arith.constant 47 : i32
    %35 = tpu.dynamic_rotate %0 by %c47_i32 dim 1 : vector<16x256xf32>, i32 -> vector<16x256xf32>
    %c0_48 = arith.constant 0 : index
    %c4 = arith.constant 4 : index
    %c0_49 = arith.constant 0 : index
    %c0_50 = arith.constant 0 : index
    %36 = vector.load %arg2[%c0_48, %c4, %c0_49, %c0_50] : memref<2x49x16x256xf32, #tpu.memory_space<vmem>>, vector<1x1x16x256xf32>
    %37 = vector.shape_cast %36 : vector<1x1x16x256xf32> to vector<16x256xf32>
    %38 = arith.mulf %35, %37 : vector<16x256xf32>
    %39 = arith.addf %22, %38 : vector<16x256xf32>
    %c46_i32 = arith.constant 46 : i32
    %40 = tpu.dynamic_rotate %0 by %c46_i32 dim 1 : vector<16x256xf32>, i32 -> vector<16x256xf32>
    %c0_51 = arith.constant 0 : index
    %c5 = arith.constant 5 : index
    %c0_52 = arith.constant 0 : index
    %c0_53 = arith.constant 0 : index
    %41 = vector.load %arg2[%c0_51, %c5, %c0_52, %c0_53] : memref<2x49x16x256xf32, #tpu.memory_space<vmem>>, vector<1x1x16x256xf32>
    %42 = vector.shape_cast %41 : vector<1x1x16x256xf32> to vector<16x256xf32>
    %43 = arith.mulf %40, %42 : vector<16x256xf32>
    %44 = arith.addf %26, %43 : vector<16x256xf32>
    %c45_i32 = arith.constant 45 : i32
    %45 = tpu.dynamic_rotate %0 by %c45_i32 dim 1 : vector<16x256xf32>, i32 -> vector<16x256xf32>
    %c0_54 = arith.constant 0 : index
    %c6 = arith.constant 6 : index
    %c0_55 = arith.constant 0 : index
    %c0_56 = arith.constant 0 : index
    %46 = vector.load %arg2[%c0_54, %c6, %c0_55, %c0_56] : memref<2x49x16x256xf32, #tpu.memory_space<vmem>>, vector<1x1x16x256xf32>
    %47 = vector.shape_cast %46 : vector<1x1x16x256xf32> to vector<16x256xf32>
    %48 = arith.mulf %45, %47 : vector<16x256xf32>
    %49 = arith.addf %30, %48 : vector<16x256xf32>
    %c35_i32 = arith.constant 35 : i32
    %50 = tpu.dynamic_rotate %0 by %c35_i32 dim 1 : vector<16x256xf32>, i32 -> vector<16x256xf32>
    %c0_57 = arith.constant 0 : index
    %c7 = arith.constant 7 : index
    %c0_58 = arith.constant 0 : index
    %c0_59 = arith.constant 0 : index
    %51 = vector.load %arg2[%c0_57, %c7, %c0_58, %c0_59] : memref<2x49x16x256xf32, #tpu.memory_space<vmem>>, vector<1x1x16x256xf32>
    %52 = vector.shape_cast %51 : vector<1x1x16x256xf32> to vector<16x256xf32>
    %53 = arith.mulf %50, %52 : vector<16x256xf32>
    %54 = arith.addf %34, %53 : vector<16x256xf32>
    %c34_i32 = arith.constant 34 : i32
    %55 = tpu.dynamic_rotate %0 by %c34_i32 dim 1 : vector<16x256xf32>, i32 -> vector<16x256xf32>
    %c0_60 = arith.constant 0 : index
    %c8 = arith.constant 8 : index
    %c0_61 = arith.constant 0 : index
    %c0_62 = arith.constant 0 : index
    %56 = vector.load %arg2[%c0_60, %c8, %c0_61, %c0_62] : memref<2x49x16x256xf32, #tpu.memory_space<vmem>>, vector<1x1x16x256xf32>
    %57 = vector.shape_cast %56 : vector<1x1x16x256xf32> to vector<16x256xf32>
    %58 = arith.mulf %55, %57 : vector<16x256xf32>
    %59 = arith.addf %39, %58 : vector<16x256xf32>
    %c33_i32 = arith.constant 33 : i32
    %60 = tpu.dynamic_rotate %0 by %c33_i32 dim 1 : vector<16x256xf32>, i32 -> vector<16x256xf32>
    %c0_63 = arith.constant 0 : index
    %c9 = arith.constant 9 : index
    %c0_64 = arith.constant 0 : index
    %c0_65 = arith.constant 0 : index
    %61 = vector.load %arg2[%c0_63, %c9, %c0_64, %c0_65] : memref<2x49x16x256xf32, #tpu.memory_space<vmem>>, vector<1x1x16x256xf32>
    %62 = vector.shape_cast %61 : vector<1x1x16x256xf32> to vector<16x256xf32>
    %63 = arith.mulf %60, %62 : vector<16x256xf32>
    %64 = arith.addf %44, %63 : vector<16x256xf32>
    %c32_i32 = arith.constant 32 : i32
    %65 = tpu.dynamic_rotate %0 by %c32_i32 dim 1 : vector<16x256xf32>, i32 -> vector<16x256xf32>
    %c0_66 = arith.constant 0 : index
    %c10 = arith.constant 10 : index
    %c0_67 = arith.constant 0 : index
    %c0_68 = arith.constant 0 : index
    %66 = vector.load %arg2[%c0_66, %c10, %c0_67, %c0_68] : memref<2x49x16x256xf32, #tpu.memory_space<vmem>>, vector<1x1x16x256xf32>
    %67 = vector.shape_cast %66 : vector<1x1x16x256xf32> to vector<16x256xf32>
    %68 = arith.mulf %65, %67 : vector<16x256xf32>
    %69 = arith.addf %49, %68 : vector<16x256xf32>
    %c31_i32 = arith.constant 31 : i32
    %70 = tpu.dynamic_rotate %0 by %c31_i32 dim 1 : vector<16x256xf32>, i32 -> vector<16x256xf32>
    %c0_69 = arith.constant 0 : index
    %c11 = arith.constant 11 : index
    %c0_70 = arith.constant 0 : index
    %c0_71 = arith.constant 0 : index
    %71 = vector.load %arg2[%c0_69, %c11, %c0_70, %c0_71] : memref<2x49x16x256xf32, #tpu.memory_space<vmem>>, vector<1x1x16x256xf32>
    %72 = vector.shape_cast %71 : vector<1x1x16x256xf32> to vector<16x256xf32>
    %73 = arith.mulf %70, %72 : vector<16x256xf32>
    %74 = arith.addf %54, %73 : vector<16x256xf32>
    %c30_i32 = arith.constant 30 : i32
    %75 = tpu.dynamic_rotate %0 by %c30_i32 dim 1 : vector<16x256xf32>, i32 -> vector<16x256xf32>
    %c0_72 = arith.constant 0 : index
    %c12 = arith.constant 12 : index
    %c0_73 = arith.constant 0 : index
    %c0_74 = arith.constant 0 : index
    %76 = vector.load %arg2[%c0_72, %c12, %c0_73, %c0_74] : memref<2x49x16x256xf32, #tpu.memory_space<vmem>>, vector<1x1x16x256xf32>
    %77 = vector.shape_cast %76 : vector<1x1x16x256xf32> to vector<16x256xf32>
    %78 = arith.mulf %75, %77 : vector<16x256xf32>
    %79 = arith.addf %59, %78 : vector<16x256xf32>
    %c29_i32 = arith.constant 29 : i32
    %80 = tpu.dynamic_rotate %0 by %c29_i32 dim 1 : vector<16x256xf32>, i32 -> vector<16x256xf32>
    %c0_75 = arith.constant 0 : index
    %c13 = arith.constant 13 : index
    %c0_76 = arith.constant 0 : index
    %c0_77 = arith.constant 0 : index
    %81 = vector.load %arg2[%c0_75, %c13, %c0_76, %c0_77] : memref<2x49x16x256xf32, #tpu.memory_space<vmem>>, vector<1x1x16x256xf32>
    %82 = vector.shape_cast %81 : vector<1x1x16x256xf32> to vector<16x256xf32>
    %83 = arith.mulf %80, %82 : vector<16x256xf32>
    %84 = arith.addf %64, %83 : vector<16x256xf32>
    %c19_i32 = arith.constant 19 : i32
    %85 = tpu.dynamic_rotate %0 by %c19_i32 dim 1 : vector<16x256xf32>, i32 -> vector<16x256xf32>
    %c0_78 = arith.constant 0 : index
    %c14 = arith.constant 14 : index
    %c0_79 = arith.constant 0 : index
    %c0_80 = arith.constant 0 : index
    %86 = vector.load %arg2[%c0_78, %c14, %c0_79, %c0_80] : memref<2x49x16x256xf32, #tpu.memory_space<vmem>>, vector<1x1x16x256xf32>
    %87 = vector.shape_cast %86 : vector<1x1x16x256xf32> to vector<16x256xf32>
    %88 = arith.mulf %85, %87 : vector<16x256xf32>
    %89 = arith.addf %69, %88 : vector<16x256xf32>
    %c18_i32 = arith.constant 18 : i32
    %90 = tpu.dynamic_rotate %0 by %c18_i32 dim 1 : vector<16x256xf32>, i32 -> vector<16x256xf32>
    %c0_81 = arith.constant 0 : index
    %c15 = arith.constant 15 : index
    %c0_82 = arith.constant 0 : index
    %c0_83 = arith.constant 0 : index
    %91 = vector.load %arg2[%c0_81, %c15, %c0_82, %c0_83] : memref<2x49x16x256xf32, #tpu.memory_space<vmem>>, vector<1x1x16x256xf32>
    %92 = vector.shape_cast %91 : vector<1x1x16x256xf32> to vector<16x256xf32>
    %93 = arith.mulf %90, %92 : vector<16x256xf32>
    %94 = arith.addf %74, %93 : vector<16x256xf32>
    %c17_i32 = arith.constant 17 : i32
    %95 = tpu.dynamic_rotate %0 by %c17_i32 dim 1 : vector<16x256xf32>, i32 -> vector<16x256xf32>
    %c0_84 = arith.constant 0 : index
    %c16 = arith.constant 16 : index
    %c0_85 = arith.constant 0 : index
    %c0_86 = arith.constant 0 : index
    %96 = vector.load %arg2[%c0_84, %c16, %c0_85, %c0_86] : memref<2x49x16x256xf32, #tpu.memory_space<vmem>>, vector<1x1x16x256xf32>
    %97 = vector.shape_cast %96 : vector<1x1x16x256xf32> to vector<16x256xf32>
    %98 = arith.mulf %95, %97 : vector<16x256xf32>
    %99 = arith.addf %79, %98 : vector<16x256xf32>
    %c16_i32 = arith.constant 16 : i32
    %100 = tpu.dynamic_rotate %0 by %c16_i32 dim 1 : vector<16x256xf32>, i32 -> vector<16x256xf32>
    %c0_87 = arith.constant 0 : index
    %c17 = arith.constant 17 : index
    %c0_88 = arith.constant 0 : index
    %c0_89 = arith.constant 0 : index
    %101 = vector.load %arg2[%c0_87, %c17, %c0_88, %c0_89] : memref<2x49x16x256xf32, #tpu.memory_space<vmem>>, vector<1x1x16x256xf32>
    %102 = vector.shape_cast %101 : vector<1x1x16x256xf32> to vector<16x256xf32>
    %103 = arith.mulf %100, %102 : vector<16x256xf32>
    %104 = arith.addf %84, %103 : vector<16x256xf32>
    %c15_i32 = arith.constant 15 : i32
    %105 = tpu.dynamic_rotate %0 by %c15_i32 dim 1 : vector<16x256xf32>, i32 -> vector<16x256xf32>
    %c0_90 = arith.constant 0 : index
    %c18 = arith.constant 18 : index
    %c0_91 = arith.constant 0 : index
    %c0_92 = arith.constant 0 : index
    %106 = vector.load %arg2[%c0_90, %c18, %c0_91, %c0_92] : memref<2x49x16x256xf32, #tpu.memory_space<vmem>>, vector<1x1x16x256xf32>
    %107 = vector.shape_cast %106 : vector<1x1x16x256xf32> to vector<16x256xf32>
    %108 = arith.mulf %105, %107 : vector<16x256xf32>
    %109 = arith.addf %89, %108 : vector<16x256xf32>
    %c14_i32 = arith.constant 14 : i32
    %110 = tpu.dynamic_rotate %0 by %c14_i32 dim 1 : vector<16x256xf32>, i32 -> vector<16x256xf32>
    %c0_93 = arith.constant 0 : index
    %c19 = arith.constant 19 : index
    %c0_94 = arith.constant 0 : index
    %c0_95 = arith.constant 0 : index
    %111 = vector.load %arg2[%c0_93, %c19, %c0_94, %c0_95] : memref<2x49x16x256xf32, #tpu.memory_space<vmem>>, vector<1x1x16x256xf32>
    %112 = vector.shape_cast %111 : vector<1x1x16x256xf32> to vector<16x256xf32>
    %113 = arith.mulf %110, %112 : vector<16x256xf32>
    %114 = arith.addf %94, %113 : vector<16x256xf32>
    %c13_i32 = arith.constant 13 : i32
    %115 = tpu.dynamic_rotate %0 by %c13_i32 dim 1 : vector<16x256xf32>, i32 -> vector<16x256xf32>
    %c0_96 = arith.constant 0 : index
    %c20 = arith.constant 20 : index
    %c0_97 = arith.constant 0 : index
    %c0_98 = arith.constant 0 : index
    %116 = vector.load %arg2[%c0_96, %c20, %c0_97, %c0_98] : memref<2x49x16x256xf32, #tpu.memory_space<vmem>>, vector<1x1x16x256xf32>
    %117 = vector.shape_cast %116 : vector<1x1x16x256xf32> to vector<16x256xf32>
    %118 = arith.mulf %115, %117 : vector<16x256xf32>
    %119 = arith.addf %99, %118 : vector<16x256xf32>
    %c3_i32 = arith.constant 3 : i32
    %120 = tpu.dynamic_rotate %0 by %c3_i32 dim 1 : vector<16x256xf32>, i32 -> vector<16x256xf32>
    %c0_99 = arith.constant 0 : index
    %c21 = arith.constant 21 : index
    %c0_100 = arith.constant 0 : index
    %c0_101 = arith.constant 0 : index
    %121 = vector.load %arg2[%c0_99, %c21, %c0_100, %c0_101] : memref<2x49x16x256xf32, #tpu.memory_space<vmem>>, vector<1x1x16x256xf32>
    %122 = vector.shape_cast %121 : vector<1x1x16x256xf32> to vector<16x256xf32>
    %123 = arith.mulf %120, %122 : vector<16x256xf32>
    %124 = arith.addf %104, %123 : vector<16x256xf32>
    %c2_i32 = arith.constant 2 : i32
    %125 = tpu.dynamic_rotate %0 by %c2_i32 dim 1 : vector<16x256xf32>, i32 -> vector<16x256xf32>
    %c0_102 = arith.constant 0 : index
    %c22 = arith.constant 22 : index
    %c0_103 = arith.constant 0 : index
    %c0_104 = arith.constant 0 : index
    %126 = vector.load %arg2[%c0_102, %c22, %c0_103, %c0_104] : memref<2x49x16x256xf32, #tpu.memory_space<vmem>>, vector<1x1x16x256xf32>
    %127 = vector.shape_cast %126 : vector<1x1x16x256xf32> to vector<16x256xf32>
    %128 = arith.mulf %125, %127 : vector<16x256xf32>
    %129 = arith.addf %109, %128 : vector<16x256xf32>
    %c1_i32 = arith.constant 1 : i32
    %130 = tpu.dynamic_rotate %0 by %c1_i32 dim 1 : vector<16x256xf32>, i32 -> vector<16x256xf32>
    %c0_105 = arith.constant 0 : index
    %c23 = arith.constant 23 : index
    %c0_106 = arith.constant 0 : index
    %c0_107 = arith.constant 0 : index
    %131 = vector.load %arg2[%c0_105, %c23, %c0_106, %c0_107] : memref<2x49x16x256xf32, #tpu.memory_space<vmem>>, vector<1x1x16x256xf32>
    %132 = vector.shape_cast %131 : vector<1x1x16x256xf32> to vector<16x256xf32>
    %133 = arith.mulf %130, %132 : vector<16x256xf32>
    %134 = arith.addf %114, %133 : vector<16x256xf32>
    %c0_108 = arith.constant 0 : index
    %c24 = arith.constant 24 : index
    %c0_109 = arith.constant 0 : index
    %c0_110 = arith.constant 0 : index
    %135 = vector.load %arg2[%c0_108, %c24, %c0_109, %c0_110] : memref<2x49x16x256xf32, #tpu.memory_space<vmem>>, vector<1x1x16x256xf32>
    %136 = vector.shape_cast %135 : vector<1x1x16x256xf32> to vector<16x256xf32>
    %137 = arith.mulf %0, %136 : vector<16x256xf32>
    %138 = arith.addf %119, %137 : vector<16x256xf32>
    %c255_i32 = arith.constant 255 : i32
    %139 = tpu.dynamic_rotate %0 by %c255_i32 dim 1 : vector<16x256xf32>, i32 -> vector<16x256xf32>
    %c0_111 = arith.constant 0 : index
    %c25 = arith.constant 25 : index
    %c0_112 = arith.constant 0 : index
    %c0_113 = arith.constant 0 : index
    %140 = vector.load %arg2[%c0_111, %c25, %c0_112, %c0_113] : memref<2x49x16x256xf32, #tpu.memory_space<vmem>>, vector<1x1x16x256xf32>
    %141 = vector.shape_cast %140 : vector<1x1x16x256xf32> to vector<16x256xf32>
    %142 = arith.mulf %139, %141 : vector<16x256xf32>
    %143 = arith.addf %124, %142 : vector<16x256xf32>
    %c254_i32 = arith.constant 254 : i32
    %144 = tpu.dynamic_rotate %0 by %c254_i32 dim 1 : vector<16x256xf32>, i32 -> vector<16x256xf32>
    %c0_114 = arith.constant 0 : index
    %c26 = arith.constant 26 : index
    %c0_115 = arith.constant 0 : index
    %c0_116 = arith.constant 0 : index
    %145 = vector.load %arg2[%c0_114, %c26, %c0_115, %c0_116] : memref<2x49x16x256xf32, #tpu.memory_space<vmem>>, vector<1x1x16x256xf32>
    %146 = vector.shape_cast %145 : vector<1x1x16x256xf32> to vector<16x256xf32>
    %147 = arith.mulf %144, %146 : vector<16x256xf32>
    %148 = arith.addf %129, %147 : vector<16x256xf32>
    %c253_i32 = arith.constant 253 : i32
    %149 = tpu.dynamic_rotate %0 by %c253_i32 dim 1 : vector<16x256xf32>, i32 -> vector<16x256xf32>
    %c0_117 = arith.constant 0 : index
    %c27 = arith.constant 27 : index
    %c0_118 = arith.constant 0 : index
    %c0_119 = arith.constant 0 : index
    %150 = vector.load %arg2[%c0_117, %c27, %c0_118, %c0_119] : memref<2x49x16x256xf32, #tpu.memory_space<vmem>>, vector<1x1x16x256xf32>
    %151 = vector.shape_cast %150 : vector<1x1x16x256xf32> to vector<16x256xf32>
    %152 = arith.mulf %149, %151 : vector<16x256xf32>
    %153 = arith.addf %134, %152 : vector<16x256xf32>
    %c243_i32 = arith.constant 243 : i32
    %154 = tpu.dynamic_rotate %0 by %c243_i32 dim 1 : vector<16x256xf32>, i32 -> vector<16x256xf32>
    %c0_120 = arith.constant 0 : index
    %c28 = arith.constant 28 : index
    %c0_121 = arith.constant 0 : index
    %c0_122 = arith.constant 0 : index
    %155 = vector.load %arg2[%c0_120, %c28, %c0_121, %c0_122] : memref<2x49x16x256xf32, #tpu.memory_space<vmem>>, vector<1x1x16x256xf32>
    %156 = vector.shape_cast %155 : vector<1x1x16x256xf32> to vector<16x256xf32>
    %157 = arith.mulf %154, %156 : vector<16x256xf32>
    %158 = arith.addf %138, %157 : vector<16x256xf32>
    %c242_i32 = arith.constant 242 : i32
    %159 = tpu.dynamic_rotate %0 by %c242_i32 dim 1 : vector<16x256xf32>, i32 -> vector<16x256xf32>
    %c0_123 = arith.constant 0 : index
    %c29 = arith.constant 29 : index
    %c0_124 = arith.constant 0 : index
    %c0_125 = arith.constant 0 : index
    %160 = vector.load %arg2[%c0_123, %c29, %c0_124, %c0_125] : memref<2x49x16x256xf32, #tpu.memory_space<vmem>>, vector<1x1x16x256xf32>
    %161 = vector.shape_cast %160 : vector<1x1x16x256xf32> to vector<16x256xf32>
    %162 = arith.mulf %159, %161 : vector<16x256xf32>
    %163 = arith.addf %143, %162 : vector<16x256xf32>
    %c241_i32 = arith.constant 241 : i32
    %164 = tpu.dynamic_rotate %0 by %c241_i32 dim 1 : vector<16x256xf32>, i32 -> vector<16x256xf32>
    %c0_126 = arith.constant 0 : index
    %c30 = arith.constant 30 : index
    %c0_127 = arith.constant 0 : index
    %c0_128 = arith.constant 0 : index
    %165 = vector.load %arg2[%c0_126, %c30, %c0_127, %c0_128] : memref<2x49x16x256xf32, #tpu.memory_space<vmem>>, vector<1x1x16x256xf32>
    %166 = vector.shape_cast %165 : vector<1x1x16x256xf32> to vector<16x256xf32>
    %167 = arith.mulf %164, %166 : vector<16x256xf32>
    %168 = arith.addf %148, %167 : vector<16x256xf32>
    %c240_i32 = arith.constant 240 : i32
    %169 = tpu.dynamic_rotate %0 by %c240_i32 dim 1 : vector<16x256xf32>, i32 -> vector<16x256xf32>
    %c0_129 = arith.constant 0 : index
    %c31 = arith.constant 31 : index
    %c0_130 = arith.constant 0 : index
    %c0_131 = arith.constant 0 : index
    %170 = vector.load %arg2[%c0_129, %c31, %c0_130, %c0_131] : memref<2x49x16x256xf32, #tpu.memory_space<vmem>>, vector<1x1x16x256xf32>
    %171 = vector.shape_cast %170 : vector<1x1x16x256xf32> to vector<16x256xf32>
    %172 = arith.mulf %169, %171 : vector<16x256xf32>
    %173 = arith.addf %153, %172 : vector<16x256xf32>
    %c239_i32 = arith.constant 239 : i32
    %174 = tpu.dynamic_rotate %0 by %c239_i32 dim 1 : vector<16x256xf32>, i32 -> vector<16x256xf32>
    %c0_132 = arith.constant 0 : index
    %c32 = arith.constant 32 : index
    %c0_133 = arith.constant 0 : index
    %c0_134 = arith.constant 0 : index
    %175 = vector.load %arg2[%c0_132, %c32, %c0_133, %c0_134] : memref<2x49x16x256xf32, #tpu.memory_space<vmem>>, vector<1x1x16x256xf32>
    %176 = vector.shape_cast %175 : vector<1x1x16x256xf32> to vector<16x256xf32>
    %177 = arith.mulf %174, %176 : vector<16x256xf32>
    %178 = arith.addf %158, %177 : vector<16x256xf32>
    %c238_i32 = arith.constant 238 : i32
    %179 = tpu.dynamic_rotate %0 by %c238_i32 dim 1 : vector<16x256xf32>, i32 -> vector<16x256xf32>
    %c0_135 = arith.constant 0 : index
    %c33 = arith.constant 33 : index
    %c0_136 = arith.constant 0 : index
    %c0_137 = arith.constant 0 : index
    %180 = vector.load %arg2[%c0_135, %c33, %c0_136, %c0_137] : memref<2x49x16x256xf32, #tpu.memory_space<vmem>>, vector<1x1x16x256xf32>
    %181 = vector.shape_cast %180 : vector<1x1x16x256xf32> to vector<16x256xf32>
    %182 = arith.mulf %179, %181 : vector<16x256xf32>
    %183 = arith.addf %163, %182 : vector<16x256xf32>
    %c237_i32 = arith.constant 237 : i32
    %184 = tpu.dynamic_rotate %0 by %c237_i32 dim 1 : vector<16x256xf32>, i32 -> vector<16x256xf32>
    %c0_138 = arith.constant 0 : index
    %c34 = arith.constant 34 : index
    %c0_139 = arith.constant 0 : index
    %c0_140 = arith.constant 0 : index
    %185 = vector.load %arg2[%c0_138, %c34, %c0_139, %c0_140] : memref<2x49x16x256xf32, #tpu.memory_space<vmem>>, vector<1x1x16x256xf32>
    %186 = vector.shape_cast %185 : vector<1x1x16x256xf32> to vector<16x256xf32>
    %187 = arith.mulf %184, %186 : vector<16x256xf32>
    %188 = arith.addf %168, %187 : vector<16x256xf32>
    %c227_i32 = arith.constant 227 : i32
    %189 = tpu.dynamic_rotate %0 by %c227_i32 dim 1 : vector<16x256xf32>, i32 -> vector<16x256xf32>
    %c0_141 = arith.constant 0 : index
    %c35 = arith.constant 35 : index
    %c0_142 = arith.constant 0 : index
    %c0_143 = arith.constant 0 : index
    %190 = vector.load %arg2[%c0_141, %c35, %c0_142, %c0_143] : memref<2x49x16x256xf32, #tpu.memory_space<vmem>>, vector<1x1x16x256xf32>
    %191 = vector.shape_cast %190 : vector<1x1x16x256xf32> to vector<16x256xf32>
    %192 = arith.mulf %189, %191 : vector<16x256xf32>
    %193 = arith.addf %173, %192 : vector<16x256xf32>
    %c226_i32 = arith.constant 226 : i32
    %194 = tpu.dynamic_rotate %0 by %c226_i32 dim 1 : vector<16x256xf32>, i32 -> vector<16x256xf32>
    %c0_144 = arith.constant 0 : index
    %c36 = arith.constant 36 : index
    %c0_145 = arith.constant 0 : index
    %c0_146 = arith.constant 0 : index
    %195 = vector.load %arg2[%c0_144, %c36, %c0_145, %c0_146] : memref<2x49x16x256xf32, #tpu.memory_space<vmem>>, vector<1x1x16x256xf32>
    %196 = vector.shape_cast %195 : vector<1x1x16x256xf32> to vector<16x256xf32>
    %197 = arith.mulf %194, %196 : vector<16x256xf32>
    %198 = arith.addf %178, %197 : vector<16x256xf32>
    %c225_i32 = arith.constant 225 : i32
    %199 = tpu.dynamic_rotate %0 by %c225_i32 dim 1 : vector<16x256xf32>, i32 -> vector<16x256xf32>
    %c0_147 = arith.constant 0 : index
    %c37 = arith.constant 37 : index
    %c0_148 = arith.constant 0 : index
    %c0_149 = arith.constant 0 : index
    %200 = vector.load %arg2[%c0_147, %c37, %c0_148, %c0_149] : memref<2x49x16x256xf32, #tpu.memory_space<vmem>>, vector<1x1x16x256xf32>
    %201 = vector.shape_cast %200 : vector<1x1x16x256xf32> to vector<16x256xf32>
    %202 = arith.mulf %199, %201 : vector<16x256xf32>
    %203 = arith.addf %183, %202 : vector<16x256xf32>
    %c224_i32 = arith.constant 224 : i32
    %204 = tpu.dynamic_rotate %0 by %c224_i32 dim 1 : vector<16x256xf32>, i32 -> vector<16x256xf32>
    %c0_150 = arith.constant 0 : index
    %c38 = arith.constant 38 : index
    %c0_151 = arith.constant 0 : index
    %c0_152 = arith.constant 0 : index
    %205 = vector.load %arg2[%c0_150, %c38, %c0_151, %c0_152] : memref<2x49x16x256xf32, #tpu.memory_space<vmem>>, vector<1x1x16x256xf32>
    %206 = vector.shape_cast %205 : vector<1x1x16x256xf32> to vector<16x256xf32>
    %207 = arith.mulf %204, %206 : vector<16x256xf32>
    %208 = arith.addf %188, %207 : vector<16x256xf32>
    %c223_i32 = arith.constant 223 : i32
    %209 = tpu.dynamic_rotate %0 by %c223_i32 dim 1 : vector<16x256xf32>, i32 -> vector<16x256xf32>
    %c0_153 = arith.constant 0 : index
    %c39 = arith.constant 39 : index
    %c0_154 = arith.constant 0 : index
    %c0_155 = arith.constant 0 : index
    %210 = vector.load %arg2[%c0_153, %c39, %c0_154, %c0_155] : memref<2x49x16x256xf32, #tpu.memory_space<vmem>>, vector<1x1x16x256xf32>
    %211 = vector.shape_cast %210 : vector<1x1x16x256xf32> to vector<16x256xf32>
    %212 = arith.mulf %209, %211 : vector<16x256xf32>
    %213 = arith.addf %193, %212 : vector<16x256xf32>
    %c222_i32 = arith.constant 222 : i32
    %214 = tpu.dynamic_rotate %0 by %c222_i32 dim 1 : vector<16x256xf32>, i32 -> vector<16x256xf32>
    %c0_156 = arith.constant 0 : index
    %c40 = arith.constant 40 : index
    %c0_157 = arith.constant 0 : index
    %c0_158 = arith.constant 0 : index
    %215 = vector.load %arg2[%c0_156, %c40, %c0_157, %c0_158] : memref<2x49x16x256xf32, #tpu.memory_space<vmem>>, vector<1x1x16x256xf32>
    %216 = vector.shape_cast %215 : vector<1x1x16x256xf32> to vector<16x256xf32>
    %217 = arith.mulf %214, %216 : vector<16x256xf32>
    %218 = arith.addf %198, %217 : vector<16x256xf32>
    %c221_i32 = arith.constant 221 : i32
    %219 = tpu.dynamic_rotate %0 by %c221_i32 dim 1 : vector<16x256xf32>, i32 -> vector<16x256xf32>
    %c0_159 = arith.constant 0 : index
    %c41 = arith.constant 41 : index
    %c0_160 = arith.constant 0 : index
    %c0_161 = arith.constant 0 : index
    %220 = vector.load %arg2[%c0_159, %c41, %c0_160, %c0_161] : memref<2x49x16x256xf32, #tpu.memory_space<vmem>>, vector<1x1x16x256xf32>
    %221 = vector.shape_cast %220 : vector<1x1x16x256xf32> to vector<16x256xf32>
    %222 = arith.mulf %219, %221 : vector<16x256xf32>
    %223 = arith.addf %203, %222 : vector<16x256xf32>
    %c211_i32 = arith.constant 211 : i32
    %224 = tpu.dynamic_rotate %0 by %c211_i32 dim 1 : vector<16x256xf32>, i32 -> vector<16x256xf32>
    %c0_162 = arith.constant 0 : index
    %c42 = arith.constant 42 : index
    %c0_163 = arith.constant 0 : index
    %c0_164 = arith.constant 0 : index
    %225 = vector.load %arg2[%c0_162, %c42, %c0_163, %c0_164] : memref<2x49x16x256xf32, #tpu.memory_space<vmem>>, vector<1x1x16x256xf32>
    %226 = vector.shape_cast %225 : vector<1x1x16x256xf32> to vector<16x256xf32>
    %227 = arith.mulf %224, %226 : vector<16x256xf32>
    %228 = arith.addf %208, %227 : vector<16x256xf32>
    %c210_i32 = arith.constant 210 : i32
    %229 = tpu.dynamic_rotate %0 by %c210_i32 dim 1 : vector<16x256xf32>, i32 -> vector<16x256xf32>
    %c0_165 = arith.constant 0 : index
    %c43 = arith.constant 43 : index
    %c0_166 = arith.constant 0 : index
    %c0_167 = arith.constant 0 : index
    %230 = vector.load %arg2[%c0_165, %c43, %c0_166, %c0_167] : memref<2x49x16x256xf32, #tpu.memory_space<vmem>>, vector<1x1x16x256xf32>
    %231 = vector.shape_cast %230 : vector<1x1x16x256xf32> to vector<16x256xf32>
    %232 = arith.mulf %229, %231 : vector<16x256xf32>
    %233 = arith.addf %213, %232 : vector<16x256xf32>
    %c209_i32 = arith.constant 209 : i32
    %234 = tpu.dynamic_rotate %0 by %c209_i32 dim 1 : vector<16x256xf32>, i32 -> vector<16x256xf32>
    %c0_168 = arith.constant 0 : index
    %c44 = arith.constant 44 : index
    %c0_169 = arith.constant 0 : index
    %c0_170 = arith.constant 0 : index
    %235 = vector.load %arg2[%c0_168, %c44, %c0_169, %c0_170] : memref<2x49x16x256xf32, #tpu.memory_space<vmem>>, vector<1x1x16x256xf32>
    %236 = vector.shape_cast %235 : vector<1x1x16x256xf32> to vector<16x256xf32>
    %237 = arith.mulf %234, %236 : vector<16x256xf32>
    %238 = arith.addf %218, %237 : vector<16x256xf32>
    %c208_i32 = arith.constant 208 : i32
    %239 = tpu.dynamic_rotate %0 by %c208_i32 dim 1 : vector<16x256xf32>, i32 -> vector<16x256xf32>
    %c0_171 = arith.constant 0 : index
    %c45 = arith.constant 45 : index
    %c0_172 = arith.constant 0 : index
    %c0_173 = arith.constant 0 : index
    %240 = vector.load %arg2[%c0_171, %c45, %c0_172, %c0_173] : memref<2x49x16x256xf32, #tpu.memory_space<vmem>>, vector<1x1x16x256xf32>
    %241 = vector.shape_cast %240 : vector<1x1x16x256xf32> to vector<16x256xf32>
    %242 = arith.mulf %239, %241 : vector<16x256xf32>
    %243 = arith.addf %223, %242 : vector<16x256xf32>
    %c207_i32 = arith.constant 207 : i32
    %244 = tpu.dynamic_rotate %0 by %c207_i32 dim 1 : vector<16x256xf32>, i32 -> vector<16x256xf32>
    %c0_174 = arith.constant 0 : index
    %c46 = arith.constant 46 : index
    %c0_175 = arith.constant 0 : index
    %c0_176 = arith.constant 0 : index
    %245 = vector.load %arg2[%c0_174, %c46, %c0_175, %c0_176] : memref<2x49x16x256xf32, #tpu.memory_space<vmem>>, vector<1x1x16x256xf32>
    %246 = vector.shape_cast %245 : vector<1x1x16x256xf32> to vector<16x256xf32>
    %247 = arith.mulf %244, %246 : vector<16x256xf32>
    %248 = arith.addf %228, %247 : vector<16x256xf32>
    %c206_i32 = arith.constant 206 : i32
    %249 = tpu.dynamic_rotate %0 by %c206_i32 dim 1 : vector<16x256xf32>, i32 -> vector<16x256xf32>
    %c0_177 = arith.constant 0 : index
    %c47 = arith.constant 47 : index
    %c0_178 = arith.constant 0 : index
    %c0_179 = arith.constant 0 : index
    %250 = vector.load %arg2[%c0_177, %c47, %c0_178, %c0_179] : memref<2x49x16x256xf32, #tpu.memory_space<vmem>>, vector<1x1x16x256xf32>
    %251 = vector.shape_cast %250 : vector<1x1x16x256xf32> to vector<16x256xf32>
    %252 = arith.mulf %249, %251 : vector<16x256xf32>
    %253 = arith.addf %233, %252 : vector<16x256xf32>
    %c205_i32 = arith.constant 205 : i32
    %254 = tpu.dynamic_rotate %0 by %c205_i32 dim 1 : vector<16x256xf32>, i32 -> vector<16x256xf32>
    %c0_180 = arith.constant 0 : index
    %c48 = arith.constant 48 : index
    %c0_181 = arith.constant 0 : index
    %c0_182 = arith.constant 0 : index
    %255 = vector.load %arg2[%c0_180, %c48, %c0_181, %c0_182] : memref<2x49x16x256xf32, #tpu.memory_space<vmem>>, vector<1x1x16x256xf32>
    %256 = vector.shape_cast %255 : vector<1x1x16x256xf32> to vector<16x256xf32>
    %257 = arith.mulf %254, %256 : vector<16x256xf32>
    %258 = arith.addf %238, %257 : vector<16x256xf32>
    %259 = arith.addf %258, %243 : vector<16x256xf32>
    %260 = arith.addf %248, %253 : vector<16x256xf32>
    %261 = arith.addf %259, %260 : vector<16x256xf32>
    %262 = vector.broadcast %2 : vector<16x1xf32> to vector<16x256xf32>
    %263 = arith.addf %261, %262 : vector<16x256xf32>
    %264 = vector.extract_strided_slice %263 {offsets = [0, 0], sizes = [8, 256], strides = [1, 1]} : vector<16x256xf32> to vector<8x256xf32>
    %cst = arith.constant dense<0.000000e+00> : vector<256xf32>
    %265 = vector.multi_reduction <add>, %264, %cst [0] : vector<8x256xf32> to vector<256xf32>
    %266 = vector.shape_cast %265 : vector<256xf32> to vector<1x256xf32>
    %cst_183 = arith.constant 8.000000e+00 : f32
    %267 = vector.broadcast %cst_183 : f32 to vector<1x256xf32>
    %268 = arith.divf %266, %267 : vector<1x256xf32>
    %269 = vector.broadcast %268 : vector<1x256xf32> to vector<8x256xf32>
    %270 = arith.subf %264, %269 : vector<8x256xf32>
    %271 = arith.mulf %270, %270 : vector<8x256xf32>
    %cst_184 = arith.constant dense<0.000000e+00> : vector<256xf32>
    %272 = vector.multi_reduction <add>, %271, %cst_184 [0] : vector<8x256xf32> to vector<256xf32>
    %273 = vector.shape_cast %272 : vector<256xf32> to vector<1x256xf32>
    %cst_185 = arith.constant 8.000000e+00 : f32
    %274 = vector.broadcast %cst_185 : f32 to vector<1x256xf32>
    %275 = arith.divf %273, %274 : vector<1x256xf32>
    %cst_186 = arith.constant 9.99999974E-6 : f32
    %276 = vector.broadcast %cst_186 : f32 to vector<1x256xf32>
    %277 = arith.addf %275, %276 : vector<1x256xf32>
    %278 = math.rsqrt %277 : vector<1x256xf32>
    %279 = vector.broadcast %278 : vector<1x256xf32> to vector<8x256xf32>
    %280 = arith.mulf %270, %279 : vector<8x256xf32>
    %281 = vector.extract_strided_slice %263 {offsets = [8, 0], sizes = [8, 256], strides = [1, 1]} : vector<16x256xf32> to vector<8x256xf32>
    %cst_187 = arith.constant dense<0.000000e+00> : vector<256xf32>
    %282 = vector.multi_reduction <add>, %281, %cst_187 [0] : vector<8x256xf32> to vector<256xf32>
    %283 = vector.shape_cast %282 : vector<256xf32> to vector<1x256xf32>
    %cst_188 = arith.constant 8.000000e+00 : f32
    %284 = vector.broadcast %cst_188 : f32 to vector<1x256xf32>
    %285 = arith.divf %283, %284 : vector<1x256xf32>
    %286 = vector.broadcast %285 : vector<1x256xf32> to vector<8x256xf32>
    %287 = arith.subf %281, %286 : vector<8x256xf32>
    %288 = arith.mulf %287, %287 : vector<8x256xf32>
    %cst_189 = arith.constant dense<0.000000e+00> : vector<256xf32>
    %289 = vector.multi_reduction <add>, %288, %cst_189 [0] : vector<8x256xf32> to vector<256xf32>
    %290 = vector.shape_cast %289 : vector<256xf32> to vector<1x256xf32>
    %cst_190 = arith.constant 8.000000e+00 : f32
    %291 = vector.broadcast %cst_190 : f32 to vector<1x256xf32>
    %292 = arith.divf %290, %291 : vector<1x256xf32>
    %cst_191 = arith.constant 9.99999974E-6 : f32
    %293 = vector.broadcast %cst_191 : f32 to vector<1x256xf32>
    %294 = arith.addf %292, %293 : vector<1x256xf32>
    %295 = math.rsqrt %294 : vector<1x256xf32>
    %296 = vector.broadcast %295 : vector<1x256xf32> to vector<8x256xf32>
    %297 = arith.mulf %287, %296 : vector<8x256xf32>
    %298 = tpu.concatenate %280, %297 in 0 : vector<8x256xf32>, vector<8x256xf32> -> vector<16x256xf32>
    %299 = vector.broadcast %4 : vector<16x1xf32> to vector<16x256xf32>
    %300 = arith.mulf %298, %299 : vector<16x256xf32>
    %301 = vector.broadcast %6 : vector<16x1xf32> to vector<16x256xf32>
    %302 = arith.addf %300, %301 : vector<16x256xf32>
    %cst_192 = arith.constant dense<0.000000e+00> : vector<64x256xf32>
    %303 = tpu.matmul %16, %302, %cst_192 {dimension_numbers = #tpu.dot_dimension_numbers<[1], [0], [0], [1], [0, 0, 1, 1], [], []>} : vector<64x16xf32>, vector<16x256xf32>, vector<64x256xf32> -> vector<64x256xf32>
    %304 = vector.broadcast %10 : vector<64x1xf32> to vector<64x256xf32>
    %305 = arith.addf %303, %304 : vector<64x256xf32>
    %cst_193 = arith.constant 5.000000e-01 : f32
    %306 = vector.broadcast %cst_193 : f32 to vector<64x256xf32>
    %307 = arith.mulf %306, %305 : vector<64x256xf32>
    %cst_194 = arith.constant 0.707106769 : f32
    %308 = vector.broadcast %cst_194 : f32 to vector<64x256xf32>
    %309 = arith.mulf %305, %308 : vector<64x256xf32>
    %310 = math.erf %309 : vector<64x256xf32>
    %cst_195 = arith.constant 1.000000e+00 : f32
    %311 = vector.broadcast %cst_195 : f32 to vector<64x256xf32>
    %312 = arith.addf %311, %310 : vector<64x256xf32>
    %313 = arith.mulf %307, %312 : vector<64x256xf32>
    %314 = arith.mulf %313, %313 : vector<64x256xf32>
    %cst_196 = arith.constant dense<0.000000e+00> : vector<64xf32>
    %315 = vector.multi_reduction <add>, %314, %cst_196 [1] : vector<64x256xf32> to vector<64xf32>
    %316 = vector.shape_cast %315 : vector<64xf32> to vector<64x1xf32>
    %317 = math.sqrt %316 : vector<64x1xf32>
    %318 = vector.extract_strided_slice %317 {offsets = [0, 0], sizes = [32, 1], strides = [1, 1]} : vector<64x1xf32> to vector<32x1xf32>
    %cst_197 = arith.constant dense<0.000000e+00> : vector<1xf32>
    %319 = vector.multi_reduction <add>, %318, %cst_197 [0] : vector<32x1xf32> to vector<1xf32>
    %320 = vector.shape_cast %319 : vector<1xf32> to vector<1x1xf32>
    %cst_198 = arith.constant 3.200000e+01 : f32
    %321 = vector.broadcast %cst_198 : f32 to vector<1x1xf32>
    %322 = arith.divf %320, %321 : vector<1x1xf32>
    %323 = vector.shape_cast %322 : vector<1x1xf32> to vector<1x1xf32>
    %324 = vector.broadcast %323 : vector<1x1xf32> to vector<32x1xf32>
    %325 = vector.extract_strided_slice %317 {offsets = [32, 0], sizes = [32, 1], strides = [1, 1]} : vector<64x1xf32> to vector<32x1xf32>
    %cst_199 = arith.constant dense<0.000000e+00> : vector<1xf32>
    %326 = vector.multi_reduction <add>, %325, %cst_199 [0] : vector<32x1xf32> to vector<1xf32>
    %327 = vector.shape_cast %326 : vector<1xf32> to vector<1x1xf32>
    %cst_200 = arith.constant 3.200000e+01 : f32
    %328 = vector.broadcast %cst_200 : f32 to vector<1x1xf32>
    %329 = arith.divf %327, %328 : vector<1x1xf32>
    %330 = vector.shape_cast %329 : vector<1x1xf32> to vector<1x1xf32>
    %331 = vector.broadcast %330 : vector<1x1xf32> to vector<32x1xf32>
    %332 = tpu.concatenate %324, %331 in 0 : vector<32x1xf32>, vector<32x1xf32> -> vector<64x1xf32>
    %cst_201 = arith.constant 9.99999997E-7 : f32
    %333 = vector.broadcast %cst_201 : f32 to vector<64x1xf32>
    %334 = arith.addf %332, %333 : vector<64x1xf32>
    %335 = arith.divf %317, %334 : vector<64x1xf32>
    %336 = vector.broadcast %335 : vector<64x1xf32> to vector<64x256xf32>
    %337 = arith.mulf %313, %336 : vector<64x256xf32>
    %338 = vector.broadcast %12 : vector<64x1xf32> to vector<64x256xf32>
    %339 = arith.mulf %338, %337 : vector<64x256xf32>
    %340 = vector.broadcast %14 : vector<64x1xf32> to vector<64x256xf32>
    %341 = arith.addf %339, %340 : vector<64x256xf32>
    %342 = arith.addf %341, %313 : vector<64x256xf32>
    %cst_202 = arith.constant dense<0.000000e+00> : vector<16x256xf32>
    %343 = tpu.matmul %18, %342, %cst_202 {dimension_numbers = #tpu.dot_dimension_numbers<[1], [0], [0], [1], [0, 0, 1, 1], [], []>} : vector<16x64xf32>, vector<64x256xf32>, vector<16x256xf32> -> vector<16x256xf32>
    %344 = vector.broadcast %8 : vector<16x1xf32> to vector<16x256xf32>
    %345 = arith.addf %343, %344 : vector<16x256xf32>
    %346 = arith.addf %345, %0 : vector<16x256xf32>
    %c1_203 = arith.constant 1 : index
    %c0_204 = arith.constant 0 : index
    %c0_205 = arith.constant 0 : index
    %c0_206 = arith.constant 0 : index
    %347 = vector.load %arg3[%c1_203, %c0_204, %c0_205, %c0_206] : memref<2x4x16x1xf32, #tpu.memory_space<vmem>>, vector<1x1x16x1xf32>
    %348 = vector.shape_cast %347 : vector<1x1x16x1xf32> to vector<16x1xf32>
    %c1_207 = arith.constant 1 : index
    %c1_208 = arith.constant 1 : index
    %c0_209 = arith.constant 0 : index
    %c0_210 = arith.constant 0 : index
    %349 = vector.load %arg3[%c1_207, %c1_208, %c0_209, %c0_210] : memref<2x4x16x1xf32, #tpu.memory_space<vmem>>, vector<1x1x16x1xf32>
    %350 = vector.shape_cast %349 : vector<1x1x16x1xf32> to vector<16x1xf32>
    %c1_211 = arith.constant 1 : index
    %c2_212 = arith.constant 2 : index
    %c0_213 = arith.constant 0 : index
    %c0_214 = arith.constant 0 : index
    %351 = vector.load %arg3[%c1_211, %c2_212, %c0_213, %c0_214] : memref<2x4x16x1xf32, #tpu.memory_space<vmem>>, vector<1x1x16x1xf32>
    %352 = vector.shape_cast %351 : vector<1x1x16x1xf32> to vector<16x1xf32>
    %c1_215 = arith.constant 1 : index
    %c3_216 = arith.constant 3 : index
    %c0_217 = arith.constant 0 : index
    %c0_218 = arith.constant 0 : index
    %353 = vector.load %arg3[%c1_215, %c3_216, %c0_217, %c0_218] : memref<2x4x16x1xf32, #tpu.memory_space<vmem>>, vector<1x1x16x1xf32>
    %354 = vector.shape_cast %353 : vector<1x1x16x1xf32> to vector<16x1xf32>
    %c1_219 = arith.constant 1 : index
    %c0_220 = arith.constant 0 : index
    %c0_221 = arith.constant 0 : index
    %c0_222 = arith.constant 0 : index
    %355 = vector.load %arg4[%c1_219, %c0_220, %c0_221, %c0_222] : memref<2x3x64x1xf32, #tpu.memory_space<vmem>>, vector<1x1x64x1xf32>
    %356 = vector.shape_cast %355 : vector<1x1x64x1xf32> to vector<64x1xf32>
    %c1_223 = arith.constant 1 : index
    %c1_224 = arith.constant 1 : index
    %c0_225 = arith.constant 0 : index
    %c0_226 = arith.constant 0 : index
    %357 = vector.load %arg4[%c1_223, %c1_224, %c0_225, %c0_226] : memref<2x3x64x1xf32, #tpu.memory_space<vmem>>, vector<1x1x64x1xf32>
    %358 = vector.shape_cast %357 : vector<1x1x64x1xf32> to vector<64x1xf32>
    %c1_227 = arith.constant 1 : index
    %c2_228 = arith.constant 2 : index
    %c0_229 = arith.constant 0 : index
    %c0_230 = arith.constant 0 : index
    %359 = vector.load %arg4[%c1_227, %c2_228, %c0_229, %c0_230] : memref<2x3x64x1xf32, #tpu.memory_space<vmem>>, vector<1x1x64x1xf32>
    %360 = vector.shape_cast %359 : vector<1x1x64x1xf32> to vector<64x1xf32>
    %c1_231 = arith.constant 1 : index
    %c0_232 = arith.constant 0 : index
    %c0_233 = arith.constant 0 : index
    %361 = vector.load %arg5[%c1_231, %c0_232, %c0_233] : memref<2x64x16xf32, #tpu.memory_space<vmem>>, vector<1x64x16xf32>
    %362 = vector.shape_cast %361 : vector<1x64x16xf32> to vector<64x16xf32>
    %c1_234 = arith.constant 1 : index
    %c0_235 = arith.constant 0 : index
    %c0_236 = arith.constant 0 : index
    %363 = vector.load %arg6[%c1_234, %c0_235, %c0_236] : memref<2x16x64xf32, #tpu.memory_space<vmem>>, vector<1x16x64xf32>
    %364 = vector.shape_cast %363 : vector<1x16x64xf32> to vector<16x64xf32>
    %c51_i32_237 = arith.constant 51 : i32
    %365 = tpu.dynamic_rotate %346 by %c51_i32_237 dim 1 : vector<16x256xf32>, i32 -> vector<16x256xf32>
    %c1_238 = arith.constant 1 : index
    %c0_239 = arith.constant 0 : index
    %c0_240 = arith.constant 0 : index
    %c0_241 = arith.constant 0 : index
    %366 = vector.load %arg2[%c1_238, %c0_239, %c0_240, %c0_241] : memref<2x49x16x256xf32, #tpu.memory_space<vmem>>, vector<1x1x16x256xf32>
    %367 = vector.shape_cast %366 : vector<1x1x16x256xf32> to vector<16x256xf32>
    %368 = arith.mulf %365, %367 : vector<16x256xf32>
    %c50_i32_242 = arith.constant 50 : i32
    %369 = tpu.dynamic_rotate %346 by %c50_i32_242 dim 1 : vector<16x256xf32>, i32 -> vector<16x256xf32>
    %c1_243 = arith.constant 1 : index
    %c1_244 = arith.constant 1 : index
    %c0_245 = arith.constant 0 : index
    %c0_246 = arith.constant 0 : index
    %370 = vector.load %arg2[%c1_243, %c1_244, %c0_245, %c0_246] : memref<2x49x16x256xf32, #tpu.memory_space<vmem>>, vector<1x1x16x256xf32>
    %371 = vector.shape_cast %370 : vector<1x1x16x256xf32> to vector<16x256xf32>
    %372 = arith.mulf %369, %371 : vector<16x256xf32>
    %c49_i32_247 = arith.constant 49 : i32
    %373 = tpu.dynamic_rotate %346 by %c49_i32_247 dim 1 : vector<16x256xf32>, i32 -> vector<16x256xf32>
    %c1_248 = arith.constant 1 : index
    %c2_249 = arith.constant 2 : index
    %c0_250 = arith.constant 0 : index
    %c0_251 = arith.constant 0 : index
    %374 = vector.load %arg2[%c1_248, %c2_249, %c0_250, %c0_251] : memref<2x49x16x256xf32, #tpu.memory_space<vmem>>, vector<1x1x16x256xf32>
    %375 = vector.shape_cast %374 : vector<1x1x16x256xf32> to vector<16x256xf32>
    %376 = arith.mulf %373, %375 : vector<16x256xf32>
    %c48_i32_252 = arith.constant 48 : i32
    %377 = tpu.dynamic_rotate %346 by %c48_i32_252 dim 1 : vector<16x256xf32>, i32 -> vector<16x256xf32>
    %c1_253 = arith.constant 1 : index
    %c3_254 = arith.constant 3 : index
    %c0_255 = arith.constant 0 : index
    %c0_256 = arith.constant 0 : index
    %378 = vector.load %arg2[%c1_253, %c3_254, %c0_255, %c0_256] : memref<2x49x16x256xf32, #tpu.memory_space<vmem>>, vector<1x1x16x256xf32>
    %379 = vector.shape_cast %378 : vector<1x1x16x256xf32> to vector<16x256xf32>
    %380 = arith.mulf %377, %379 : vector<16x256xf32>
    %c47_i32_257 = arith.constant 47 : i32
    %381 = tpu.dynamic_rotate %346 by %c47_i32_257 dim 1 : vector<16x256xf32>, i32 -> vector<16x256xf32>
    %c1_258 = arith.constant 1 : index
    %c4_259 = arith.constant 4 : index
    %c0_260 = arith.constant 0 : index
    %c0_261 = arith.constant 0 : index
    %382 = vector.load %arg2[%c1_258, %c4_259, %c0_260, %c0_261] : memref<2x49x16x256xf32, #tpu.memory_space<vmem>>, vector<1x1x16x256xf32>
    %383 = vector.shape_cast %382 : vector<1x1x16x256xf32> to vector<16x256xf32>
    %384 = arith.mulf %381, %383 : vector<16x256xf32>
    %385 = arith.addf %368, %384 : vector<16x256xf32>
    %c46_i32_262 = arith.constant 46 : i32
    %386 = tpu.dynamic_rotate %346 by %c46_i32_262 dim 1 : vector<16x256xf32>, i32 -> vector<16x256xf32>
    %c1_263 = arith.constant 1 : index
    %c5_264 = arith.constant 5 : index
    %c0_265 = arith.constant 0 : index
    %c0_266 = arith.constant 0 : index
    %387 = vector.load %arg2[%c1_263, %c5_264, %c0_265, %c0_266] : memref<2x49x16x256xf32, #tpu.memory_space<vmem>>, vector<1x1x16x256xf32>
    %388 = vector.shape_cast %387 : vector<1x1x16x256xf32> to vector<16x256xf32>
    %389 = arith.mulf %386, %388 : vector<16x256xf32>
    %390 = arith.addf %372, %389 : vector<16x256xf32>
    %c45_i32_267 = arith.constant 45 : i32
    %391 = tpu.dynamic_rotate %346 by %c45_i32_267 dim 1 : vector<16x256xf32>, i32 -> vector<16x256xf32>
    %c1_268 = arith.constant 1 : index
    %c6_269 = arith.constant 6 : index
    %c0_270 = arith.constant 0 : index
    %c0_271 = arith.constant 0 : index
    %392 = vector.load %arg2[%c1_268, %c6_269, %c0_270, %c0_271] : memref<2x49x16x256xf32, #tpu.memory_space<vmem>>, vector<1x1x16x256xf32>
    %393 = vector.shape_cast %392 : vector<1x1x16x256xf32> to vector<16x256xf32>
    %394 = arith.mulf %391, %393 : vector<16x256xf32>
    %395 = arith.addf %376, %394 : vector<16x256xf32>
    %c35_i32_272 = arith.constant 35 : i32
    %396 = tpu.dynamic_rotate %346 by %c35_i32_272 dim 1 : vector<16x256xf32>, i32 -> vector<16x256xf32>
    %c1_273 = arith.constant 1 : index
    %c7_274 = arith.constant 7 : index
    %c0_275 = arith.constant 0 : index
    %c0_276 = arith.constant 0 : index
    %397 = vector.load %arg2[%c1_273, %c7_274, %c0_275, %c0_276] : memref<2x49x16x256xf32, #tpu.memory_space<vmem>>, vector<1x1x16x256xf32>
    %398 = vector.shape_cast %397 : vector<1x1x16x256xf32> to vector<16x256xf32>
    %399 = arith.mulf %396, %398 : vector<16x256xf32>
    %400 = arith.addf %380, %399 : vector<16x256xf32>
    %c34_i32_277 = arith.constant 34 : i32
    %401 = tpu.dynamic_rotate %346 by %c34_i32_277 dim 1 : vector<16x256xf32>, i32 -> vector<16x256xf32>
    %c1_278 = arith.constant 1 : index
    %c8_279 = arith.constant 8 : index
    %c0_280 = arith.constant 0 : index
    %c0_281 = arith.constant 0 : index
    %402 = vector.load %arg2[%c1_278, %c8_279, %c0_280, %c0_281] : memref<2x49x16x256xf32, #tpu.memory_space<vmem>>, vector<1x1x16x256xf32>
    %403 = vector.shape_cast %402 : vector<1x1x16x256xf32> to vector<16x256xf32>
    %404 = arith.mulf %401, %403 : vector<16x256xf32>
    %405 = arith.addf %385, %404 : vector<16x256xf32>
    %c33_i32_282 = arith.constant 33 : i32
    %406 = tpu.dynamic_rotate %346 by %c33_i32_282 dim 1 : vector<16x256xf32>, i32 -> vector<16x256xf32>
    %c1_283 = arith.constant 1 : index
    %c9_284 = arith.constant 9 : index
    %c0_285 = arith.constant 0 : index
    %c0_286 = arith.constant 0 : index
    %407 = vector.load %arg2[%c1_283, %c9_284, %c0_285, %c0_286] : memref<2x49x16x256xf32, #tpu.memory_space<vmem>>, vector<1x1x16x256xf32>
    %408 = vector.shape_cast %407 : vector<1x1x16x256xf32> to vector<16x256xf32>
    %409 = arith.mulf %406, %408 : vector<16x256xf32>
    %410 = arith.addf %390, %409 : vector<16x256xf32>
    %c32_i32_287 = arith.constant 32 : i32
    %411 = tpu.dynamic_rotate %346 by %c32_i32_287 dim 1 : vector<16x256xf32>, i32 -> vector<16x256xf32>
    %c1_288 = arith.constant 1 : index
    %c10_289 = arith.constant 10 : index
    %c0_290 = arith.constant 0 : index
    %c0_291 = arith.constant 0 : index
    %412 = vector.load %arg2[%c1_288, %c10_289, %c0_290, %c0_291] : memref<2x49x16x256xf32, #tpu.memory_space<vmem>>, vector<1x1x16x256xf32>
    %413 = vector.shape_cast %412 : vector<1x1x16x256xf32> to vector<16x256xf32>
    %414 = arith.mulf %411, %413 : vector<16x256xf32>
    %415 = arith.addf %395, %414 : vector<16x256xf32>
    %c31_i32_292 = arith.constant 31 : i32
    %416 = tpu.dynamic_rotate %346 by %c31_i32_292 dim 1 : vector<16x256xf32>, i32 -> vector<16x256xf32>
    %c1_293 = arith.constant 1 : index
    %c11_294 = arith.constant 11 : index
    %c0_295 = arith.constant 0 : index
    %c0_296 = arith.constant 0 : index
    %417 = vector.load %arg2[%c1_293, %c11_294, %c0_295, %c0_296] : memref<2x49x16x256xf32, #tpu.memory_space<vmem>>, vector<1x1x16x256xf32>
    %418 = vector.shape_cast %417 : vector<1x1x16x256xf32> to vector<16x256xf32>
    %419 = arith.mulf %416, %418 : vector<16x256xf32>
    %420 = arith.addf %400, %419 : vector<16x256xf32>
    %c30_i32_297 = arith.constant 30 : i32
    %421 = tpu.dynamic_rotate %346 by %c30_i32_297 dim 1 : vector<16x256xf32>, i32 -> vector<16x256xf32>
    %c1_298 = arith.constant 1 : index
    %c12_299 = arith.constant 12 : index
    %c0_300 = arith.constant 0 : index
    %c0_301 = arith.constant 0 : index
    %422 = vector.load %arg2[%c1_298, %c12_299, %c0_300, %c0_301] : memref<2x49x16x256xf32, #tpu.memory_space<vmem>>, vector<1x1x16x256xf32>
    %423 = vector.shape_cast %422 : vector<1x1x16x256xf32> to vector<16x256xf32>
    %424 = arith.mulf %421, %423 : vector<16x256xf32>
    %425 = arith.addf %405, %424 : vector<16x256xf32>
    %c29_i32_302 = arith.constant 29 : i32
    %426 = tpu.dynamic_rotate %346 by %c29_i32_302 dim 1 : vector<16x256xf32>, i32 -> vector<16x256xf32>
    %c1_303 = arith.constant 1 : index
    %c13_304 = arith.constant 13 : index
    %c0_305 = arith.constant 0 : index
    %c0_306 = arith.constant 0 : index
    %427 = vector.load %arg2[%c1_303, %c13_304, %c0_305, %c0_306] : memref<2x49x16x256xf32, #tpu.memory_space<vmem>>, vector<1x1x16x256xf32>
    %428 = vector.shape_cast %427 : vector<1x1x16x256xf32> to vector<16x256xf32>
    %429 = arith.mulf %426, %428 : vector<16x256xf32>
    %430 = arith.addf %410, %429 : vector<16x256xf32>
    %c19_i32_307 = arith.constant 19 : i32
    %431 = tpu.dynamic_rotate %346 by %c19_i32_307 dim 1 : vector<16x256xf32>, i32 -> vector<16x256xf32>
    %c1_308 = arith.constant 1 : index
    %c14_309 = arith.constant 14 : index
    %c0_310 = arith.constant 0 : index
    %c0_311 = arith.constant 0 : index
    %432 = vector.load %arg2[%c1_308, %c14_309, %c0_310, %c0_311] : memref<2x49x16x256xf32, #tpu.memory_space<vmem>>, vector<1x1x16x256xf32>
    %433 = vector.shape_cast %432 : vector<1x1x16x256xf32> to vector<16x256xf32>
    %434 = arith.mulf %431, %433 : vector<16x256xf32>
    %435 = arith.addf %415, %434 : vector<16x256xf32>
    %c18_i32_312 = arith.constant 18 : i32
    %436 = tpu.dynamic_rotate %346 by %c18_i32_312 dim 1 : vector<16x256xf32>, i32 -> vector<16x256xf32>
    %c1_313 = arith.constant 1 : index
    %c15_314 = arith.constant 15 : index
    %c0_315 = arith.constant 0 : index
    %c0_316 = arith.constant 0 : index
    %437 = vector.load %arg2[%c1_313, %c15_314, %c0_315, %c0_316] : memref<2x49x16x256xf32, #tpu.memory_space<vmem>>, vector<1x1x16x256xf32>
    %438 = vector.shape_cast %437 : vector<1x1x16x256xf32> to vector<16x256xf32>
    %439 = arith.mulf %436, %438 : vector<16x256xf32>
    %440 = arith.addf %420, %439 : vector<16x256xf32>
    %c17_i32_317 = arith.constant 17 : i32
    %441 = tpu.dynamic_rotate %346 by %c17_i32_317 dim 1 : vector<16x256xf32>, i32 -> vector<16x256xf32>
    %c1_318 = arith.constant 1 : index
    %c16_319 = arith.constant 16 : index
    %c0_320 = arith.constant 0 : index
    %c0_321 = arith.constant 0 : index
    %442 = vector.load %arg2[%c1_318, %c16_319, %c0_320, %c0_321] : memref<2x49x16x256xf32, #tpu.memory_space<vmem>>, vector<1x1x16x256xf32>
    %443 = vector.shape_cast %442 : vector<1x1x16x256xf32> to vector<16x256xf32>
    %444 = arith.mulf %441, %443 : vector<16x256xf32>
    %445 = arith.addf %425, %444 : vector<16x256xf32>
    %c16_i32_322 = arith.constant 16 : i32
    %446 = tpu.dynamic_rotate %346 by %c16_i32_322 dim 1 : vector<16x256xf32>, i32 -> vector<16x256xf32>
    %c1_323 = arith.constant 1 : index
    %c17_324 = arith.constant 17 : index
    %c0_325 = arith.constant 0 : index
    %c0_326 = arith.constant 0 : index
    %447 = vector.load %arg2[%c1_323, %c17_324, %c0_325, %c0_326] : memref<2x49x16x256xf32, #tpu.memory_space<vmem>>, vector<1x1x16x256xf32>
    %448 = vector.shape_cast %447 : vector<1x1x16x256xf32> to vector<16x256xf32>
    %449 = arith.mulf %446, %448 : vector<16x256xf32>
    %450 = arith.addf %430, %449 : vector<16x256xf32>
    %c15_i32_327 = arith.constant 15 : i32
    %451 = tpu.dynamic_rotate %346 by %c15_i32_327 dim 1 : vector<16x256xf32>, i32 -> vector<16x256xf32>
    %c1_328 = arith.constant 1 : index
    %c18_329 = arith.constant 18 : index
    %c0_330 = arith.constant 0 : index
    %c0_331 = arith.constant 0 : index
    %452 = vector.load %arg2[%c1_328, %c18_329, %c0_330, %c0_331] : memref<2x49x16x256xf32, #tpu.memory_space<vmem>>, vector<1x1x16x256xf32>
    %453 = vector.shape_cast %452 : vector<1x1x16x256xf32> to vector<16x256xf32>
    %454 = arith.mulf %451, %453 : vector<16x256xf32>
    %455 = arith.addf %435, %454 : vector<16x256xf32>
    %c14_i32_332 = arith.constant 14 : i32
    %456 = tpu.dynamic_rotate %346 by %c14_i32_332 dim 1 : vector<16x256xf32>, i32 -> vector<16x256xf32>
    %c1_333 = arith.constant 1 : index
    %c19_334 = arith.constant 19 : index
    %c0_335 = arith.constant 0 : index
    %c0_336 = arith.constant 0 : index
    %457 = vector.load %arg2[%c1_333, %c19_334, %c0_335, %c0_336] : memref<2x49x16x256xf32, #tpu.memory_space<vmem>>, vector<1x1x16x256xf32>
    %458 = vector.shape_cast %457 : vector<1x1x16x256xf32> to vector<16x256xf32>
    %459 = arith.mulf %456, %458 : vector<16x256xf32>
    %460 = arith.addf %440, %459 : vector<16x256xf32>
    %c13_i32_337 = arith.constant 13 : i32
    %461 = tpu.dynamic_rotate %346 by %c13_i32_337 dim 1 : vector<16x256xf32>, i32 -> vector<16x256xf32>
    %c1_338 = arith.constant 1 : index
    %c20_339 = arith.constant 20 : index
    %c0_340 = arith.constant 0 : index
    %c0_341 = arith.constant 0 : index
    %462 = vector.load %arg2[%c1_338, %c20_339, %c0_340, %c0_341] : memref<2x49x16x256xf32, #tpu.memory_space<vmem>>, vector<1x1x16x256xf32>
    %463 = vector.shape_cast %462 : vector<1x1x16x256xf32> to vector<16x256xf32>
    %464 = arith.mulf %461, %463 : vector<16x256xf32>
    %465 = arith.addf %445, %464 : vector<16x256xf32>
    %c3_i32_342 = arith.constant 3 : i32
    %466 = tpu.dynamic_rotate %346 by %c3_i32_342 dim 1 : vector<16x256xf32>, i32 -> vector<16x256xf32>
    %c1_343 = arith.constant 1 : index
    %c21_344 = arith.constant 21 : index
    %c0_345 = arith.constant 0 : index
    %c0_346 = arith.constant 0 : index
    %467 = vector.load %arg2[%c1_343, %c21_344, %c0_345, %c0_346] : memref<2x49x16x256xf32, #tpu.memory_space<vmem>>, vector<1x1x16x256xf32>
    %468 = vector.shape_cast %467 : vector<1x1x16x256xf32> to vector<16x256xf32>
    %469 = arith.mulf %466, %468 : vector<16x256xf32>
    %470 = arith.addf %450, %469 : vector<16x256xf32>
    %c2_i32_347 = arith.constant 2 : i32
    %471 = tpu.dynamic_rotate %346 by %c2_i32_347 dim 1 : vector<16x256xf32>, i32 -> vector<16x256xf32>
    %c1_348 = arith.constant 1 : index
    %c22_349 = arith.constant 22 : index
    %c0_350 = arith.constant 0 : index
    %c0_351 = arith.constant 0 : index
    %472 = vector.load %arg2[%c1_348, %c22_349, %c0_350, %c0_351] : memref<2x49x16x256xf32, #tpu.memory_space<vmem>>, vector<1x1x16x256xf32>
    %473 = vector.shape_cast %472 : vector<1x1x16x256xf32> to vector<16x256xf32>
    %474 = arith.mulf %471, %473 : vector<16x256xf32>
    %475 = arith.addf %455, %474 : vector<16x256xf32>
    %c1_i32_352 = arith.constant 1 : i32
    %476 = tpu.dynamic_rotate %346 by %c1_i32_352 dim 1 : vector<16x256xf32>, i32 -> vector<16x256xf32>
    %c1_353 = arith.constant 1 : index
    %c23_354 = arith.constant 23 : index
    %c0_355 = arith.constant 0 : index
    %c0_356 = arith.constant 0 : index
    %477 = vector.load %arg2[%c1_353, %c23_354, %c0_355, %c0_356] : memref<2x49x16x256xf32, #tpu.memory_space<vmem>>, vector<1x1x16x256xf32>
    %478 = vector.shape_cast %477 : vector<1x1x16x256xf32> to vector<16x256xf32>
    %479 = arith.mulf %476, %478 : vector<16x256xf32>
    %480 = arith.addf %460, %479 : vector<16x256xf32>
    %c1_357 = arith.constant 1 : index
    %c24_358 = arith.constant 24 : index
    %c0_359 = arith.constant 0 : index
    %c0_360 = arith.constant 0 : index
    %481 = vector.load %arg2[%c1_357, %c24_358, %c0_359, %c0_360] : memref<2x49x16x256xf32, #tpu.memory_space<vmem>>, vector<1x1x16x256xf32>
    %482 = vector.shape_cast %481 : vector<1x1x16x256xf32> to vector<16x256xf32>
    %483 = arith.mulf %346, %482 : vector<16x256xf32>
    %484 = arith.addf %465, %483 : vector<16x256xf32>
    %c255_i32_361 = arith.constant 255 : i32
    %485 = tpu.dynamic_rotate %346 by %c255_i32_361 dim 1 : vector<16x256xf32>, i32 -> vector<16x256xf32>
    %c1_362 = arith.constant 1 : index
    %c25_363 = arith.constant 25 : index
    %c0_364 = arith.constant 0 : index
    %c0_365 = arith.constant 0 : index
    %486 = vector.load %arg2[%c1_362, %c25_363, %c0_364, %c0_365] : memref<2x49x16x256xf32, #tpu.memory_space<vmem>>, vector<1x1x16x256xf32>
    %487 = vector.shape_cast %486 : vector<1x1x16x256xf32> to vector<16x256xf32>
    %488 = arith.mulf %485, %487 : vector<16x256xf32>
    %489 = arith.addf %470, %488 : vector<16x256xf32>
    %c254_i32_366 = arith.constant 254 : i32
    %490 = tpu.dynamic_rotate %346 by %c254_i32_366 dim 1 : vector<16x256xf32>, i32 -> vector<16x256xf32>
    %c1_367 = arith.constant 1 : index
    %c26_368 = arith.constant 26 : index
    %c0_369 = arith.constant 0 : index
    %c0_370 = arith.constant 0 : index
    %491 = vector.load %arg2[%c1_367, %c26_368, %c0_369, %c0_370] : memref<2x49x16x256xf32, #tpu.memory_space<vmem>>, vector<1x1x16x256xf32>
    %492 = vector.shape_cast %491 : vector<1x1x16x256xf32> to vector<16x256xf32>
    %493 = arith.mulf %490, %492 : vector<16x256xf32>
    %494 = arith.addf %475, %493 : vector<16x256xf32>
    %c253_i32_371 = arith.constant 253 : i32
    %495 = tpu.dynamic_rotate %346 by %c253_i32_371 dim 1 : vector<16x256xf32>, i32 -> vector<16x256xf32>
    %c1_372 = arith.constant 1 : index
    %c27_373 = arith.constant 27 : index
    %c0_374 = arith.constant 0 : index
    %c0_375 = arith.constant 0 : index
    %496 = vector.load %arg2[%c1_372, %c27_373, %c0_374, %c0_375] : memref<2x49x16x256xf32, #tpu.memory_space<vmem>>, vector<1x1x16x256xf32>
    %497 = vector.shape_cast %496 : vector<1x1x16x256xf32> to vector<16x256xf32>
    %498 = arith.mulf %495, %497 : vector<16x256xf32>
    %499 = arith.addf %480, %498 : vector<16x256xf32>
    %c243_i32_376 = arith.constant 243 : i32
    %500 = tpu.dynamic_rotate %346 by %c243_i32_376 dim 1 : vector<16x256xf32>, i32 -> vector<16x256xf32>
    %c1_377 = arith.constant 1 : index
    %c28_378 = arith.constant 28 : index
    %c0_379 = arith.constant 0 : index
    %c0_380 = arith.constant 0 : index
    %501 = vector.load %arg2[%c1_377, %c28_378, %c0_379, %c0_380] : memref<2x49x16x256xf32, #tpu.memory_space<vmem>>, vector<1x1x16x256xf32>
    %502 = vector.shape_cast %501 : vector<1x1x16x256xf32> to vector<16x256xf32>
    %503 = arith.mulf %500, %502 : vector<16x256xf32>
    %504 = arith.addf %484, %503 : vector<16x256xf32>
    %c242_i32_381 = arith.constant 242 : i32
    %505 = tpu.dynamic_rotate %346 by %c242_i32_381 dim 1 : vector<16x256xf32>, i32 -> vector<16x256xf32>
    %c1_382 = arith.constant 1 : index
    %c29_383 = arith.constant 29 : index
    %c0_384 = arith.constant 0 : index
    %c0_385 = arith.constant 0 : index
    %506 = vector.load %arg2[%c1_382, %c29_383, %c0_384, %c0_385] : memref<2x49x16x256xf32, #tpu.memory_space<vmem>>, vector<1x1x16x256xf32>
    %507 = vector.shape_cast %506 : vector<1x1x16x256xf32> to vector<16x256xf32>
    %508 = arith.mulf %505, %507 : vector<16x256xf32>
    %509 = arith.addf %489, %508 : vector<16x256xf32>
    %c241_i32_386 = arith.constant 241 : i32
    %510 = tpu.dynamic_rotate %346 by %c241_i32_386 dim 1 : vector<16x256xf32>, i32 -> vector<16x256xf32>
    %c1_387 = arith.constant 1 : index
    %c30_388 = arith.constant 30 : index
    %c0_389 = arith.constant 0 : index
    %c0_390 = arith.constant 0 : index
    %511 = vector.load %arg2[%c1_387, %c30_388, %c0_389, %c0_390] : memref<2x49x16x256xf32, #tpu.memory_space<vmem>>, vector<1x1x16x256xf32>
    %512 = vector.shape_cast %511 : vector<1x1x16x256xf32> to vector<16x256xf32>
    %513 = arith.mulf %510, %512 : vector<16x256xf32>
    %514 = arith.addf %494, %513 : vector<16x256xf32>
    %c240_i32_391 = arith.constant 240 : i32
    %515 = tpu.dynamic_rotate %346 by %c240_i32_391 dim 1 : vector<16x256xf32>, i32 -> vector<16x256xf32>
    %c1_392 = arith.constant 1 : index
    %c31_393 = arith.constant 31 : index
    %c0_394 = arith.constant 0 : index
    %c0_395 = arith.constant 0 : index
    %516 = vector.load %arg2[%c1_392, %c31_393, %c0_394, %c0_395] : memref<2x49x16x256xf32, #tpu.memory_space<vmem>>, vector<1x1x16x256xf32>
    %517 = vector.shape_cast %516 : vector<1x1x16x256xf32> to vector<16x256xf32>
    %518 = arith.mulf %515, %517 : vector<16x256xf32>
    %519 = arith.addf %499, %518 : vector<16x256xf32>
    %c239_i32_396 = arith.constant 239 : i32
    %520 = tpu.dynamic_rotate %346 by %c239_i32_396 dim 1 : vector<16x256xf32>, i32 -> vector<16x256xf32>
    %c1_397 = arith.constant 1 : index
    %c32_398 = arith.constant 32 : index
    %c0_399 = arith.constant 0 : index
    %c0_400 = arith.constant 0 : index
    %521 = vector.load %arg2[%c1_397, %c32_398, %c0_399, %c0_400] : memref<2x49x16x256xf32, #tpu.memory_space<vmem>>, vector<1x1x16x256xf32>
    %522 = vector.shape_cast %521 : vector<1x1x16x256xf32> to vector<16x256xf32>
    %523 = arith.mulf %520, %522 : vector<16x256xf32>
    %524 = arith.addf %504, %523 : vector<16x256xf32>
    %c238_i32_401 = arith.constant 238 : i32
    %525 = tpu.dynamic_rotate %346 by %c238_i32_401 dim 1 : vector<16x256xf32>, i32 -> vector<16x256xf32>
    %c1_402 = arith.constant 1 : index
    %c33_403 = arith.constant 33 : index
    %c0_404 = arith.constant 0 : index
    %c0_405 = arith.constant 0 : index
    %526 = vector.load %arg2[%c1_402, %c33_403, %c0_404, %c0_405] : memref<2x49x16x256xf32, #tpu.memory_space<vmem>>, vector<1x1x16x256xf32>
    %527 = vector.shape_cast %526 : vector<1x1x16x256xf32> to vector<16x256xf32>
    %528 = arith.mulf %525, %527 : vector<16x256xf32>
    %529 = arith.addf %509, %528 : vector<16x256xf32>
    %c237_i32_406 = arith.constant 237 : i32
    %530 = tpu.dynamic_rotate %346 by %c237_i32_406 dim 1 : vector<16x256xf32>, i32 -> vector<16x256xf32>
    %c1_407 = arith.constant 1 : index
    %c34_408 = arith.constant 34 : index
    %c0_409 = arith.constant 0 : index
    %c0_410 = arith.constant 0 : index
    %531 = vector.load %arg2[%c1_407, %c34_408, %c0_409, %c0_410] : memref<2x49x16x256xf32, #tpu.memory_space<vmem>>, vector<1x1x16x256xf32>
    %532 = vector.shape_cast %531 : vector<1x1x16x256xf32> to vector<16x256xf32>
    %533 = arith.mulf %530, %532 : vector<16x256xf32>
    %534 = arith.addf %514, %533 : vector<16x256xf32>
    %c227_i32_411 = arith.constant 227 : i32
    %535 = tpu.dynamic_rotate %346 by %c227_i32_411 dim 1 : vector<16x256xf32>, i32 -> vector<16x256xf32>
    %c1_412 = arith.constant 1 : index
    %c35_413 = arith.constant 35 : index
    %c0_414 = arith.constant 0 : index
    %c0_415 = arith.constant 0 : index
    %536 = vector.load %arg2[%c1_412, %c35_413, %c0_414, %c0_415] : memref<2x49x16x256xf32, #tpu.memory_space<vmem>>, vector<1x1x16x256xf32>
    %537 = vector.shape_cast %536 : vector<1x1x16x256xf32> to vector<16x256xf32>
    %538 = arith.mulf %535, %537 : vector<16x256xf32>
    %539 = arith.addf %519, %538 : vector<16x256xf32>
    %c226_i32_416 = arith.constant 226 : i32
    %540 = tpu.dynamic_rotate %346 by %c226_i32_416 dim 1 : vector<16x256xf32>, i32 -> vector<16x256xf32>
    %c1_417 = arith.constant 1 : index
    %c36_418 = arith.constant 36 : index
    %c0_419 = arith.constant 0 : index
    %c0_420 = arith.constant 0 : index
    %541 = vector.load %arg2[%c1_417, %c36_418, %c0_419, %c0_420] : memref<2x49x16x256xf32, #tpu.memory_space<vmem>>, vector<1x1x16x256xf32>
    %542 = vector.shape_cast %541 : vector<1x1x16x256xf32> to vector<16x256xf32>
    %543 = arith.mulf %540, %542 : vector<16x256xf32>
    %544 = arith.addf %524, %543 : vector<16x256xf32>
    %c225_i32_421 = arith.constant 225 : i32
    %545 = tpu.dynamic_rotate %346 by %c225_i32_421 dim 1 : vector<16x256xf32>, i32 -> vector<16x256xf32>
    %c1_422 = arith.constant 1 : index
    %c37_423 = arith.constant 37 : index
    %c0_424 = arith.constant 0 : index
    %c0_425 = arith.constant 0 : index
    %546 = vector.load %arg2[%c1_422, %c37_423, %c0_424, %c0_425] : memref<2x49x16x256xf32, #tpu.memory_space<vmem>>, vector<1x1x16x256xf32>
    %547 = vector.shape_cast %546 : vector<1x1x16x256xf32> to vector<16x256xf32>
    %548 = arith.mulf %545, %547 : vector<16x256xf32>
    %549 = arith.addf %529, %548 : vector<16x256xf32>
    %c224_i32_426 = arith.constant 224 : i32
    %550 = tpu.dynamic_rotate %346 by %c224_i32_426 dim 1 : vector<16x256xf32>, i32 -> vector<16x256xf32>
    %c1_427 = arith.constant 1 : index
    %c38_428 = arith.constant 38 : index
    %c0_429 = arith.constant 0 : index
    %c0_430 = arith.constant 0 : index
    %551 = vector.load %arg2[%c1_427, %c38_428, %c0_429, %c0_430] : memref<2x49x16x256xf32, #tpu.memory_space<vmem>>, vector<1x1x16x256xf32>
    %552 = vector.shape_cast %551 : vector<1x1x16x256xf32> to vector<16x256xf32>
    %553 = arith.mulf %550, %552 : vector<16x256xf32>
    %554 = arith.addf %534, %553 : vector<16x256xf32>
    %c223_i32_431 = arith.constant 223 : i32
    %555 = tpu.dynamic_rotate %346 by %c223_i32_431 dim 1 : vector<16x256xf32>, i32 -> vector<16x256xf32>
    %c1_432 = arith.constant 1 : index
    %c39_433 = arith.constant 39 : index
    %c0_434 = arith.constant 0 : index
    %c0_435 = arith.constant 0 : index
    %556 = vector.load %arg2[%c1_432, %c39_433, %c0_434, %c0_435] : memref<2x49x16x256xf32, #tpu.memory_space<vmem>>, vector<1x1x16x256xf32>
    %557 = vector.shape_cast %556 : vector<1x1x16x256xf32> to vector<16x256xf32>
    %558 = arith.mulf %555, %557 : vector<16x256xf32>
    %559 = arith.addf %539, %558 : vector<16x256xf32>
    %c222_i32_436 = arith.constant 222 : i32
    %560 = tpu.dynamic_rotate %346 by %c222_i32_436 dim 1 : vector<16x256xf32>, i32 -> vector<16x256xf32>
    %c1_437 = arith.constant 1 : index
    %c40_438 = arith.constant 40 : index
    %c0_439 = arith.constant 0 : index
    %c0_440 = arith.constant 0 : index
    %561 = vector.load %arg2[%c1_437, %c40_438, %c0_439, %c0_440] : memref<2x49x16x256xf32, #tpu.memory_space<vmem>>, vector<1x1x16x256xf32>
    %562 = vector.shape_cast %561 : vector<1x1x16x256xf32> to vector<16x256xf32>
    %563 = arith.mulf %560, %562 : vector<16x256xf32>
    %564 = arith.addf %544, %563 : vector<16x256xf32>
    %c221_i32_441 = arith.constant 221 : i32
    %565 = tpu.dynamic_rotate %346 by %c221_i32_441 dim 1 : vector<16x256xf32>, i32 -> vector<16x256xf32>
    %c1_442 = arith.constant 1 : index
    %c41_443 = arith.constant 41 : index
    %c0_444 = arith.constant 0 : index
    %c0_445 = arith.constant 0 : index
    %566 = vector.load %arg2[%c1_442, %c41_443, %c0_444, %c0_445] : memref<2x49x16x256xf32, #tpu.memory_space<vmem>>, vector<1x1x16x256xf32>
    %567 = vector.shape_cast %566 : vector<1x1x16x256xf32> to vector<16x256xf32>
    %568 = arith.mulf %565, %567 : vector<16x256xf32>
    %569 = arith.addf %549, %568 : vector<16x256xf32>
    %c211_i32_446 = arith.constant 211 : i32
    %570 = tpu.dynamic_rotate %346 by %c211_i32_446 dim 1 : vector<16x256xf32>, i32 -> vector<16x256xf32>
    %c1_447 = arith.constant 1 : index
    %c42_448 = arith.constant 42 : index
    %c0_449 = arith.constant 0 : index
    %c0_450 = arith.constant 0 : index
    %571 = vector.load %arg2[%c1_447, %c42_448, %c0_449, %c0_450] : memref<2x49x16x256xf32, #tpu.memory_space<vmem>>, vector<1x1x16x256xf32>
    %572 = vector.shape_cast %571 : vector<1x1x16x256xf32> to vector<16x256xf32>
    %573 = arith.mulf %570, %572 : vector<16x256xf32>
    %574 = arith.addf %554, %573 : vector<16x256xf32>
    %c210_i32_451 = arith.constant 210 : i32
    %575 = tpu.dynamic_rotate %346 by %c210_i32_451 dim 1 : vector<16x256xf32>, i32 -> vector<16x256xf32>
    %c1_452 = arith.constant 1 : index
    %c43_453 = arith.constant 43 : index
    %c0_454 = arith.constant 0 : index
    %c0_455 = arith.constant 0 : index
    %576 = vector.load %arg2[%c1_452, %c43_453, %c0_454, %c0_455] : memref<2x49x16x256xf32, #tpu.memory_space<vmem>>, vector<1x1x16x256xf32>
    %577 = vector.shape_cast %576 : vector<1x1x16x256xf32> to vector<16x256xf32>
    %578 = arith.mulf %575, %577 : vector<16x256xf32>
    %579 = arith.addf %559, %578 : vector<16x256xf32>
    %c209_i32_456 = arith.constant 209 : i32
    %580 = tpu.dynamic_rotate %346 by %c209_i32_456 dim 1 : vector<16x256xf32>, i32 -> vector<16x256xf32>
    %c1_457 = arith.constant 1 : index
    %c44_458 = arith.constant 44 : index
    %c0_459 = arith.constant 0 : index
    %c0_460 = arith.constant 0 : index
    %581 = vector.load %arg2[%c1_457, %c44_458, %c0_459, %c0_460] : memref<2x49x16x256xf32, #tpu.memory_space<vmem>>, vector<1x1x16x256xf32>
    %582 = vector.shape_cast %581 : vector<1x1x16x256xf32> to vector<16x256xf32>
    %583 = arith.mulf %580, %582 : vector<16x256xf32>
    %584 = arith.addf %564, %583 : vector<16x256xf32>
    %c208_i32_461 = arith.constant 208 : i32
    %585 = tpu.dynamic_rotate %346 by %c208_i32_461 dim 1 : vector<16x256xf32>, i32 -> vector<16x256xf32>
    %c1_462 = arith.constant 1 : index
    %c45_463 = arith.constant 45 : index
    %c0_464 = arith.constant 0 : index
    %c0_465 = arith.constant 0 : index
    %586 = vector.load %arg2[%c1_462, %c45_463, %c0_464, %c0_465] : memref<2x49x16x256xf32, #tpu.memory_space<vmem>>, vector<1x1x16x256xf32>
    %587 = vector.shape_cast %586 : vector<1x1x16x256xf32> to vector<16x256xf32>
    %588 = arith.mulf %585, %587 : vector<16x256xf32>
    %589 = arith.addf %569, %588 : vector<16x256xf32>
    %c207_i32_466 = arith.constant 207 : i32
    %590 = tpu.dynamic_rotate %346 by %c207_i32_466 dim 1 : vector<16x256xf32>, i32 -> vector<16x256xf32>
    %c1_467 = arith.constant 1 : index
    %c46_468 = arith.constant 46 : index
    %c0_469 = arith.constant 0 : index
    %c0_470 = arith.constant 0 : index
    %591 = vector.load %arg2[%c1_467, %c46_468, %c0_469, %c0_470] : memref<2x49x16x256xf32, #tpu.memory_space<vmem>>, vector<1x1x16x256xf32>
    %592 = vector.shape_cast %591 : vector<1x1x16x256xf32> to vector<16x256xf32>
    %593 = arith.mulf %590, %592 : vector<16x256xf32>
    %594 = arith.addf %574, %593 : vector<16x256xf32>
    %c206_i32_471 = arith.constant 206 : i32
    %595 = tpu.dynamic_rotate %346 by %c206_i32_471 dim 1 : vector<16x256xf32>, i32 -> vector<16x256xf32>
    %c1_472 = arith.constant 1 : index
    %c47_473 = arith.constant 47 : index
    %c0_474 = arith.constant 0 : index
    %c0_475 = arith.constant 0 : index
    %596 = vector.load %arg2[%c1_472, %c47_473, %c0_474, %c0_475] : memref<2x49x16x256xf32, #tpu.memory_space<vmem>>, vector<1x1x16x256xf32>
    %597 = vector.shape_cast %596 : vector<1x1x16x256xf32> to vector<16x256xf32>
    %598 = arith.mulf %595, %597 : vector<16x256xf32>
    %599 = arith.addf %579, %598 : vector<16x256xf32>
    %c205_i32_476 = arith.constant 205 : i32
    %600 = tpu.dynamic_rotate %346 by %c205_i32_476 dim 1 : vector<16x256xf32>, i32 -> vector<16x256xf32>
    %c1_477 = arith.constant 1 : index
    %c48_478 = arith.constant 48 : index
    %c0_479 = arith.constant 0 : index
    %c0_480 = arith.constant 0 : index
    %601 = vector.load %arg2[%c1_477, %c48_478, %c0_479, %c0_480] : memref<2x49x16x256xf32, #tpu.memory_space<vmem>>, vector<1x1x16x256xf32>
    %602 = vector.shape_cast %601 : vector<1x1x16x256xf32> to vector<16x256xf32>
    %603 = arith.mulf %600, %602 : vector<16x256xf32>
    %604 = arith.addf %584, %603 : vector<16x256xf32>
    %605 = arith.addf %604, %589 : vector<16x256xf32>
    %606 = arith.addf %594, %599 : vector<16x256xf32>
    %607 = arith.addf %605, %606 : vector<16x256xf32>
    %608 = vector.broadcast %348 : vector<16x1xf32> to vector<16x256xf32>
    %609 = arith.addf %607, %608 : vector<16x256xf32>
    %610 = vector.extract_strided_slice %609 {offsets = [0, 0], sizes = [8, 256], strides = [1, 1]} : vector<16x256xf32> to vector<8x256xf32>
    %cst_481 = arith.constant dense<0.000000e+00> : vector<256xf32>
    %611 = vector.multi_reduction <add>, %610, %cst_481 [0] : vector<8x256xf32> to vector<256xf32>
    %612 = vector.shape_cast %611 : vector<256xf32> to vector<1x256xf32>
    %cst_482 = arith.constant 8.000000e+00 : f32
    %613 = vector.broadcast %cst_482 : f32 to vector<1x256xf32>
    %614 = arith.divf %612, %613 : vector<1x256xf32>
    %615 = vector.broadcast %614 : vector<1x256xf32> to vector<8x256xf32>
    %616 = arith.subf %610, %615 : vector<8x256xf32>
    %617 = arith.mulf %616, %616 : vector<8x256xf32>
    %cst_483 = arith.constant dense<0.000000e+00> : vector<256xf32>
    %618 = vector.multi_reduction <add>, %617, %cst_483 [0] : vector<8x256xf32> to vector<256xf32>
    %619 = vector.shape_cast %618 : vector<256xf32> to vector<1x256xf32>
    %cst_484 = arith.constant 8.000000e+00 : f32
    %620 = vector.broadcast %cst_484 : f32 to vector<1x256xf32>
    %621 = arith.divf %619, %620 : vector<1x256xf32>
    %cst_485 = arith.constant 9.99999974E-6 : f32
    %622 = vector.broadcast %cst_485 : f32 to vector<1x256xf32>
    %623 = arith.addf %621, %622 : vector<1x256xf32>
    %624 = math.rsqrt %623 : vector<1x256xf32>
    %625 = vector.broadcast %624 : vector<1x256xf32> to vector<8x256xf32>
    %626 = arith.mulf %616, %625 : vector<8x256xf32>
    %627 = vector.extract_strided_slice %609 {offsets = [8, 0], sizes = [8, 256], strides = [1, 1]} : vector<16x256xf32> to vector<8x256xf32>
    %cst_486 = arith.constant dense<0.000000e+00> : vector<256xf32>
    %628 = vector.multi_reduction <add>, %627, %cst_486 [0] : vector<8x256xf32> to vector<256xf32>
    %629 = vector.shape_cast %628 : vector<256xf32> to vector<1x256xf32>
    %cst_487 = arith.constant 8.000000e+00 : f32
    %630 = vector.broadcast %cst_487 : f32 to vector<1x256xf32>
    %631 = arith.divf %629, %630 : vector<1x256xf32>
    %632 = vector.broadcast %631 : vector<1x256xf32> to vector<8x256xf32>
    %633 = arith.subf %627, %632 : vector<8x256xf32>
    %634 = arith.mulf %633, %633 : vector<8x256xf32>
    %cst_488 = arith.constant dense<0.000000e+00> : vector<256xf32>
    %635 = vector.multi_reduction <add>, %634, %cst_488 [0] : vector<8x256xf32> to vector<256xf32>
    %636 = vector.shape_cast %635 : vector<256xf32> to vector<1x256xf32>
    %cst_489 = arith.constant 8.000000e+00 : f32
    %637 = vector.broadcast %cst_489 : f32 to vector<1x256xf32>
    %638 = arith.divf %636, %637 : vector<1x256xf32>
    %cst_490 = arith.constant 9.99999974E-6 : f32
    %639 = vector.broadcast %cst_490 : f32 to vector<1x256xf32>
    %640 = arith.addf %638, %639 : vector<1x256xf32>
    %641 = math.rsqrt %640 : vector<1x256xf32>
    %642 = vector.broadcast %641 : vector<1x256xf32> to vector<8x256xf32>
    %643 = arith.mulf %633, %642 : vector<8x256xf32>
    %644 = tpu.concatenate %626, %643 in 0 : vector<8x256xf32>, vector<8x256xf32> -> vector<16x256xf32>
    %645 = vector.broadcast %350 : vector<16x1xf32> to vector<16x256xf32>
    %646 = arith.mulf %644, %645 : vector<16x256xf32>
    %647 = vector.broadcast %352 : vector<16x1xf32> to vector<16x256xf32>
    %648 = arith.addf %646, %647 : vector<16x256xf32>
    %cst_491 = arith.constant dense<0.000000e+00> : vector<64x256xf32>
    %649 = tpu.matmul %362, %648, %cst_491 {dimension_numbers = #tpu.dot_dimension_numbers<[1], [0], [0], [1], [0, 0, 1, 1], [], []>} : vector<64x16xf32>, vector<16x256xf32>, vector<64x256xf32> -> vector<64x256xf32>
    %650 = vector.broadcast %356 : vector<64x1xf32> to vector<64x256xf32>
    %651 = arith.addf %649, %650 : vector<64x256xf32>
    %cst_492 = arith.constant 5.000000e-01 : f32
    %652 = vector.broadcast %cst_492 : f32 to vector<64x256xf32>
    %653 = arith.mulf %652, %651 : vector<64x256xf32>
    %cst_493 = arith.constant 0.707106769 : f32
    %654 = vector.broadcast %cst_493 : f32 to vector<64x256xf32>
    %655 = arith.mulf %651, %654 : vector<64x256xf32>
    %656 = math.erf %655 : vector<64x256xf32>
    %cst_494 = arith.constant 1.000000e+00 : f32
    %657 = vector.broadcast %cst_494 : f32 to vector<64x256xf32>
    %658 = arith.addf %657, %656 : vector<64x256xf32>
    %659 = arith.mulf %653, %658 : vector<64x256xf32>
    %660 = arith.mulf %659, %659 : vector<64x256xf32>
    %cst_495 = arith.constant dense<0.000000e+00> : vector<64xf32>
    %661 = vector.multi_reduction <add>, %660, %cst_495 [1] : vector<64x256xf32> to vector<64xf32>
    %662 = vector.shape_cast %661 : vector<64xf32> to vector<64x1xf32>
    %663 = math.sqrt %662 : vector<64x1xf32>
    %664 = vector.extract_strided_slice %663 {offsets = [0, 0], sizes = [32, 1], strides = [1, 1]} : vector<64x1xf32> to vector<32x1xf32>
    %cst_496 = arith.constant dense<0.000000e+00> : vector<1xf32>
    %665 = vector.multi_reduction <add>, %664, %cst_496 [0] : vector<32x1xf32> to vector<1xf32>
    %666 = vector.shape_cast %665 : vector<1xf32> to vector<1x1xf32>
    %cst_497 = arith.constant 3.200000e+01 : f32
    %667 = vector.broadcast %cst_497 : f32 to vector<1x1xf32>
    %668 = arith.divf %666, %667 : vector<1x1xf32>
    %669 = vector.shape_cast %668 : vector<1x1xf32> to vector<1x1xf32>
    %670 = vector.broadcast %669 : vector<1x1xf32> to vector<32x1xf32>
    %671 = vector.extract_strided_slice %663 {offsets = [32, 0], sizes = [32, 1], strides = [1, 1]} : vector<64x1xf32> to vector<32x1xf32>
    %cst_498 = arith.constant dense<0.000000e+00> : vector<1xf32>
    %672 = vector.multi_reduction <add>, %671, %cst_498 [0] : vector<32x1xf32> to vector<1xf32>
    %673 = vector.shape_cast %672 : vector<1xf32> to vector<1x1xf32>
    %cst_499 = arith.constant 3.200000e+01 : f32
    %674 = vector.broadcast %cst_499 : f32 to vector<1x1xf32>
    %675 = arith.divf %673, %674 : vector<1x1xf32>
    %676 = vector.shape_cast %675 : vector<1x1xf32> to vector<1x1xf32>
    %677 = vector.broadcast %676 : vector<1x1xf32> to vector<32x1xf32>
    %678 = tpu.concatenate %670, %677 in 0 : vector<32x1xf32>, vector<32x1xf32> -> vector<64x1xf32>
    %cst_500 = arith.constant 9.99999997E-7 : f32
    %679 = vector.broadcast %cst_500 : f32 to vector<64x1xf32>
    %680 = arith.addf %678, %679 : vector<64x1xf32>
    %681 = arith.divf %663, %680 : vector<64x1xf32>
    %682 = vector.broadcast %681 : vector<64x1xf32> to vector<64x256xf32>
    %683 = arith.mulf %659, %682 : vector<64x256xf32>
    %684 = vector.broadcast %358 : vector<64x1xf32> to vector<64x256xf32>
    %685 = arith.mulf %684, %683 : vector<64x256xf32>
    %686 = vector.broadcast %360 : vector<64x1xf32> to vector<64x256xf32>
    %687 = arith.addf %685, %686 : vector<64x256xf32>
    %688 = arith.addf %687, %659 : vector<64x256xf32>
    %cst_501 = arith.constant dense<0.000000e+00> : vector<16x256xf32>
    %689 = tpu.matmul %364, %688, %cst_501 {dimension_numbers = #tpu.dot_dimension_numbers<[1], [0], [0], [1], [0, 0, 1, 1], [], []>} : vector<16x64xf32>, vector<64x256xf32>, vector<16x256xf32> -> vector<16x256xf32>
    %690 = vector.broadcast %354 : vector<16x1xf32> to vector<16x256xf32>
    %691 = arith.addf %689, %690 : vector<16x256xf32>
    %692 = arith.addf %691, %346 : vector<16x256xf32>
    %c0_502 = arith.constant 0 : index
    %c0_503 = arith.constant 0 : index
    %693 = vector.load %arg7[%c0_502, %c0_503] : memref<16x256xf32, #tpu.memory_space<vmem>>, vector<16x256xf32>
    tpu.vector_store %arg7[%c0_502, %c0_503], %692 {strides = array<i32>} : memref<16x256xf32, #tpu.memory_space<vmem>>, vector<16x256xf32>,
    return
  }
  func.func @transform_0(%arg0: i32) -> (i32, i32) {
    %c0_i32 = arith.constant 0 : i32
    %c0_i32_0 = arith.constant 0 : i32
    return %arg0, %c0_i32 : i32, i32
  }
  func.func @transform_1(%arg0: i32) -> (i32, i32, i32, i32) {
    %c0_i32 = arith.constant 0 : i32
    %c0_i32_0 = arith.constant 0 : i32
    %c0_i32_1 = arith.constant 0 : i32
    %c0_i32_2 = arith.constant 0 : i32
    %c0_i32_3 = arith.constant 0 : i32
    return %c0_i32, %c0_i32_0, %c0_i32_1, %c0_i32_2 : i32, i32, i32, i32
  }
  func.func @transform_2(%arg0: i32) -> (i32, i32, i32, i32) {
    %c0_i32 = arith.constant 0 : i32
    %c0_i32_0 = arith.constant 0 : i32
    %c0_i32_1 = arith.constant 0 : i32
    %c0_i32_2 = arith.constant 0 : i32
    %c0_i32_3 = arith.constant 0 : i32
    return %c0_i32, %c0_i32_0, %c0_i32_1, %c0_i32_2 : i32, i32, i32, i32
  }
  func.func @transform_3(%arg0: i32) -> (i32, i32, i32, i32) {
    %c0_i32 = arith.constant 0 : i32
    %c0_i32_0 = arith.constant 0 : i32
    %c0_i32_1 = arith.constant 0 : i32
    %c0_i32_2 = arith.constant 0 : i32
    %c0_i32_3 = arith.constant 0 : i32
    return %c0_i32, %c0_i32_0, %c0_i32_1, %c0_i32_2 : i32, i32, i32, i32
  }
  func.func @transform_4(%arg0: i32) -> (i32, i32, i32) {
    %c0_i32 = arith.constant 0 : i32
    %c0_i32_0 = arith.constant 0 : i32
    %c0_i32_1 = arith.constant 0 : i32
    %c0_i32_2 = arith.constant 0 : i32
    return %c0_i32, %c0_i32_0, %c0_i32_1 : i32, i32, i32
  }
  func.func @transform_5(%arg0: i32) -> (i32, i32, i32) {
    %c0_i32 = arith.constant 0 : i32
    %c0_i32_0 = arith.constant 0 : i32
    %c0_i32_1 = arith.constant 0 : i32
    %c0_i32_2 = arith.constant 0 : i32
    return %c0_i32, %c0_i32_0, %c0_i32_1 : i32, i32, i32
  }
  func.func @transform_6(%arg0: i32) -> (i32, i32) {
    %c0_i32 = arith.constant 0 : i32
    %c0_i32_0 = arith.constant 0 : i32
    return %arg0, %c0_i32 : i32, i32
  }
}

</mosaic_0001>

<llo_original>
// kernel: tpu_custom_call.1
$region0: #{tpu_custom_call.1}
  #allocation0 [shape = 'u32[]', space=smem, size = 0x4, offset = 0x4, fixed_abs, tag = 'smem constant byte address 0x4 - core index']
  #allocation1 [shape = 'u32[144,128]{1,0:T(1,128)}', space=vmem, size = 0x12000, scoped, tag = 'internal scratch']
  %s0 = inlined_call_operand.hbm [shape: f32[32,256], index: 0, kind: input, shape index: {}]
  %s1 = inlined_call_operand.hbm [shape: f32[2,49,16,256], index: 1, kind: input, shape index: {}]
  %s2 = inlined_call_operand.vmem [shape: f32[2,4,16,1], index: 2, kind: input, shape index: {}]
  %s3 = inlined_call_operand.vmem [shape: f32[2,3,64,1], index: 3, kind: input, shape index: {}]
  %s4 = inlined_call_operand.vmem [shape: f32[2,64,16], index: 4, kind: input, shape index: {}]
  %s5 = inlined_call_operand.hbm [shape: f32[2,16,64], index: 5, kind: input, shape index: {}]
  %s6 = inlined_call_operand.hbm [shape: f32[32,256], index: 6, kind: output, shape index: {}]
  %s7 = sld [smem:[#allocation0]]
  $region69: #{tpu_custom_call.1} parent=0
    _
  %s9 = ssub.s32 1, %s7
  %s10 = scalar_select 0, %s9, %s7
  $region1: #{tpu_custom_call.1} parent=0
    #allocation2 [shape = 'u8[32768]{0}', space=vmem, size = 0x8000, scoped, tag = 'input window, operand 0']
    #allocation3 [shape = 's32[2]{0}', space=sflag, size = 0x8, scoped, tag = 'scoped memory for tpu_custom_call.1']
    #allocation4 [shape = 's32[2]{0}', space=sflag, size = 0x8, scoped, tag = 'scoped memory for tpu_custom_call.1']
    #allocation5 [shape = 'u8[1605632]{0}', space=vmem, size = 0x188000, scoped, tag = 'input window, operand 1, single buffered']
    #allocation6 [shape = 's32[1]{0}', space=sflag, size = 0x4, scoped, tag = 'scoped memory for tpu_custom_call.1']
    #allocation7 [shape = 'u8[16384]{0}', space=vmem, size = 0x4000, scoped, tag = 'input window, operand 5, single buffered']
    #allocation8 [shape = 'u8[32768]{0}', space=vmem, size = 0x8000, scoped, tag = 'output window, operand 0']
    %11 = vsyncpa [#allocation3], 0
    %s12 = scalar_lea.sflag [#allocation3], 1
    %13 = vsyncpa %s12, 0
    %14 = vsyncpa [#allocation6], 0
    %15 = vsyncpa [#allocation4], 0
    %s16 = scalar_lea.sflag [#allocation4], 1
    %17 = vsyncpa %s16, 0
    loop: start=0, step=1, limit=4
    $region2: #{tpu_custom_call.1} parent=1 // loop_pre_header
      _
    $region3: #{tpu_custom_call.1} parent=1 // loop_header
      %s19 = sphi 0, %s23
      %p20 = scmp.ge.s32.totalorder %s19, 4
      %s29 = sphi 0, %s31
      %s32 = sphi 0, %s29
      %s33 = sphi 0, %s32
      %s49 = sphi 0, %s33
      %s53 = sphi 0, %s53
      %s55 = sphi 0, %s53
      %s56 = sphi 0, %s55
      %s70 = sphi 0, %s56
      %s74 = sphi 0, %s74
      %s76 = sphi 0, %s74
      %s77 = sphi 0, %s76
      %s91 = sphi 0, %s77
      %s95 = sphi 0, %s95
      %s97 = sphi 0, %s95
      %s98 = sphi 0, %s97
      %s112 = sphi 0, %s98
      %s116 = sphi 0, %s116
      %s118 = sphi 0, %s116
      %s119 = sphi 0, %s118
      %s133 = sphi 0, %s119
      %s137 = sphi 0, %s137
      %s139 = sphi 0, %s137
      %s140 = sphi 0, %s139
      %s154 = sphi 0, %s140
      %s160 = sphi 0, %s162
      %s163 = sphi 0, %s160
      %s164 = sphi 0, %s163
      %s180 = sphi 0, %s164
    $region4: #{tpu_custom_call.1} parent=1 // loop_header_branch
      %22 = sbr.rel (%p20) target = $region8
    $region5: #{tpu_custom_call.1} parent=1 // loop_body
      %s24 = ssub.s32 %s19, 1
      %s25 = ssub.s32 %s19, 2
      %s26 = sadd.s32 %s19, 1
      %s27 = ssub.s32 %s19, %s26
      %p28 = scmp.eq.s32.totalorder %s27, 0
      %s30 = sadd.s32 %s29, 1
      %s31 = scalar_select %p28, %s29, %s30
      %p34 = pneg %p28
      %p35 = scmp.eq.s32.totalorder %s19, 1
      %p36 = por %p34, %p35
      %p37 = scmp.ne.s32.totalorder %s29, %s32
      %p38 = scmp.eq.s32.totalorder %s19, 0
      %p39 = por %p37, %p38
      %p40 = scmp.ne.s32.totalorder %s29, %s32
      %p41 = scmp.eq.s32.totalorder %s24, 1
      %p42 = por %p40, %p41
      %p43 = scmp.ne.s32.totalorder %s32, %s33
      %p44 = scmp.eq.s32.totalorder %s24, 0
      %p45 = por %p43, %p44
      %p46 = scmp.ne.s32.totalorder %s32, %s33
      %p47 = scmp.eq.s32.totalorder %s25, 1
      %p48 = por %p46, %p47
      %p50 = scmp.ne.s32.totalorder %s33, %s49
      %p51 = scmp.eq.s32.totalorder %s25, 0
      %p52 = por %p50, %p51
      %s54 = sadd.s32 %s53, 1
      %p57 = scmp.eq.s32.totalorder %s19, 1
      %p58 = scmp.ne.s32.totalorder %s53, %s55
      %p59 = scmp.eq.s32.totalorder %s19, 0
      %p60 = por %p58, %p59
      %p61 = scmp.ne.s32.totalorder %s53, %s55
      %p62 = scmp.eq.s32.totalorder %s24, 1
      %p63 = por %p61, %p62
      %p64 = scmp.ne.s32.totalorder %s55, %s56
      %p65 = scmp.eq.s32.totalorder %s24, 0
      %p66 = por %p64, %p65
      %p67 = scmp.ne.s32.totalorder %s55, %s56
      %p68 = scmp.eq.s32.totalorder %s25, 1
      %p69 = por %p67, %p68
      %p71 = scmp.ne.s32.totalorder %s56, %s70
      %p72 = scmp.eq.s32.totalorder %s25, 0
      %p73 = por %p71, %p72
      %s75 = sadd.s32 %s74, 1
      %p78 = scmp.eq.s32.totalorder %s19, 1
      %p79 = scmp.ne.s32.totalorder %s74, %s76
      %p80 = scmp.eq.s32.totalorder %s19, 0
      %p81 = por %p79, %p80
      %p82 = scmp.ne.s32.totalorder %s74, %s76
      %p83 = scmp.eq.s32.totalorder %s24, 1
      %p84 = por %p82, %p83
      %p85 = scmp.ne.s32.totalorder %s76, %s77
      %p86 = scmp.eq.s32.totalorder %s24, 0
      %p87 = por %p85, %p86
      %p88 = scmp.ne.s32.totalorder %s76, %s77
      %p89 = scmp.eq.s32.totalorder %s25, 1
      %p90 = por %p88, %p89
      %p92 = scmp.ne.s32.totalorder %s77, %s91
      %p93 = scmp.eq.s32.totalorder %s25, 0
      %p94 = por %p92, %p93
      %s96 = sadd.s32 %s95, 1
      %p99 = scmp.eq.s32.totalorder %s19, 1
      %p100 = scmp.ne.s32.totalorder %s95, %s97
      %p101 = scmp.eq.s32.totalorder %s19, 0
      %p102 = por %p100, %p101
      %p103 = scmp.ne.s32.totalorder %s95, %s97
      %p104 = scmp.eq.s32.totalorder %s24, 1
      %p105 = por %p103, %p104
      %p106 = scmp.ne.s32.totalorder %s97, %s98
      %p107 = scmp.eq.s32.totalorder %s24, 0
      %p108 = por %p106, %p107
      %p109 = scmp.ne.s32.totalorder %s97, %s98
      %p110 = scmp.eq.s32.totalorder %s25, 1
      %p111 = por %p109, %p110
      %p113 = scmp.ne.s32.totalorder %s98, %s112
      %p114 = scmp.eq.s32.totalorder %s25, 0
      %p115 = por %p113, %p114
      %s117 = sadd.s32 %s116, 1
      %p120 = scmp.eq.s32.totalorder %s19, 1
      %p121 = scmp.ne.s32.totalorder %s116, %s118
      %p122 = scmp.eq.s32.totalorder %s19, 0
      %p123 = por %p121, %p122
      %p124 = scmp.ne.s32.totalorder %s116, %s118
      %p125 = scmp.eq.s32.totalorder %s24, 1
      %p126 = por %p124, %p125
      %p127 = scmp.ne.s32.totalorder %s118, %s119
      %p128 = scmp.eq.s32.totalorder %s24, 0
      %p129 = por %p127, %p128
      %p130 = scmp.ne.s32.totalorder %s118, %s119
      %p131 = scmp.eq.s32.totalorder %s25, 1
      %p132 = por %p130, %p131
      %p134 = scmp.ne.s32.totalorder %s119, %s133
      %p135 = scmp.eq.s32.totalorder %s25, 0
      %p136 = por %p134, %p135
      %s138 = sadd.s32 %s137, 1
      %p141 = scmp.eq.s32.totalorder %s19, 1
      %p142 = scmp.ne.s32.totalorder %s137, %s139
      %p143 = scmp.eq.s32.totalorder %s19, 0
      %p144 = por %p142, %p143
      %p145 = scmp.ne.s32.totalorder %s137, %s139
      %p146 = scmp.eq.s32.totalorder %s24, 1
      %p147 = por %p145, %p146
      %p148 = scmp.ne.s32.totalorder %s139, %s140
      %p149 = scmp.eq.s32.totalorder %s24, 0
      %p150 = por %p148, %p149
      %p151 = scmp.ne.s32.totalorder %s139, %s140
      %p152 = scmp.eq.s32.totalorder %s25, 1
      %p153 = por %p151, %p152
      %p155 = scmp.ne.s32.totalorder %s140, %s154
      %p156 = scmp.eq.s32.totalorder %s25, 0
      %p157 = por %p155, %p156
      %s158 = ssub.s32 %s19, %s26
      %p159 = scmp.eq.s32.totalorder %s158, 0
      %s161 = sadd.s32 %s160, 1
      %s162 = scalar_select %p159, %s160, %s161
      %p165 = pneg %p159
      %p166 = scmp.eq.s32.totalorder %s19, 1
      %p167 = por %p165, %p166
      %p168 = scmp.ne.s32.totalorder %s160, %s163
      %p169 = scmp.eq.s32.totalorder %s19, 0
      %p170 = por %p168, %p169
      %p171 = scmp.ne.s32.totalorder %s160, %s163
      %p172 = scmp.eq.s32.totalorder %s24, 1
      %p173 = por %p171, %p172
      %p174 = scmp.ne.s32.totalorder %s163, %s164
      %p175 = scmp.eq.s32.totalorder %s24, 0
      %p176 = por %p174, %p175
      %p177 = scmp.ne.s32.totalorder %s163, %s164
      %p178 = scmp.eq.s32.totalorder %s25, 1
      %p179 = por %p177, %p178
      %p181 = scmp.ne.s32.totalorder %s164, %s180
      %p182 = scmp.eq.s32.totalorder %s25, 0
      %p183 = por %p181, %p182
      %p184 = scmp.le.s32.totalorder 1, %s19
      %p185 = scmp.lt.s32.totalorder %s19, 3
      %p186 = pnand %p184, %p185
      %p187 = pneg %p186
      // Predicated region
      $region9: #{tpu_custom_call.1} parent=5 // pred_check
        _
      $region10: #{tpu_custom_call.1} parent=5 // pred_check_branch
        %189 = sbr.rel (%p186) target = $region12
      $region11: #{tpu_custom_call.1} parent=5 // pred_region
        %s190 = ssub.s32 %s19, 1
        // Predicated region
        $region13: #{tpu_custom_call.1} parent=11 // pred_check
          %p191 = pneg %p66
        $region14: #{tpu_custom_call.1} parent=11 // pred_check_branch
          %193 = sbr.rel (%p191) target = $region16
        $region15: #{tpu_custom_call.1} parent=11 // pred_region
          %s195 = ssub.s32 50176, 50176
          %196 = vsyncadd [#allocation6], %s195
          %s197 = sshll.u32 [#allocation5], 4
          %s198 = int_to_ptr.vmem [resolvable:$true] %s197
          %203 = dma.hbm_to_vmem [thread:$0]  %s1, 50176, %s198, [#allocation6], 256, 256, 16
        $region16: #{tpu_custom_call.1} parent=11 // pred_fallthru
          _
        // Predicated region
        $region17: #{tpu_custom_call.1} parent=11 // pred_check
          %p204 = pneg %p87
        $region18: #{tpu_custom_call.1} parent=11 // pred_check_branch
          %206 = sbr.rel (%p204) target = $region20
        $region19: #{tpu_custom_call.1} parent=11 // pred_region
          _
        $region20: #{tpu_custom_call.1} parent=11 // pred_fallthru
          _
        // Predicated region
        $region21: #{tpu_custom_call.1} parent=11 // pred_check
          %p207 = pneg %p108
        $region22: #{tpu_custom_call.1} parent=11 // pred_check_branch
          %209 = sbr.rel (%p207) target = $region24
        $region23: #{tpu_custom_call.1} parent=11 // pred_region
          _
        $region24: #{tpu_custom_call.1} parent=11 // pred_fallthru
          _
        // Predicated region
        $region25: #{tpu_custom_call.1} parent=11 // pred_check
          %p210 = pneg %p129
        $region26: #{tpu_custom_call.1} parent=11 // pred_check_branch
          %212 = sbr.rel (%p210) target = $region28
        $region27: #{tpu_custom_call.1} parent=11 // pred_region
          _
        $region28: #{tpu_custom_call.1} parent=11 // pred_fallthru
          _
        // Predicated region
        $region29: #{tpu_custom_call.1} parent=11 // pred_check
          %p213 = pneg %p150
        $region30: #{tpu_custom_call.1} parent=11 // pred_check_branch
          %215 = sbr.rel (%p213) target = $region32
        $region31: #{tpu_custom_call.1} parent=11 // pred_region
          %s217 = ssub.s32 512, 512
          %218 = vsyncadd [#allocation6], %s217
          %s219 = sshll.u32 [#allocation7], 4
          %s220 = int_to_ptr.vmem [resolvable:$true] %s219
          %225 = dma.hbm_to_vmem [thread:$0]  %s5, 512, %s220, [#allocation6], 128, 128, 8
        $region32: #{tpu_custom_call.1} parent=11 // pred_fallthru
          _
      $region12: #{tpu_custom_call.1} parent=5 // pred_fallthru
        _
      %p226 = scmp.lt.s32.totalorder %s19, 2
      // Predicated region
      $region33: #{tpu_custom_call.1} parent=5 // pred_check
        %p227 = pneg %p226
      $region34: #{tpu_custom_call.1} parent=5 // pred_check_branch
        %229 = sbr.rel (%p227) target = $region36
      $region35: #{tpu_custom_call.1} parent=5 // pred_region
        // Predicated region
        $region37: #{tpu_custom_call.1} parent=35 // pred_check
          %p230 = pneg %p39
        $region38: #{tpu_custom_call.1} parent=35 // pred_check_branch
          %232 = sbr.rel (%p230) target = $region40
        $region39: #{tpu_custom_call.1} parent=35 // pred_region
          %s233 = sand.u32 %s29, 1
          %s234 = scalar_lea.sflag [#allocation3], %s233
          %s235 = sand.u32 %s29, 1
          %s236 = smul.addr %s235, 32
          %s237 = scalar_lea.vmem [#allocation2], %s236
          %s238 = smul.u32 2, %s19
          %s240 = ssub.s32 512, 512
          %241 = vsyncadd %s234, %s240
          %s242 = smul.addr %s238, 2
          %s243 = smul.addr %s242, 128
          %s244 = scalar_lea.hbm %s0, %s243
          %s245 = sshll.u32 %s237, 4
          %s246 = int_to_ptr.vmem [resolvable:$true] %s245
          %251 = dma.hbm_to_vmem [thread:$0]  %s244, 512, %s246, %s234, 256, 256, 16
        $region40: #{tpu_custom_call.1} parent=35 // pred_fallthru
          _
      $region36: #{tpu_custom_call.1} parent=5 // pred_fallthru
        _
      %p252 = scmp.le.s32.totalorder 1, %s19
      %p253 = scmp.lt.s32.totalorder %s19, 3
      %p254 = pnand %p252, %p253
      %p255 = pneg %p254
      // Predicated region
      $region41: #{tpu_custom_call.1} parent=5 // pred_check
        _
      $region42: #{tpu_custom_call.1} parent=5 // pred_check_branch
        %257 = sbr.rel (%p254) target = $region44
      $region43: #{tpu_custom_call.1} parent=5 // pred_region
        %s258 = ssub.s32 %s19, 1
        %s259 = sand.u32 %s32, 1
        %s260 = scalar_lea.sflag [#allocation3], %s259
        %s261 = sand.u32 %s32, 1
        %s262 = smul.addr %s261, 32
        %s263 = scalar_lea.vmem [#allocation2], %s262
        // Predicated region
        $region45: #{tpu_custom_call.1} parent=43 // pred_check
          %p264 = pneg %p45
        $region46: #{tpu_custom_call.1} parent=43 // pred_check_branch
          %266 = sbr.rel (%p264) target = $region48
        $region47: #{tpu_custom_call.1} parent=43 // pred_region
          %267 = dma.done %s260, 512
        $region48: #{tpu_custom_call.1} parent=43 // pred_fallthru
          _
        // Predicated region
        $region49: #{tpu_custom_call.1} parent=43 // pred_check
          %p268 = pneg %p66
        $region50: #{tpu_custom_call.1} parent=43 // pred_check_branch
          %270 = sbr.rel (%p268) target = $region52
        $region51: #{tpu_custom_call.1} parent=43 // pred_region
          %271 = dma.done [#allocation6], 50176
        $region52: #{tpu_custom_call.1} parent=43 // pred_fallthru
          _
        // Predicated region
        $region53: #{tpu_custom_call.1} parent=43 // pred_check
          %p272 = pneg %p150
        $region54: #{tpu_custom_call.1} parent=43 // pred_check_branch
          %274 = sbr.rel (%p272) target = $region56
        $region55: #{tpu_custom_call.1} parent=43 // pred_region
          %275 = dma.done [#allocation6], 512
        $region56: #{tpu_custom_call.1} parent=43 // pred_fallthru
          _
        %s276 = sand.u32 %s32, 1
        %s277 = scalar_lea.sflag [#allocation3], %s276
        %s278 = sand.u32 %s32, 1
        %s279 = smul.addr %s278, 32
        %s280 = scalar_lea.vmem [#allocation2], %s279
        %p281 = pneg %p45
        %p282 = pneg %p42
        %p283 = pneg %p66
        %p284 = pneg %p63
        %p285 = pneg %p87
        %p286 = pneg %p84
        %p287 = pneg %p108
        %p288 = pneg %p105
        %p289 = pneg %p129
        %p290 = pneg %p126
        %p291 = pneg %p150
        %p292 = pneg %p147
        %p293 = pneg %p176
        %p294 = pneg %p173
        %s295 = sand.u32 %s163, 1
        %s296 = scalar_lea.sflag [#allocation4], %s295
        %s297 = sand.u32 %s163, 1
        %s298 = smul.addr %s297, 32
        %s299 = scalar_lea.vmem [#allocation8], %s298
        %s300 = smul.u32 2, %s24
        %s301 = smul.u32 2, %s24
        %v302 = vld [vmem:[%s263] sm:$0xff]
        %v303 = vld [vmem:[%s263 + $0x8] sm:$0xff]
        %v304 = vld [vmem:[%s263 + $0x10] sm:$0xff]
        %v305 = vld [vmem:[%s263 + $0x18] sm:$0xff]
        %v306 = vld [vmem:[%s2] sm:$0xff]
        %v307 = vld [vmem:[%s2 + $0x8] sm:$0xff]
        %s308 = scalar_lea.vmem %s2, 16
        %v309 = vld [vmem:[%s308] sm:$0xff]
        %v310 = vld [vmem:[%s308 + $0x8] sm:$0xff]
        %s311 = scalar_lea.vmem %s2, 32
        %v312 = vld [vmem:[%s311] sm:$0xff]
        %v313 = vld [vmem:[%s311 + $0x8] sm:$0xff]
        %s314 = scalar_lea.vmem %s2, 48
        %v315 = vld [vmem:[%s314] sm:$0xff]
        %v316 = vld [vmem:[%s314 + $0x8] sm:$0xff]
        %v317 = vld [vmem:[%s3] sm:$0xff]
        %v318 = vld [vmem:[%s3 + $0x8] sm:$0xff]
        %v319 = vld [vmem:[%s3 + $0x10] sm:$0xff]
        %v320 = vld [vmem:[%s3 + $0x18] sm:$0xff]
        %v321 = vld [vmem:[%s3 + $0x20] sm:$0xff]
        %v322 = vld [vmem:[%s3 + $0x28] sm:$0xff]
        %v323 = vld [vmem:[%s3 + $0x30] sm:$0xff]
        %v324 = vld [vmem:[%s3 + $0x38] sm:$0xff]
        %s325 = scalar_lea.vmem %s3, 64
        %v326 = vld [vmem:[%s325] sm:$0xff]
        %v327 = vld [vmem:[%s325 + $0x8] sm:$0xff]
        %v328 = vld [vmem:[%s325 + $0x10] sm:$0xff]
        %v329 = vld [vmem:[%s325 + $0x18] sm:$0xff]
        %v330 = vld [vmem:[%s325 + $0x20] sm:$0xff]
        %v331 = vld [vmem:[%s325 + $0x28] sm:$0xff]
        %v332 = vld [vmem:[%s325 + $0x30] sm:$0xff]
        %v333 = vld [vmem:[%s325 + $0x38] sm:$0xff]
        %s334 = scalar_lea.vmem %s3, 128
        %v335 = vld [vmem:[%s334] sm:$0xff]
        %v336 = vld [vmem:[%s334 + $0x8] sm:$0xff]
        %v337 = vld [vmem:[%s334 + $0x10] sm:$0xff]
        %v338 = vld [vmem:[%s334 + $0x18] sm:$0xff]
        %v339 = vld [vmem:[%s334 + $0x20] sm:$0xff]
        %v340 = vld [vmem:[%s334 + $0x28] sm:$0xff]
        %v341 = vld [vmem:[%s334 + $0x30] sm:$0xff]
        %v342 = vld [vmem:[%s334 + $0x38] sm:$0xff]
        %v343 = vld [vmem:[%s4] sm:$0xff]
        %v344 = vld [vmem:[%s4 + $0x8] sm:$0xff]
        %v345 = vld [vmem:[%s4 + $0x10] sm:$0xff]
        %v346 = vld [vmem:[%s4 + $0x18] sm:$0xff]
        %v347 = vld [vmem:[%s4 + $0x20] sm:$0xff]
        %v348 = vld [vmem:[%s4 + $0x28] sm:$0xff]
        %v349 = vld [vmem:[%s4 + $0x30] sm:$0xff]
        %v350 = vld [vmem:[%s4 + $0x38] sm:$0xff]
        %v351 = vld [vmem:[#allocation7] sm:$0xff]
        %v352 = vld [vmem:[#allocation7 + $0x8] sm:$0xff]
        %353 = vrot.lane.b32.xlu0 %v302, 51
        %v354 = vpop.permute.xlu0 %353
        %355 = vrot.lane.b32.xlu0 %v304, 51
        %v356 = vpop.permute.xlu0 %355
        %357 = vrot.lane.b32.xlu0 %v303, 51
        %v358 = vpop.permute.xlu0 %357
        %359 = vrot.lane.b32.xlu0 %v305, 51
        %v360 = vpop.permute.xlu0 %359
        %v361 = vlaneseq
        %v362 = vand.u32 %v361, 127
        %vm363 = vcmp.lt.s32.totalorder %v362, 51
        %v364 = vsel %vm363, %v354, %v358
        %v365 = vsel %vm363, %v356, %v360
        %v366 = vsel %vm363, %v358, %v354
        %v367 = vsel %vm363, %v360, %v356
        %v368 = vld [vmem:[#allocation5] sm:$0xff]
        %v369 = vld [vmem:[#allocation5 + $0x8] sm:$0xff]
        %v370 = vld [vmem:[#allocation5 + $0x10] sm:$0xff]
        %v371 = vld [vmem:[#allocation5 + $0x18] sm:$0xff]
        %v372 = vmul.f32 %v366, %v368
        %v373 = vmul.f32 %v364, %v369
        %v374 = vmul.f32 %v367, %v370
        %v375 = vmul.f32 %v365, %v371
        %376 = vrot.lane.b32.xlu0 %v302, 50
        %v377 = vpop.permute.xlu0 %376
        %378 = vrot.lane.b32.xlu0 %v304, 50
        %v379 = vpop.permute.xlu0 %378
        %380 = vrot.lane.b32.xlu0 %v303, 50
        %v381 = vpop.permute.xlu0 %380
        %382 = vrot.lane.b32.xlu0 %v305, 50
        %v383 = vpop.permute.xlu0 %382
        %vm384 = vcmp.lt.s32.totalorder %v362, 50
        %v385 = vsel %vm384, %v377, %v381
        %v386 = vsel %vm384, %v379, %v383
        %v387 = vsel %vm384, %v381, %v377
        %v388 = vsel %vm384, %v383, %v379
        %s389 = scalar_lea.vmem [#allocation5], 32
        %v390 = vld [vmem:[%s389] sm:$0xff]
        %v391 = vld [vmem:[%s389 + $0x8] sm:$0xff]
        %v392 = vld [vmem:[%s389 + $0x10] sm:$0xff]
        %v393 = vld [vmem:[%s389 + $0x18] sm:$0xff]
        %v394 = vmul.f32 %v387, %v390
        %v395 = vmul.f32 %v385, %v391
        %v396 = vmul.f32 %v388, %v392
        %v397 = vmul.f32 %v386, %v393
        %398 = vrot.lane.b32.xlu0 %v302, 49
        %v399 = vpop.permute.xlu0 %398
        %400 = vrot.lane.b32.xlu0 %v304, 49
        %v401 = vpop.permute.xlu0 %400
        %402 = vrot.lane.b32.xlu0 %v303, 49
        %v403 = vpop.permute.xlu0 %402
        %404 = vrot.lane.b32.xlu0 %v305, 49
        %v405 = vpop.permute.xlu0 %404
        %vm406 = vcmp.lt.s32.totalorder %v362, 49
        %v407 = vsel %vm406, %v399, %v403
        %v408 = vsel %vm406, %v401, %v405
        %v409 = vsel %vm406, %v403, %v399
        %v410 = vsel %vm406, %v405, %v401
        %s411 = scalar_lea.vmem [#allocation5], 64
        %v412 = vld [vmem:[%s411] sm:$0xff]
        %v413 = vld [vmem:[%s411 + $0x8] sm:$0xff]
        %v414 = vld [vmem:[%s411 + $0x10] sm:$0xff]
        %v415 = vld [vmem:[%s411 + $0x18] sm:$0xff]
        %v416 = vmul.f32 %v409, %v412
        %v417 = vmul.f32 %v407, %v413
        %v418 = vmul.f32 %v410, %v414
        %v419 = vmul.f32 %v408, %v415
        %420 = vrot.lane.b32.xlu0 %v302, 48
        %v421 = vpop.permute.xlu0 %420
        %422 = vrot.lane.b32.xlu0 %v304, 48
        %v423 = vpop.permute.xlu0 %422
        %424 = vrot.lane.b32.xlu0 %v303, 48
        %v425 = vpop.permute.xlu0 %424
        %426 = vrot.lane.b32.xlu0 %v305, 48
        %v427 = vpop.permute.xlu0 %426
        %vm428 = vcmp.lt.s32.totalorder %v362, 48
        %v429 = vsel %vm428, %v421, %v425
        %v430 = vsel %vm428, %v423, %v427
        %v431 = vsel %vm428, %v425, %v421
        %v432 = vsel %vm428, %v427, %v423
        %s433 = scalar_lea.vmem [#allocation5], 96
        %v434 = vld [vmem:[%s433] sm:$0xff]
        %v435 = vld [vmem:[%s433 + $0x8] sm:$0xff]
        %v436 = vld [vmem:[%s433 + $0x10] sm:$0xff]
        %v437 = vld [vmem:[%s433 + $0x18] sm:$0xff]
        %v438 = vmul.f32 %v431, %v434
        %v439 = vmul.f32 %v429, %v435
        %v440 = vmul.f32 %v432, %v436
        %v441 = vmul.f32 %v430, %v437
        %442 = vrot.lane.b32.xlu0 %v302, 47
        %v443 = vpop.permute.xlu0 %442
        %444 = vrot.lane.b32.xlu0 %v304, 47
        %v445 = vpop.permute.xlu0 %444
        %446 = vrot.lane.b32.xlu0 %v303, 47
        %v447 = vpop.permute.xlu0 %446
        %448 = vrot.lane.b32.xlu0 %v305, 47
        %v449 = vpop.permute.xlu0 %448
        %vm450 = vcmp.lt.s32.totalorder %v362, 47
        %v451 = vsel %vm450, %v443, %v447
        %v452 = vsel %vm450, %v445, %v449
        %v453 = vsel %vm450, %v447, %v443
        %v454 = vsel %vm450, %v449, %v445
        %s455 = scalar_lea.vmem [#allocation5], 128
        %v456 = vld [vmem:[%s455] sm:$0xff]
        %v457 = vld [vmem:[%s455 + $0x8] sm:$0xff]
        %v458 = vld [vmem:[%s455 + $0x10] sm:$0xff]
        %v459 = vld [vmem:[%s455 + $0x18] sm:$0xff]
        %v460 = vmul.f32 %v453, %v456
        %v461 = vmul.f32 %v451, %v457
        %v462 = vmul.f32 %v454, %v458
        %v463 = vmul.f32 %v452, %v459
        %v464 = vadd.f32 %v372, %v460
        %v465 = vadd.f32 %v373, %v461
        %v466 = vadd.f32 %v374, %v462
        %v467 = vadd.f32 %v375, %v463
        %468 = vrot.lane.b32.xlu0 %v302, 46
        %v469 = vpop.permute.xlu0 %468
        %470 = vrot.lane.b32.xlu0 %v304, 46
        %v471 = vpop.permute.xlu0 %470
        %472 = vrot.lane.b32.xlu0 %v303, 46
        %v473 = vpop.permute.xlu0 %472
        %474 = vrot.lane.b32.xlu0 %v305, 46
        %v475 = vpop.permute.xlu0 %474
        %vm476 = vcmp.lt.s32.totalorder %v362, 46
        %v477 = vsel %vm476, %v469, %v473
        %v478 = vsel %vm476, %v471, %v475
        %v479 = vsel %vm476, %v473, %v469
        %v480 = vsel %vm476, %v475, %v471
        %s481 = scalar_lea.vmem [#allocation5], 160
        %v482 = vld [vmem:[%s481] sm:$0xff]
        %v483 = vld [vmem:[%s481 + $0x8] sm:$0xff]
        %v484 = vld [vmem:[%s481 + $0x10] sm:$0xff]
        %v485 = vld [vmem:[%s481 + $0x18] sm:$0xff]
        %v486 = vmul.f32 %v479, %v482
        %v487 = vmul.f32 %v477, %v483
        %v488 = vmul.f32 %v480, %v484
        %v489 = vmul.f32 %v478, %v485
        %v490 = vadd.f32 %v394, %v486
        %v491 = vadd.f32 %v395, %v487
        %v492 = vadd.f32 %v396, %v488
        %v493 = vadd.f32 %v397, %v489
        %494 = vrot.lane.b32.xlu0 %v302, 45
        %v495 = vpop.permute.xlu0 %494
        %496 = vrot.lane.b32.xlu0 %v304, 45
        %v497 = vpop.permute.xlu0 %496
        %498 = vrot.lane.b32.xlu0 %v303, 45
        %v499 = vpop.permute.xlu0 %498
        %500 = vrot.lane.b32.xlu0 %v305, 45
        %v501 = vpop.permute.xlu0 %500
        %vm502 = vcmp.lt.s32.totalorder %v362, 45
        %v503 = vsel %vm502, %v495, %v499
        %v504 = vsel %vm502, %v497, %v501
        %v505 = vsel %vm502, %v499, %v495
        %v506 = vsel %vm502, %v501, %v497
        %s507 = scalar_lea.vmem [#allocation5], 192
        %v508 = vld [vmem:[%s507] sm:$0xff]
        %v509 = vld [vmem:[%s507 + $0x8] sm:$0xff]
        %v510 = vld [vmem:[%s507 + $0x10] sm:$0xff]
        %v511 = vld [vmem:[%s507 + $0x18] sm:$0xff]
        %v512 = vmul.f32 %v505, %v508
        %v513 = vmul.f32 %v503, %v509
        %v514 = vmul.f32 %v506, %v510
        %v515 = vmul.f32 %v504, %v511
        %v516 = vadd.f32 %v416, %v512
        %v517 = vadd.f32 %v417, %v513
        %v518 = vadd.f32 %v418, %v514
        %v519 = vadd.f32 %v419, %v515
        %520 = vrot.lane.b32.xlu0 %v302, 35
        %v521 = vpop.permute.xlu0 %520
        %522 = vrot.lane.b32.xlu0 %v304, 35
        %v523 = vpop.permute.xlu0 %522
        %524 = vrot.lane.b32.xlu0 %v303, 35
        %v525 = vpop.permute.xlu0 %524
        %526 = vrot.lane.b32.xlu0 %v305, 35
        %v527 = vpop.permute.xlu0 %526
        %vm528 = vcmp.lt.s32.totalorder %v362, 35
        %v529 = vsel %vm528, %v521, %v525
        %v530 = vsel %vm528, %v523, %v527
        %v531 = vsel %vm528, %v525, %v521
        %v532 = vsel %vm528, %v527, %v523
        %s533 = scalar_lea.vmem [#allocation5], 224
        %v534 = vld [vmem:[%s533] sm:$0xff]
        %v535 = vld [vmem:[%s533 + $0x8] sm:$0xff]
        %v536 = vld [vmem:[%s533 + $0x10] sm:$0xff]
        %v537 = vld [vmem:[%s533 + $0x18] sm:$0xff]
        %v538 = vmul.f32 %v531, %v534
        %v539 = vmul.f32 %v529, %v535
        %v540 = vmul.f32 %v532, %v536
        %v541 = vmul.f32 %v530, %v537
        %v542 = vadd.f32 %v438, %v538
        %v543 = vadd.f32 %v439, %v539
        %v544 = vadd.f32 %v440, %v540
        %v545 = vadd.f32 %v441, %v541
        %546 = vrot.lane.b32.xlu0 %v302, 34
        %v547 = vpop.permute.xlu0 %546
        %548 = vrot.lane.b32.xlu0 %v304, 34
        %v549 = vpop.permute.xlu0 %548
        %550 = vrot.lane.b32.xlu0 %v303, 34
        %v551 = vpop.permute.xlu0 %550
        %552 = vrot.lane.b32.xlu0 %v305, 34
        %v553 = vpop.permute.xlu0 %552
        %vm554 = vcmp.lt.s32.totalorder %v362, 34
        %v555 = vsel %vm554, %v547, %v551
        %v556 = vsel %vm554, %v549, %v553
        %v557 = vsel %vm554, %v551, %v547
        %v558 = vsel %vm554, %v553, %v549
        %s559 = scalar_lea.vmem [#allocation5], 256
        %v560 = vld [vmem:[%s559] sm:$0xff]
        %v561 = vld [vmem:[%s559 + $0x8] sm:$0xff]
        %v562 = vld [vmem:[%s559 + $0x10] sm:$0xff]
        %v563 = vld [vmem:[%s559 + $0x18] sm:$0xff]
        %v564 = vmul.f32 %v557, %v560
        %v565 = vmul.f32 %v555, %v561
        %v566 = vmul.f32 %v558, %v562
        %v567 = vmul.f32 %v556, %v563
        %v568 = vadd.f32 %v464, %v564
        %v569 = vadd.f32 %v465, %v565
        %v570 = vadd.f32 %v466, %v566
        %v571 = vadd.f32 %v467, %v567
        %572 = vrot.lane.b32.xlu0 %v302, 33
        %v573 = vpop.permute.xlu0 %572
        %574 = vrot.lane.b32.xlu0 %v304, 33
        %v575 = vpop.permute.xlu0 %574
        %576 = vrot.lane.b32.xlu0 %v303, 33
        %v577 = vpop.permute.xlu0 %576
        %578 = vrot.lane.b32.xlu0 %v305, 33
        %v579 = vpop.permute.xlu0 %578
        %vm580 = vcmp.lt.s32.totalorder %v362, 33
        %v581 = vsel %vm580, %v573, %v577
        %v582 = vsel %vm580, %v575, %v579
        %v583 = vsel %vm580, %v577, %v573
        %v584 = vsel %vm580, %v579, %v575
        %s585 = scalar_lea.vmem [#allocation5], 288
        %v586 = vld [vmem:[%s585] sm:$0xff]
        %v587 = vld [vmem:[%s585 + $0x8] sm:$0xff]
        %v588 = vld [vmem:[%s585 + $0x10] sm:$0xff]
        %v589 = vld [vmem:[%s585 + $0x18] sm:$0xff]
        %v590 = vmul.f32 %v583, %v586
        %v591 = vmul.f32 %v581, %v587
        %v592 = vmul.f32 %v584, %v588
        %v593 = vmul.f32 %v582, %v589
        %v594 = vadd.f32 %v490, %v590
        %v595 = vadd.f32 %v491, %v591
        %v596 = vadd.f32 %v492, %v592
        %v597 = vadd.f32 %v493, %v593
        %598 = vrot.lane.b32.xlu0 %v302, 32
        %v599 = vpop.permute.xlu0 %598
        %600 = vrot.lane.b32.xlu0 %v304, 32
        %v601 = vpop.permute.xlu0 %600
        %602 = vrot.lane.b32.xlu0 %v303, 32
        %v603 = vpop.permute.xlu0 %602
        %604 = vrot.lane.b32.xlu0 %v305, 32
        %v605 = vpop.permute.xlu0 %604
        %vm606 = vcmp.lt.s32.totalorder %v362, 32
        %v607 = vsel %vm606, %v599, %v603
        %v608 = vsel %vm606, %v601, %v605
        %v609 = vsel %vm606, %v603, %v599
        %v610 = vsel %vm606, %v605, %v601
        %s611 = scalar_lea.vmem [#allocation5], 320
        %v612 = vld [vmem:[%s611] sm:$0xff]
        %v613 = vld [vmem:[%s611 + $0x8] sm:$0xff]
        %v614 = vld [vmem:[%s611 + $0x10] sm:$0xff]
        %v615 = vld [vmem:[%s611 + $0x18] sm:$0xff]
        %v616 = vmul.f32 %v609, %v612
        %v617 = vmul.f32 %v607, %v613
        %v618 = vmul.f32 %v610, %v614
        %v619 = vmul.f32 %v608, %v615
        %v620 = vadd.f32 %v516, %v616
        %v621 = vadd.f32 %v517, %v617
        %v622 = vadd.f32 %v518, %v618
        %v623 = vadd.f32 %v519, %v619
        %624 = vrot.lane.b32.xlu0 %v302, 31
        %v625 = vpop.permute.xlu0 %624
        %626 = vrot.lane.b32.xlu0 %v304, 31
        %v627 = vpop.permute.xlu0 %626
        %628 = vrot.lane.b32.xlu0 %v303, 31
        %v629 = vpop.permute.xlu0 %628
        %630 = vrot.lane.b32.xlu0 %v305, 31
        %v631 = vpop.permute.xlu0 %630
        %vm632 = vcmp.lt.s32.totalorder %v362, 31
        %v633 = vsel %vm632, %v625, %v629
        %v634 = vsel %vm632, %v627, %v631
        %v635 = vsel %vm632, %v629, %v625
        %v636 = vsel %vm632, %v631, %v627
        %s637 = scalar_lea.vmem [#allocation5], 352
        %v638 = vld [vmem:[%s637] sm:$0xff]
        %v639 = vld [vmem:[%s637 + $0x8] sm:$0xff]
        %v640 = vld [vmem:[%s637 + $0x10] sm:$0xff]
        %v641 = vld [vmem:[%s637 + $0x18] sm:$0xff]
        %v642 = vmul.f32 %v635, %v638
        %v643 = vmul.f32 %v633, %v639
        %v644 = vmul.f32 %v636, %v640
        %v645 = vmul.f32 %v634, %v641
        %v646 = vadd.f32 %v542, %v642
        %v647 = vadd.f32 %v543, %v643
        %v648 = vadd.f32 %v544, %v644
        %v649 = vadd.f32 %v545, %v645
        %650 = vrot.lane.b32.xlu0 %v302, 30
        %v651 = vpop.permute.xlu0 %650
        %652 = vrot.lane.b32.xlu0 %v304, 30
        %v653 = vpop.permute.xlu0 %652
        %654 = vrot.lane.b32.xlu0 %v303, 30
        %v655 = vpop.permute.xlu0 %654
        %656 = vrot.lane.b32.xlu0 %v305, 30
        %v657 = vpop.permute.xlu0 %656
        %vm658 = vcmp.lt.s32.totalorder %v362, 30
        %v659 = vsel %vm658, %v651, %v655
        %v660 = vsel %vm658, %v653, %v657
        %v661 = vsel %vm658, %v655, %v651
        %v662 = vsel %vm658, %v657, %v653
        %s663 = scalar_lea.vmem [#allocation5], 384
        %v664 = vld [vmem:[%s663] sm:$0xff]
        %v665 = vld [vmem:[%s663 + $0x8] sm:$0xff]
        %v666 = vld [vmem:[%s663 + $0x10] sm:$0xff]
        %v667 = vld [vmem:[%s663 + $0x18] sm:$0xff]
        %v668 = vmul.f32 %v661, %v664
        %v669 = vmul.f32 %v659, %v665
        %v670 = vmul.f32 %v662, %v666
        %v671 = vmul.f32 %v660, %v667
        %v672 = vadd.f32 %v568, %v668
        %v673 = vadd.f32 %v569, %v669
        %v674 = vadd.f32 %v570, %v670
        %v675 = vadd.f32 %v571, %v671
        %676 = vrot.lane.b32.xlu0 %v302, 29
        %v677 = vpop.permute.xlu0 %676
        %678 = vrot.lane.b32.xlu0 %v304, 29
        %v679 = vpop.permute.xlu0 %678
        %680 = vrot.lane.b32.xlu0 %v303, 29
        %v681 = vpop.permute.xlu0 %680
        %682 = vrot.lane.b32.xlu0 %v305, 29
        %v683 = vpop.permute.xlu0 %682
        %vm684 = vcmp.lt.s32.totalorder %v362, 29
        %v685 = vsel %vm684, %v677, %v681
        %v686 = vsel %vm684, %v679, %v683
        %v687 = vsel %vm684, %v681, %v677
        %v688 = vsel %vm684, %v683, %v679
        %s689 = scalar_lea.vmem [#allocation5], 416
        %v690 = vld [vmem:[%s689] sm:$0xff]
        %v691 = vld [vmem:[%s689 + $0x8] sm:$0xff]
        %v692 = vld [vmem:[%s689 + $0x10] sm:$0xff]
        %v693 = vld [vmem:[%s689 + $0x18] sm:$0xff]
        %v694 = vmul.f32 %v687, %v690
        %v695 = vmul.f32 %v685, %v691
        %v696 = vmul.f32 %v688, %v692
        %v697 = vmul.f32 %v686, %v693
        %v698 = vadd.f32 %v594, %v694
        %v699 = vadd.f32 %v595, %v695
        %v700 = vadd.f32 %v596, %v696
        %v701 = vadd.f32 %v597, %v697
        %702 = vrot.lane.b32.xlu0 %v302, 19
        %v703 = vpop.permute.xlu0 %702
        %704 = vrot.lane.b32.xlu0 %v304, 19
        %v705 = vpop.permute.xlu0 %704
        %706 = vrot.lane.b32.xlu0 %v303, 19
        %v707 = vpop.permute.xlu0 %706
        %708 = vrot.lane.b32.xlu0 %v305, 19
        %v709 = vpop.permute.xlu0 %708
        %vm710 = vcmp.lt.s32.totalorder %v362, 19
        %v711 = vsel %vm710, %v703, %v707
        %v712 = vsel %vm710, %v705, %v709
        %v713 = vsel %vm710, %v707, %v703
        %v714 = vsel %vm710, %v709, %v705
        %s715 = scalar_lea.vmem [#allocation5], 448
        %v716 = vld [vmem:[%s715] sm:$0xff]
        %v717 = vld [vmem:[%s715 + $0x8] sm:$0xff]
        %v718 = vld [vmem:[%s715 + $0x10] sm:$0xff]
        %v719 = vld [vmem:[%s715 + $0x18] sm:$0xff]
        %v720 = vmul.f32 %v713, %v716
        %v721 = vmul.f32 %v711, %v717
        %v722 = vmul.f32 %v714, %v718
        %v723 = vmul.f32 %v712, %v719
        %v724 = vadd.f32 %v620, %v720
        %v725 = vadd.f32 %v621, %v721
        %v726 = vadd.f32 %v622, %v722
        %v727 = vadd.f32 %v623, %v723
        %728 = vrot.lane.b32.xlu0 %v302, 18
        %v729 = vpop.permute.xlu0 %728
        %730 = vrot.lane.b32.xlu0 %v304, 18
        %v731 = vpop.permute.xlu0 %730
        %732 = vrot.lane.b32.xlu0 %v303, 18
        %v733 = vpop.permute.xlu0 %732
        %734 = vrot.lane.b32.xlu0 %v305, 18
        %v735 = vpop.permute.xlu0 %734
        %vm736 = vcmp.lt.s32.totalorder %v362, 18
        %v737 = vsel %vm736, %v729, %v733
        %v738 = vsel %vm736, %v731, %v735
        %v739 = vsel %vm736, %v733, %v729
        %v740 = vsel %vm736, %v735, %v731
        %s741 = scalar_lea.vmem [#allocation5], 480
        %v742 = vld [vmem:[%s741] sm:$0xff]
        %v743 = vld [vmem:[%s741 + $0x8] sm:$0xff]
        %v744 = vld [vmem:[%s741 + $0x10] sm:$0xff]
        %v745 = vld [vmem:[%s741 + $0x18] sm:$0xff]
        %v746 = vmul.f32 %v739, %v742
        %v747 = vmul.f32 %v737, %v743
        %v748 = vmul.f32 %v740, %v744
        %v749 = vmul.f32 %v738, %v745
        %v750 = vadd.f32 %v646, %v746
        %v751 = vadd.f32 %v647, %v747
        %v752 = vadd.f32 %v648, %v748
        %v753 = vadd.f32 %v649, %v749
        %754 = vrot.lane.b32.xlu0 %v302, 17
        %v755 = vpop.permute.xlu0 %754
        %756 = vrot.lane.b32.xlu0 %v304, 17
        %v757 = vpop.permute.xlu0 %756
        %758 = vrot.lane.b32.xlu0 %v303, 17
        %v759 = vpop.permute.xlu0 %758
        %760 = vrot.lane.b32.xlu0 %v305, 17
        %v761 = vpop.permute.xlu0 %760
        %vm762 = vcmp.lt.s32.totalorder %v362, 17
        %v763 = vsel %vm762, %v755, %v759
        %v764 = vsel %vm762, %v757, %v761
        %v765 = vsel %vm762, %v759, %v755
        %v766 = vsel %vm762, %v761, %v757
        %s767 = scalar_lea.vmem [#allocation5], 512
        %v768 = vld [vmem:[%s767] sm:$0xff]
        %v769 = vld [vmem:[%s767 + $0x8] sm:$0xff]
        %v770 = vld [vmem:[%s767 + $0x10] sm:$0xff]
        %v771 = vld [vmem:[%s767 + $0x18] sm:$0xff]
        %v772 = vmul.f32 %v765, %v768
        %v773 = vmul.f32 %v763, %v769
        %v774 = vmul.f32 %v766, %v770
        %v775 = vmul.f32 %v764, %v771
        %v776 = vadd.f32 %v672, %v772
        %v777 = vadd.f32 %v673, %v773
        %v778 = vadd.f32 %v674, %v774
        %v779 = vadd.f32 %v675, %v775
        %780 = vrot.lane.b32.xlu0 %v302, 16
        %v781 = vpop.permute.xlu0 %780
        %782 = vrot.lane.b32.xlu0 %v304, 16
        %v783 = vpop.permute.xlu0 %782
        %784 = vrot.lane.b32.xlu0 %v303, 16
        %v785 = vpop.permute.xlu0 %784
        %786 = vrot.lane.b32.xlu0 %v305, 16
        %v787 = vpop.permute.xlu0 %786
        %vm788 = vcmp.lt.s32.totalorder %v362, 16
        %v789 = vsel %vm788, %v781, %v785
        %v790 = vsel %vm788, %v783, %v787
        %v791 = vsel %vm788, %v785, %v781
        %v792 = vsel %vm788, %v787, %v783
        %s793 = scalar_lea.vmem [#allocation5], 544
        %v794 = vld [vmem:[%s793] sm:$0xff]
        %v795 = vld [vmem:[%s793 + $0x8] sm:$0xff]
        %v796 = vld [vmem:[%s793 + $0x10] sm:$0xff]
        %v797 = vld [vmem:[%s793 + $0x18] sm:$0xff]
        %v798 = vmul.f32 %v791, %v794
        %v799 = vmul.f32 %v789, %v795
        %v800 = vmul.f32 %v792, %v796
        %v801 = vmul.f32 %v790, %v797
        %v802 = vadd.f32 %v698, %v798
        %v803 = vadd.f32 %v699, %v799
        %v804 = vadd.f32 %v700, %v800
        %v805 = vadd.f32 %v701, %v801
        %806 = vrot.lane.b32.xlu0 %v302, 15
        %v807 = vpop.permute.xlu0 %806
        %808 = vrot.lane.b32.xlu0 %v304, 15
        %v809 = vpop.permute.xlu0 %808
        %810 = vrot.lane.b32.xlu0 %v303, 15
        %v811 = vpop.permute.xlu0 %810
        %812 = vrot.lane.b32.xlu0 %v305, 15
        %v813 = vpop.permute.xlu0 %812
        %vm814 = vcmp.lt.s32.totalorder %v362, 15
        %v815 = vsel %vm814, %v807, %v811
        %v816 = vsel %vm814, %v809, %v813
        %v817 = vsel %vm814, %v811, %v807
        %v818 = vsel %vm814, %v813, %v809
        %s819 = scalar_lea.vmem [#allocation5], 576
        %v820 = vld [vmem:[%s819] sm:$0xff]
        %v821 = vld [vmem:[%s819 + $0x8] sm:$0xff]
        %v822 = vld [vmem:[%s819 + $0x10] sm:$0xff]
        %v823 = vld [vmem:[%s819 + $0x18] sm:$0xff]
        %v824 = vmul.f32 %v817, %v820
        %v825 = vmul.f32 %v815, %v821
        %v826 = vmul.f32 %v818, %v822
        %v827 = vmul.f32 %v816, %v823
        %v828 = vadd.f32 %v724, %v824
        %v829 = vadd.f32 %v725, %v825
        %v830 = vadd.f32 %v726, %v826
        %v831 = vadd.f32 %v727, %v827
        %832 = vrot.lane.b32.xlu0 %v302, 14
        %v833 = vpop.permute.xlu0 %832
        %834 = vrot.lane.b32.xlu0 %v304, 14
        %v835 = vpop.permute.xlu0 %834
        %836 = vrot.lane.b32.xlu0 %v303, 14
        %v837 = vpop.permute.xlu0 %836
        %838 = vrot.lane.b32.xlu0 %v305, 14
        %v839 = vpop.permute.xlu0 %838
        %vm840 = vcmp.lt.s32.totalorder %v362, 14
        %v841 = vsel %vm840, %v833, %v837
        %v842 = vsel %vm840, %v835, %v839
        %v843 = vsel %vm840, %v837, %v833
        %v844 = vsel %vm840, %v839, %v835
        %s845 = scalar_lea.vmem [#allocation5], 608
        %v846 = vld [vmem:[%s845] sm:$0xff]
        %v847 = vld [vmem:[%s845 + $0x8] sm:$0xff]
        %v848 = vld [vmem:[%s845 + $0x10] sm:$0xff]
        %v849 = vld [vmem:[%s845 + $0x18] sm:$0xff]
        %v850 = vmul.f32 %v843, %v846
        %v851 = vmul.f32 %v841, %v847
        %v852 = vmul.f32 %v844, %v848
        %v853 = vmul.f32 %v842, %v849
        %v854 = vadd.f32 %v750, %v850
        %v855 = vadd.f32 %v751, %v851
        %v856 = vadd.f32 %v752, %v852
        %v857 = vadd.f32 %v753, %v853
        %858 = vrot.lane.b32.xlu0 %v302, 13
        %v859 = vpop.permute.xlu0 %858
        %860 = vrot.lane.b32.xlu0 %v304, 13
        %v861 = vpop.permute.xlu0 %860
        %862 = vrot.lane.b32.xlu0 %v303, 13
        %v863 = vpop.permute.xlu0 %862
        %864 = vrot.lane.b32.xlu0 %v305, 13
        %v865 = vpop.permute.xlu0 %864
        %vm866 = vcmp.lt.s32.totalorder %v362, 13
        %v867 = vsel %vm866, %v859, %v863
        %v868 = vsel %vm866, %v861, %v865
        %v869 = vsel %vm866, %v863, %v859
        %v870 = vsel %vm866, %v865, %v861
        %s871 = scalar_lea.vmem [#allocation5], 640
        %v872 = vld [vmem:[%s871] sm:$0xff]
        %v873 = vld [vmem:[%s871 + $0x8] sm:$0xff]
        %v874 = vld [vmem:[%s871 + $0x10] sm:$0xff]
        %v875 = vld [vmem:[%s871 + $0x18] sm:$0xff]
        %v876 = vmul.f32 %v869, %v872
        %v877 = vmul.f32 %v867, %v873
        %v878 = vmul.f32 %v870, %v874
        %v879 = vmul.f32 %v868, %v875
        %v880 = vadd.f32 %v776, %v876
        %v881 = vadd.f32 %v777, %v877
        %v882 = vadd.f32 %v778, %v878
        %v883 = vadd.f32 %v779, %v879
        %884 = vrot.lane.b32.xlu0 %v302, 3
        %v885 = vpop.permute.xlu0 %884
        %886 = vrot.lane.b32.xlu0 %v304, 3
        %v887 = vpop.permute.xlu0 %886
        %888 = vrot.lane.b32.xlu0 %v303, 3
        %v889 = vpop.permute.xlu0 %888
        %890 = vrot.lane.b32.xlu0 %v305, 3
        %v891 = vpop.permute.xlu0 %890
        %vm892 = vcmp.lt.s32.totalorder %v362, 3
        %v893 = vsel %vm892, %v885, %v889
        %v894 = vsel %vm892, %v887, %v891
        %v895 = vsel %vm892, %v889, %v885
        %v896 = vsel %vm892, %v891, %v887
        %s897 = scalar_lea.vmem [#allocation5], 672
        %v898 = vld [vmem:[%s897] sm:$0xff]
        %v899 = vld [vmem:[%s897 + $0x8] sm:$0xff]
        %v900 = vld [vmem:[%s897 + $0x10] sm:$0xff]
        %v901 = vld [vmem:[%s897 + $0x18] sm:$0xff]
        %v902 = vmul.f32 %v895, %v898
        %v903 = vmul.f32 %v893, %v899
        %v904 = vmul.f32 %v896, %v900
        %v905 = vmul.f32 %v894, %v901
        %v906 = vadd.f32 %v802, %v902
        %v907 = vadd.f32 %v803, %v903
        %v908 = vadd.f32 %v804, %v904
        %v909 = vadd.f32 %v805, %v905
        %910 = vrot.lane.b32.xlu0 %v302, 2
        %v911 = vpop.permute.xlu0 %910
        %912 = vrot.lane.b32.xlu0 %v304, 2
        %v913 = vpop.permute.xlu0 %912
        %914 = vrot.lane.b32.xlu0 %v303, 2
        %v915 = vpop.permute.xlu0 %914
        %916 = vrot.lane.b32.xlu0 %v305, 2
        %v917 = vpop.permute.xlu0 %916
        %vm918 = vcmp.lt.s32.totalorder %v362, 2
        %v919 = vsel %vm918, %v911, %v915
        %v920 = vsel %vm918, %v913, %v917
        %v921 = vsel %vm918, %v915, %v911
        %v922 = vsel %vm918, %v917, %v913
        %s923 = scalar_lea.vmem [#allocation5], 704
        %v924 = vld [vmem:[%s923] sm:$0xff]
        %v925 = vld [vmem:[%s923 + $0x8] sm:$0xff]
        %v926 = vld [vmem:[%s923 + $0x10] sm:$0xff]
        %v927 = vld [vmem:[%s923 + $0x18] sm:$0xff]
        %v928 = vmul.f32 %v921, %v924
        %v929 = vmul.f32 %v919, %v925
        %v930 = vmul.f32 %v922, %v926
        %v931 = vmul.f32 %v920, %v927
        %v932 = vadd.f32 %v828, %v928
        %v933 = vadd.f32 %v829, %v929
        %v934 = vadd.f32 %v830, %v930
        %v935 = vadd.f32 %v831, %v931
        %936 = vrot.lane.b32.xlu0 %v302, 1
        %v937 = vpop.permute.xlu0 %936
        %938 = vrot.lane.b32.xlu0 %v304, 1
        %v939 = vpop.permute.xlu0 %938
        %940 = vrot.lane.b32.xlu0 %v303, 1
        %v941 = vpop.permute.xlu0 %940
        %942 = vrot.lane.b32.xlu0 %v305, 1
        %v943 = vpop.permute.xlu0 %942
        %vm944 = vcmp.lt.s32.totalorder %v362, 1
        %v945 = vsel %vm944, %v937, %v941
        %v946 = vsel %vm944, %v939, %v943
        %v947 = vsel %vm944, %v941, %v937
        %v948 = vsel %vm944, %v943, %v939
        %s949 = scalar_lea.vmem [#allocation5], 736
        %v950 = vld [vmem:[%s949] sm:$0xff]
        %v951 = vld [vmem:[%s949 + $0x8] sm:$0xff]
        %v952 = vld [vmem:[%s949 + $0x10] sm:$0xff]
        %v953 = vld [vmem:[%s949 + $0x18] sm:$0xff]
        %v954 = vmul.f32 %v947, %v950
        %v955 = vmul.f32 %v945, %v951
        %v956 = vmul.f32 %v948, %v952
        %v957 = vmul.f32 %v946, %v953
        %v958 = vadd.f32 %v854, %v954
        %v959 = vadd.f32 %v855, %v955
        %v960 = vadd.f32 %v856, %v956
        %v961 = vadd.f32 %v857, %v957
        %s962 = scalar_lea.vmem [#allocation5], 768
        %v963 = vld [vmem:[%s962] sm:$0xff]
        %v964 = vld [vmem:[%s962 + $0x8] sm:$0xff]
        %v965 = vld [vmem:[%s962 + $0x10] sm:$0xff]
        %v966 = vld [vmem:[%s962 + $0x18] sm:$0xff]
        %v967 = vmul.f32 %v302, %v963
        %v968 = vmul.f32 %v303, %v964
        %v969 = vmul.f32 %v304, %v965
        %v970 = vmul.f32 %v305, %v966
        %v971 = vadd.f32 %v880, %v967
        %v972 = vadd.f32 %v881, %v968
        %v973 = vadd.f32 %v882, %v969
        %v974 = vadd.f32 %v883, %v970
        %975 = vrot.lane.b32.xlu0 %v302, 127
        %v976 = vpop.permute.xlu0 %975
        %977 = vrot.lane.b32.xlu0 %v304, 127
        %v978 = vpop.permute.xlu0 %977
        %979 = vrot.lane.b32.xlu0 %v303, 127
        %v980 = vpop.permute.xlu0 %979
        %981 = vrot.lane.b32.xlu0 %v305, 127
        %v982 = vpop.permute.xlu0 %981
        %vm983 = vcmp.lt.s32.totalorder %v362, 127
        %v984 = vsel %vm983, %v976, %v980
        %v985 = vsel %vm983, %v978, %v982
        %v986 = vsel %vm983, %v980, %v976
        %v987 = vsel %vm983, %v982, %v978
        %s988 = scalar_lea.vmem [#allocation5], 800
        %v989 = vld [vmem:[%s988] sm:$0xff]
        %v990 = vld [vmem:[%s988 + $0x8] sm:$0xff]
        %v991 = vld [vmem:[%s988 + $0x10] sm:$0xff]
        %v992 = vld [vmem:[%s988 + $0x18] sm:$0xff]
        %v993 = vmul.f32 %v984, %v989
        %v994 = vmul.f32 %v986, %v990
        %v995 = vmul.f32 %v985, %v991
        %v996 = vmul.f32 %v987, %v992
        %v997 = vadd.f32 %v906, %v993
        %v998 = vadd.f32 %v907, %v994
        %v999 = vadd.f32 %v908, %v995
        %v1000 = vadd.f32 %v909, %v996
        %1001 = vrot.lane.b32.xlu0 %v302, 126
        %v1002 = vpop.permute.xlu0 %1001
        %1003 = vrot.lane.b32.xlu0 %v304, 126
        %v1004 = vpop.permute.xlu0 %1003
        %1005 = vrot.lane.b32.xlu0 %v303, 126
        %v1006 = vpop.permute.xlu0 %1005
        %1007 = vrot.lane.b32.xlu0 %v305, 126
        %v1008 = vpop.permute.xlu0 %1007
        %vm1009 = vcmp.lt.s32.totalorder %v362, 126
        %v1010 = vsel %vm1009, %v1002, %v1006
        %v1011 = vsel %vm1009, %v1004, %v1008
        %v1012 = vsel %vm1009, %v1006, %v1002
        %v1013 = vsel %vm1009, %v1008, %v1004
        %s1014 = scalar_lea.vmem [#allocation5], 832
        %v1015 = vld [vmem:[%s1014] sm:$0xff]
        %v1016 = vld [vmem:[%s1014 + $0x8] sm:$0xff]
        %v1017 = vld [vmem:[%s1014 + $0x10] sm:$0xff]
        %v1018 = vld [vmem:[%s1014 + $0x18] sm:$0xff]
        %v1019 = vmul.f32 %v1010, %v1015
        %v1020 = vmul.f32 %v1012, %v1016
        %v1021 = vmul.f32 %v1011, %v1017
        %v1022 = vmul.f32 %v1013, %v1018
        %v1023 = vadd.f32 %v932, %v1019
        %v1024 = vadd.f32 %v933, %v1020
        %v1025 = vadd.f32 %v934, %v1021
        %v1026 = vadd.f32 %v935, %v1022
        %1027 = vrot.lane.b32.xlu0 %v302, 125
        %v1028 = vpop.permute.xlu0 %1027
        %1029 = vrot.lane.b32.xlu0 %v304, 125
        %v1030 = vpop.permute.xlu0 %1029
        %1031 = vrot.lane.b32.xlu0 %v303, 125
        %v1032 = vpop.permute.xlu0 %1031
        %1033 = vrot.lane.b32.xlu0 %v305, 125
        %v1034 = vpop.permute.xlu0 %1033
        %vm1035 = vcmp.lt.s32.totalorder %v362, 125
        %v1036 = vsel %vm1035, %v1028, %v1032
        %v1037 = vsel %vm1035, %v1030, %v1034
        %v1038 = vsel %vm1035, %v1032, %v1028
        %v1039 = vsel %vm1035, %v1034, %v1030
        %s1040 = scalar_lea.vmem [#allocation5], 864
        %v1041 = vld [vmem:[%s1040] sm:$0xff]
        %v1042 = vld [vmem:[%s1040 + $0x8] sm:$0xff]
        %v1043 = vld [vmem:[%s1040 + $0x10] sm:$0xff]
        %v1044 = vld [vmem:[%s1040 + $0x18] sm:$0xff]
        %v1045 = vmul.f32 %v1036, %v1041
        %v1046 = vmul.f32 %v1038, %v1042
        %v1047 = vmul.f32 %v1037, %v1043
        %v1048 = vmul.f32 %v1039, %v1044
        %v1049 = vadd.f32 %v958, %v1045
        %v1050 = vadd.f32 %v959, %v1046
        %v1051 = vadd.f32 %v960, %v1047
        %v1052 = vadd.f32 %v961, %v1048
        %1053 = vrot.lane.b32.xlu0 %v302, 115
        %v1054 = vpop.permute.xlu0 %1053
        %1055 = vrot.lane.b32.xlu0 %v304, 115
        %v1056 = vpop.permute.xlu0 %1055
        %1057 = vrot.lane.b32.xlu0 %v303, 115
        %v1058 = vpop.permute.xlu0 %1057
        %1059 = vrot.lane.b32.xlu0 %v305, 115
        %v1060 = vpop.permute.xlu0 %1059
        %vm1061 = vcmp.lt.s32.totalorder %v362, 115
        %v1062 = vsel %vm1061, %v1054, %v1058
        %v1063 = vsel %vm1061, %v1056, %v1060
        %v1064 = vsel %vm1061, %v1058, %v1054
        %v1065 = vsel %vm1061, %v1060, %v1056
        %s1066 = scalar_lea.vmem [#allocation5], 896
        %v1067 = vld [vmem:[%s1066] sm:$0xff]
        %v1068 = vld [vmem:[%s1066 + $0x8] sm:$0xff]
        %v1069 = vld [vmem:[%s1066 + $0x10] sm:$0xff]
        %v1070 = vld [vmem:[%s1066 + $0x18] sm:$0xff]
        %v1071 = vmul.f32 %v1062, %v1067
        %v1072 = vmul.f32 %v1064, %v1068
        %v1073 = vmul.f32 %v1063, %v1069
        %v1074 = vmul.f32 %v1065, %v1070
        %v1075 = vadd.f32 %v971, %v1071
        %v1076 = vadd.f32 %v972, %v1072
        %v1077 = vadd.f32 %v973, %v1073
        %v1078 = vadd.f32 %v974, %v1074
        %1079 = vrot.lane.b32.xlu0 %v302, 114
        %v1080 = vpop.permute.xlu0 %1079
        %1081 = vrot.lane.b32.xlu0 %v304, 114
        %v1082 = vpop.permute.xlu0 %1081
        %1083 = vrot.lane.b32.xlu0 %v303, 114
        %v1084 = vpop.permute.xlu0 %1083
        %1085 = vrot.lane.b32.xlu0 %v305, 114
        %v1086 = vpop.permute.xlu0 %1085
        %vm1087 = vcmp.lt.s32.totalorder %v362, 114
        %v1088 = vsel %vm1087, %v1080, %v1084
        %v1089 = vsel %vm1087, %v1082, %v1086
        %v1090 = vsel %vm1087, %v1084, %v1080
        %v1091 = vsel %vm1087, %v1086, %v1082
        %s1092 = scalar_lea.vmem [#allocation5], 928
        %v1093 = vld [vmem:[%s1092] sm:$0xff]
        %v1094 = vld [vmem:[%s1092 + $0x8] sm:$0xff]
        %v1095 = vld [vmem:[%s1092 + $0x10] sm:$0xff]
        %v1096 = vld [vmem:[%s1092 + $0x18] sm:$0xff]
        %v1097 = vmul.f32 %v1088, %v1093
        %v1098 = vmul.f32 %v1090, %v1094
        %v1099 = vmul.f32 %v1089, %v1095
        %v1100 = vmul.f32 %v1091, %v1096
        %v1101 = vadd.f32 %v997, %v1097
        %v1102 = vadd.f32 %v998, %v1098
        %v1103 = vadd.f32 %v999, %v1099
        %v1104 = vadd.f32 %v1000, %v1100
        %1105 = vrot.lane.b32.xlu0 %v302, 113
        %v1106 = vpop.permute.xlu0 %1105
        %1107 = vrot.lane.b32.xlu0 %v304, 113
        %v1108 = vpop.permute.xlu0 %1107
        %1109 = vrot.lane.b32.xlu0 %v303, 113
        %v1110 = vpop.permute.xlu0 %1109
        %1111 = vrot.lane.b32.xlu0 %v305, 113
        %v1112 = vpop.permute.xlu0 %1111
        %vm1113 = vcmp.lt.s32.totalorder %v362, 113
        %v1114 = vsel %vm1113, %v1106, %v1110
        %v1115 = vsel %vm1113, %v1108, %v1112
        %v1116 = vsel %vm1113, %v1110, %v1106
        %v1117 = vsel %vm1113, %v1112, %v1108
        %s1118 = scalar_lea.vmem [#allocation5], 960
        %v1119 = vld [vmem:[%s1118] sm:$0xff]
        %v1120 = vld [vmem:[%s1118 + $0x8] sm:$0xff]
        %v1121 = vld [vmem:[%s1118 + $0x10] sm:$0xff]
        %v1122 = vld [vmem:[%s1118 + $0x18] sm:$0xff]
        %v1123 = vmul.f32 %v1114, %v1119
        %v1124 = vmul.f32 %v1116, %v1120
        %v1125 = vmul.f32 %v1115, %v1121
        %v1126 = vmul.f32 %v1117, %v1122
        %v1127 = vadd.f32 %v1023, %v1123
        %v1128 = vadd.f32 %v1024, %v1124
        %v1129 = vadd.f32 %v1025, %v1125
        %v1130 = vadd.f32 %v1026, %v1126
        %1131 = vrot.lane.b32.xlu0 %v302, 112
        %v1132 = vpop.permute.xlu0 %1131
        %1133 = vrot.lane.b32.xlu0 %v304, 112
        %v1134 = vpop.permute.xlu0 %1133
        %1135 = vrot.lane.b32.xlu0 %v303, 112
        %v1136 = vpop.permute.xlu0 %1135
        %1137 = vrot.lane.b32.xlu0 %v305, 112
        %v1138 = vpop.permute.xlu0 %1137
        %vm1139 = vcmp.lt.s32.totalorder %v362, 112
        %v1140 = vsel %vm1139, %v1132, %v1136
        %v1141 = vsel %vm1139, %v1134, %v1138
        %v1142 = vsel %vm1139, %v1136, %v1132
        %v1143 = vsel %vm1139, %v1138, %v1134
        %s1144 = scalar_lea.vmem [#allocation5], 992
        %v1145 = vld [vmem:[%s1144] sm:$0xff]
        %v1146 = vld [vmem:[%s1144 + $0x8] sm:$0xff]
        %v1147 = vld [vmem:[%s1144 + $0x10] sm:$0xff]
        %v1148 = vld [vmem:[%s1144 + $0x18] sm:$0xff]
        %v1149 = vmul.f32 %v1140, %v1145
        %v1150 = vmul.f32 %v1142, %v1146
        %v1151 = vmul.f32 %v1141, %v1147
        %v1152 = vmul.f32 %v1143, %v1148
        %v1153 = vadd.f32 %v1049, %v1149
        %v1154 = vadd.f32 %v1050, %v1150
        %v1155 = vadd.f32 %v1051, %v1151
        %v1156 = vadd.f32 %v1052, %v1152
        %1157 = vrot.lane.b32.xlu0 %v302, 111
        %v1158 = vpop.permute.xlu0 %1157
        %1159 = vrot.lane.b32.xlu0 %v304, 111
        %v1160 = vpop.permute.xlu0 %1159
        %1161 = vrot.lane.b32.xlu0 %v303, 111
        %v1162 = vpop.permute.xlu0 %1161
        %1163 = vrot.lane.b32.xlu0 %v305, 111
        %v1164 = vpop.permute.xlu0 %1163
        %vm1165 = vcmp.lt.s32.totalorder %v362, 111
        %v1166 = vsel %vm1165, %v1158, %v1162
        %v1167 = vsel %vm1165, %v1160, %v1164
        %v1168 = vsel %vm1165, %v1162, %v1158
        %v1169 = vsel %vm1165, %v1164, %v1160
        %s1170 = scalar_lea.vmem [#allocation5], 1024
        %v1171 = vld [vmem:[%s1170] sm:$0xff]
        %v1172 = vld [vmem:[%s1170 + $0x8] sm:$0xff]
        %v1173 = vld [vmem:[%s1170 + $0x10] sm:$0xff]
        %v1174 = vld [vmem:[%s1170 + $0x18] sm:$0xff]
        %v1175 = vmul.f32 %v1166, %v1171
        %v1176 = vmul.f32 %v1168, %v1172
        %v1177 = vmul.f32 %v1167, %v1173
        %v1178 = vmul.f32 %v1169, %v1174
        %v1179 = vadd.f32 %v1075, %v1175
        %v1180 = vadd.f32 %v1076, %v1176
        %v1181 = vadd.f32 %v1077, %v1177
        %v1182 = vadd.f32 %v1078, %v1178
        %1183 = vrot.lane.b32.xlu0 %v302, 110
        %v1184 = vpop.permute.xlu0 %1183
        %1185 = vrot.lane.b32.xlu0 %v304, 110
        %v1186 = vpop.permute.xlu0 %1185
        %1187 = vrot.lane.b32.xlu0 %v303, 110
        %v1188 = vpop.permute.xlu0 %1187
        %1189 = vrot.lane.b32.xlu0 %v305, 110
        %v1190 = vpop.permute.xlu0 %1189
        %vm1191 = vcmp.lt.s32.totalorder %v362, 110
        %v1192 = vsel %vm1191, %v1184, %v1188
        %v1193 = vsel %vm1191, %v1186, %v1190
        %v1194 = vsel %vm1191, %v1188, %v1184
        %v1195 = vsel %vm1191, %v1190, %v1186
        %s1196 = scalar_lea.vmem [#allocation5], 1056
        %v1197 = vld [vmem:[%s1196] sm:$0xff]
        %v1198 = vld [vmem:[%s1196 + $0x8] sm:$0xff]
        %v1199 = vld [vmem:[%s1196 + $0x10] sm:$0xff]
        %v1200 = vld [vmem:[%s1196 + $0x18] sm:$0xff]
        %v1201 = vmul.f32 %v1192, %v1197
        %v1202 = vmul.f32 %v1194, %v1198
        %v1203 = vmul.f32 %v1193, %v1199
        %v1204 = vmul.f32 %v1195, %v1200
        %v1205 = vadd.f32 %v1101, %v1201
        %v1206 = vadd.f32 %v1102, %v1202
        %v1207 = vadd.f32 %v1103, %v1203
        %v1208 = vadd.f32 %v1104, %v1204
        %1209 = vrot.lane.b32.xlu0 %v302, 109
        %v1210 = vpop.permute.xlu0 %1209
        %1211 = vrot.lane.b32.xlu0 %v304, 109
        %v1212 = vpop.permute.xlu0 %1211
        %1213 = vrot.lane.b32.xlu0 %v303, 109
        %v1214 = vpop.permute.xlu0 %1213
        %1215 = vrot.lane.b32.xlu0 %v305, 109
        %v1216 = vpop.permute.xlu0 %1215
        %vm1217 = vcmp.lt.s32.totalorder %v362, 109
        %v1218 = vsel %vm1217, %v1210, %v1214
        %v1219 = vsel %vm1217, %v1212, %v1216
        %v1220 = vsel %vm1217, %v1214, %v1210
        %v1221 = vsel %vm1217, %v1216, %v1212
        %s1222 = scalar_lea.vmem [#allocation5], 1088
        %v1223 = vld [vmem:[%s1222] sm:$0xff]
        %v1224 = vld [vmem:[%s1222 + $0x8] sm:$0xff]
        %v1225 = vld [vmem:[%s1222 + $0x10] sm:$0xff]
        %v1226 = vld [vmem:[%s1222 + $0x18] sm:$0xff]
        %v1227 = vmul.f32 %v1218, %v1223
        %v1228 = vmul.f32 %v1220, %v1224
        %v1229 = vmul.f32 %v1219, %v1225
        %v1230 = vmul.f32 %v1221, %v1226
        %v1231 = vadd.f32 %v1127, %v1227
        %v1232 = vadd.f32 %v1128, %v1228
        %v1233 = vadd.f32 %v1129, %v1229
        %v1234 = vadd.f32 %v1130, %v1230
        %1235 = vrot.lane.b32.xlu0 %v302, 99
        %v1236 = vpop.permute.xlu0 %1235
        %1237 = vrot.lane.b32.xlu0 %v304, 99
        %v1238 = vpop.permute.xlu0 %1237
        %1239 = vrot.lane.b32.xlu0 %v303, 99
        %v1240 = vpop.permute.xlu0 %1239
        %1241 = vrot.lane.b32.xlu0 %v305, 99
        %v1242 = vpop.permute.xlu0 %1241
        %vm1243 = vcmp.lt.s32.totalorder %v362, 99
        %v1244 = vsel %vm1243, %v1236, %v1240
        %v1245 = vsel %vm1243, %v1238, %v1242
        %v1246 = vsel %vm1243, %v1240, %v1236
        %v1247 = vsel %vm1243, %v1242, %v1238
        %s1248 = scalar_lea.vmem [#allocation5], 1120
        %v1249 = vld [vmem:[%s1248] sm:$0xff]
        %v1250 = vld [vmem:[%s1248 + $0x8] sm:$0xff]
        %v1251 = vld [vmem:[%s1248 + $0x10] sm:$0xff]
        %v1252 = vld [vmem:[%s1248 + $0x18] sm:$0xff]
        %v1253 = vmul.f32 %v1244, %v1249
        %v1254 = vmul.f32 %v1246, %v1250
        %v1255 = vmul.f32 %v1245, %v1251
        %v1256 = vmul.f32 %v1247, %v1252
        %v1257 = vadd.f32 %v1153, %v1253
        %v1258 = vadd.f32 %v1154, %v1254
        %v1259 = vadd.f32 %v1155, %v1255
        %v1260 = vadd.f32 %v1156, %v1256
        %1261 = vrot.lane.b32.xlu0 %v302, 98
        %v1262 = vpop.permute.xlu0 %1261
        %1263 = vrot.lane.b32.xlu0 %v304, 98
        %v1264 = vpop.permute.xlu0 %1263
        %1265 = vrot.lane.b32.xlu0 %v303, 98
        %v1266 = vpop.permute.xlu0 %1265
        %1267 = vrot.lane.b32.xlu0 %v305, 98
        %v1268 = vpop.permute.xlu0 %1267
        %vm1269 = vcmp.lt.s32.totalorder %v362, 98
        %v1270 = vsel %vm1269, %v1262, %v1266
        %v1271 = vsel %vm1269, %v1264, %v1268
        %v1272 = vsel %vm1269, %v1266, %v1262
        %v1273 = vsel %vm1269, %v1268, %v1264
        %s1274 = scalar_lea.vmem [#allocation5], 1152
        %v1275 = vld [vmem:[%s1274] sm:$0xff]
        %v1276 = vld [vmem:[%s1274 + $0x8] sm:$0xff]
        %v1277 = vld [vmem:[%s1274 + $0x10] sm:$0xff]
        %v1278 = vld [vmem:[%s1274 + $0x18] sm:$0xff]
        %v1279 = vmul.f32 %v1270, %v1275
        %v1280 = vmul.f32 %v1272, %v1276
        %v1281 = vmul.f32 %v1271, %v1277
        %v1282 = vmul.f32 %v1273, %v1278
        %v1283 = vadd.f32 %v1179, %v1279
        %v1284 = vadd.f32 %v1180, %v1280
        %v1285 = vadd.f32 %v1181, %v1281
        %v1286 = vadd.f32 %v1182, %v1282
        %1287 = vrot.lane.b32.xlu0 %v302, 97
        %v1288 = vpop.permute.xlu0 %1287
        %1289 = vrot.lane.b32.xlu0 %v304, 97
        %v1290 = vpop.permute.xlu0 %1289
        %1291 = vrot.lane.b32.xlu0 %v303, 97
        %v1292 = vpop.permute.xlu0 %1291
        %1293 = vrot.lane.b32.xlu0 %v305, 97
        %v1294 = vpop.permute.xlu0 %1293
        %vm1295 = vcmp.lt.s32.totalorder %v362, 97
        %v1296 = vsel %vm1295, %v1288, %v1292
        %v1297 = vsel %vm1295, %v1290, %v1294
        %v1298 = vsel %vm1295, %v1292, %v1288
        %v1299 = vsel %vm1295, %v1294, %v1290
        %s1300 = scalar_lea.vmem [#allocation5], 1184
        %v1301 = vld [vmem:[%s1300] sm:$0xff]
        %v1302 = vld [vmem:[%s1300 + $0x8] sm:$0xff]
        %v1303 = vld [vmem:[%s1300 + $0x10] sm:$0xff]
        %v1304 = vld [vmem:[%s1300 + $0x18] sm:$0xff]
        %v1305 = vmul.f32 %v1296, %v1301
        %v1306 = vmul.f32 %v1298, %v1302
        %v1307 = vmul.f32 %v1297, %v1303
        %v1308 = vmul.f32 %v1299, %v1304
        %v1309 = vadd.f32 %v1205, %v1305
        %v1310 = vadd.f32 %v1206, %v1306
        %v1311 = vadd.f32 %v1207, %v1307
        %v1312 = vadd.f32 %v1208, %v1308
        %1313 = vrot.lane.b32.xlu0 %v302, 96
        %v1314 = vpop.permute.xlu0 %1313
        %1315 = vrot.lane.b32.xlu0 %v304, 96
        %v1316 = vpop.permute.xlu0 %1315
        %1317 = vrot.lane.b32.xlu0 %v303, 96
        %v1318 = vpop.permute.xlu0 %1317
        %1319 = vrot.lane.b32.xlu0 %v305, 96
        %v1320 = vpop.permute.xlu0 %1319
        %vm1321 = vcmp.lt.s32.totalorder %v362, 96
        %v1322 = vsel %vm1321, %v1314, %v1318
        %v1323 = vsel %vm1321, %v1316, %v1320
        %v1324 = vsel %vm1321, %v1318, %v1314
        %v1325 = vsel %vm1321, %v1320, %v1316
        %s1326 = scalar_lea.vmem [#allocation5], 1216
        %v1327 = vld [vmem:[%s1326] sm:$0xff]
        %v1328 = vld [vmem:[%s1326 + $0x8] sm:$0xff]
        %v1329 = vld [vmem:[%s1326 + $0x10] sm:$0xff]
        %v1330 = vld [vmem:[%s1326 + $0x18] sm:$0xff]
        %v1331 = vmul.f32 %v1322, %v1327
        %v1332 = vmul.f32 %v1324, %v1328
        %v1333 = vmul.f32 %v1323, %v1329
        %v1334 = vmul.f32 %v1325, %v1330
        %v1335 = vadd.f32 %v1231, %v1331
        %v1336 = vadd.f32 %v1232, %v1332
        %v1337 = vadd.f32 %v1233, %v1333
        %v1338 = vadd.f32 %v1234, %v1334
        %1339 = vrot.lane.b32.xlu0 %v302, 95
        %v1340 = vpop.permute.xlu0 %1339
        %1341 = vrot.lane.b32.xlu0 %v304, 95
        %v1342 = vpop.permute.xlu0 %1341
        %1343 = vrot.lane.b32.xlu0 %v303, 95
        %v1344 = vpop.permute.xlu0 %1343
        %1345 = vrot.lane.b32.xlu0 %v305, 95
        %v1346 = vpop.permute.xlu0 %1345
        %vm1347 = vcmp.lt.s32.totalorder %v362, 95
        %v1348 = vsel %vm1347, %v1340, %v1344
        %v1349 = vsel %vm1347, %v1342, %v1346
        %v1350 = vsel %vm1347, %v1344, %v1340
        %v1351 = vsel %vm1347, %v1346, %v1342
        %s1352 = scalar_lea.vmem [#allocation5], 1248
        %v1353 = vld [vmem:[%s1352] sm:$0xff]
        %v1354 = vld [vmem:[%s1352 + $0x8] sm:$0xff]
        %v1355 = vld [vmem:[%s1352 + $0x10] sm:$0xff]
        %v1356 = vld [vmem:[%s1352 + $0x18] sm:$0xff]
        %v1357 = vmul.f32 %v1348, %v1353
        %v1358 = vmul.f32 %v1350, %v1354
        %v1359 = vmul.f32 %v1349, %v1355
        %v1360 = vmul.f32 %v1351, %v1356
        %v1361 = vadd.f32 %v1257, %v1357
        %v1362 = vadd.f32 %v1258, %v1358
        %v1363 = vadd.f32 %v1259, %v1359
        %v1364 = vadd.f32 %v1260, %v1360
        %1365 = vrot.lane.b32.xlu0 %v302, 94
        %v1366 = vpop.permute.xlu0 %1365
        %1367 = vrot.lane.b32.xlu0 %v304, 94
        %v1368 = vpop.permute.xlu0 %1367
        %1369 = vrot.lane.b32.xlu0 %v303, 94
        %v1370 = vpop.permute.xlu0 %1369
        %1371 = vrot.lane.b32.xlu0 %v305, 94
        %v1372 = vpop.permute.xlu0 %1371
        %vm1373 = vcmp.lt.s32.totalorder %v362, 94
        %v1374 = vsel %vm1373, %v1366, %v1370
        %v1375 = vsel %vm1373, %v1368, %v1372
        %v1376 = vsel %vm1373, %v1370, %v1366
        %v1377 = vsel %vm1373, %v1372, %v1368
        %s1378 = scalar_lea.vmem [#allocation5], 1280
        %v1379 = vld [vmem:[%s1378] sm:$0xff]
        %v1380 = vld [vmem:[%s1378 + $0x8] sm:$0xff]
        %v1381 = vld [vmem:[%s1378 + $0x10] sm:$0xff]
        %v1382 = vld [vmem:[%s1378 + $0x18] sm:$0xff]
        %v1383 = vmul.f32 %v1374, %v1379
        %v1384 = vmul.f32 %v1376, %v1380
        %v1385 = vmul.f32 %v1375, %v1381
        %v1386 = vmul.f32 %v1377, %v1382
        %v1387 = vadd.f32 %v1283, %v1383
        %v1388 = vadd.f32 %v1284, %v1384
        %v1389 = vadd.f32 %v1285, %v1385
        %v1390 = vadd.f32 %v1286, %v1386
        %1391 = vrot.lane.b32.xlu0 %v302, 93
        %v1392 = vpop.permute.xlu0 %1391
        %1393 = vrot.lane.b32.xlu0 %v304, 93
        %v1394 = vpop.permute.xlu0 %1393
        %1395 = vrot.lane.b32.xlu0 %v303, 93
        %v1396 = vpop.permute.xlu0 %1395
        %1397 = vrot.lane.b32.xlu0 %v305, 93
        %v1398 = vpop.permute.xlu0 %1397
        %vm1399 = vcmp.lt.s32.totalorder %v362, 93
        %v1400 = vsel %vm1399, %v1392, %v1396
        %v1401 = vsel %vm1399, %v1394, %v1398
        %v1402 = vsel %vm1399, %v1396, %v1392
        %v1403 = vsel %vm1399, %v1398, %v1394
        %s1404 = scalar_lea.vmem [#allocation5], 1312
        %v1405 = vld [vmem:[%s1404] sm:$0xff]
        %v1406 = vld [vmem:[%s1404 + $0x8] sm:$0xff]
        %v1407 = vld [vmem:[%s1404 + $0x10] sm:$0xff]
        %v1408 = vld [vmem:[%s1404 + $0x18] sm:$0xff]
        %v1409 = vmul.f32 %v1400, %v1405
        %v1410 = vmul.f32 %v1402, %v1406
        %v1411 = vmul.f32 %v1401, %v1407
        %v1412 = vmul.f32 %v1403, %v1408
        %v1413 = vadd.f32 %v1309, %v1409
        %v1414 = vadd.f32 %v1310, %v1410
        %v1415 = vadd.f32 %v1311, %v1411
        %v1416 = vadd.f32 %v1312, %v1412
        %1417 = vrot.lane.b32.xlu0 %v302, 83
        %v1418 = vpop.permute.xlu0 %1417
        %1419 = vrot.lane.b32.xlu0 %v304, 83
        %v1420 = vpop.permute.xlu0 %1419
        %1421 = vrot.lane.b32.xlu0 %v303, 83
        %v1422 = vpop.permute.xlu0 %1421
        %1423 = vrot.lane.b32.xlu0 %v305, 83
        %v1424 = vpop.permute.xlu0 %1423
        %vm1425 = vcmp.lt.s32.totalorder %v362, 83
        %v1426 = vsel %vm1425, %v1418, %v1422
        %v1427 = vsel %vm1425, %v1420, %v1424
        %v1428 = vsel %vm1425, %v1422, %v1418
        %v1429 = vsel %vm1425, %v1424, %v1420
        %s1430 = scalar_lea.vmem [#allocation5], 1344
        %v1431 = vld [vmem:[%s1430] sm:$0xff]
        %v1432 = vld [vmem:[%s1430 + $0x8] sm:$0xff]
        %v1433 = vld [vmem:[%s1430 + $0x10] sm:$0xff]
        %v1434 = vld [vmem:[%s1430 + $0x18] sm:$0xff]
        %v1435 = vmul.f32 %v1426, %v1431
        %v1436 = vmul.f32 %v1428, %v1432
        %v1437 = vmul.f32 %v1427, %v1433
        %v1438 = vmul.f32 %v1429, %v1434
        %v1439 = vadd.f32 %v1335, %v1435
        %v1440 = vadd.f32 %v1336, %v1436
        %v1441 = vadd.f32 %v1337, %v1437
        %v1442 = vadd.f32 %v1338, %v1438
        %1443 = vrot.lane.b32.xlu0 %v302, 82
        %v1444 = vpop.permute.xlu0 %1443
        %1445 = vrot.lane.b32.xlu0 %v304, 82
        %v1446 = vpop.permute.xlu0 %1445
        %1447 = vrot.lane.b32.xlu0 %v303, 82
        %v1448 = vpop.permute.xlu0 %1447
        %1449 = vrot.lane.b32.xlu0 %v305, 82
        %v1450 = vpop.permute.xlu0 %1449
        %vm1451 = vcmp.lt.s32.totalorder %v362, 82
        %v1452 = vsel %vm1451, %v1444, %v1448
        %v1453 = vsel %vm1451, %v1446, %v1450
        %v1454 = vsel %vm1451, %v1448, %v1444
        %v1455 = vsel %vm1451, %v1450, %v1446
        %s1456 = scalar_lea.vmem [#allocation5], 1376
        %v1457 = vld [vmem:[%s1456] sm:$0xff]
        %v1458 = vld [vmem:[%s1456 + $0x8] sm:$0xff]
        %v1459 = vld [vmem:[%s1456 + $0x10] sm:$0xff]
        %v1460 = vld [vmem:[%s1456 + $0x18] sm:$0xff]
        %v1461 = vmul.f32 %v1452, %v1457
        %v1462 = vmul.f32 %v1454, %v1458
        %v1463 = vmul.f32 %v1453, %v1459
        %v1464 = vmul.f32 %v1455, %v1460
        %v1465 = vadd.f32 %v1361, %v1461
        %v1466 = vadd.f32 %v1362, %v1462
        %v1467 = vadd.f32 %v1363, %v1463
        %v1468 = vadd.f32 %v1364, %v1464
        %1469 = vrot.lane.b32.xlu0 %v302, 81
        %v1470 = vpop.permute.xlu0 %1469
        %1471 = vrot.lane.b32.xlu0 %v304, 81
        %v1472 = vpop.permute.xlu0 %1471
        %1473 = vrot.lane.b32.xlu0 %v303, 81
        %v1474 = vpop.permute.xlu0 %1473
        %1475 = vrot.lane.b32.xlu0 %v305, 81
        %v1476 = vpop.permute.xlu0 %1475
        %vm1477 = vcmp.lt.s32.totalorder %v362, 81
        %v1478 = vsel %vm1477, %v1470, %v1474
        %v1479 = vsel %vm1477, %v1472, %v1476
        %v1480 = vsel %vm1477, %v1474, %v1470
        %v1481 = vsel %vm1477, %v1476, %v1472
        %s1482 = scalar_lea.vmem [#allocation5], 1408
        %v1483 = vld [vmem:[%s1482] sm:$0xff]
        %v1484 = vld [vmem:[%s1482 + $0x8] sm:$0xff]
        %v1485 = vld [vmem:[%s1482 + $0x10] sm:$0xff]
        %v1486 = vld [vmem:[%s1482 + $0x18] sm:$0xff]
        %v1487 = vmul.f32 %v1478, %v1483
        %v1488 = vmul.f32 %v1480, %v1484
        %v1489 = vmul.f32 %v1479, %v1485
        %v1490 = vmul.f32 %v1481, %v1486
        %v1491 = vadd.f32 %v1387, %v1487
        %v1492 = vadd.f32 %v1388, %v1488
        %v1493 = vadd.f32 %v1389, %v1489
        %v1494 = vadd.f32 %v1390, %v1490
        %1495 = vrot.lane.b32.xlu0 %v302, 80
        %v1496 = vpop.permute.xlu0 %1495
        %1497 = vrot.lane.b32.xlu0 %v304, 80
        %v1498 = vpop.permute.xlu0 %1497
        %1499 = vrot.lane.b32.xlu0 %v303, 80
        %v1500 = vpop.permute.xlu0 %1499
        %1501 = vrot.lane.b32.xlu0 %v305, 80
        %v1502 = vpop.permute.xlu0 %1501
        %vm1503 = vcmp.lt.s32.totalorder %v362, 80
        %v1504 = vsel %vm1503, %v1496, %v1500
        %v1505 = vsel %vm1503, %v1498, %v1502
        %v1506 = vsel %vm1503, %v1500, %v1496
        %v1507 = vsel %vm1503, %v1502, %v1498
        %s1508 = scalar_lea.vmem [#allocation5], 1440
        %v1509 = vld [vmem:[%s1508] sm:$0xff]
        %v1510 = vld [vmem:[%s1508 + $0x8] sm:$0xff]
        %v1511 = vld [vmem:[%s1508 + $0x10] sm:$0xff]
        %v1512 = vld [vmem:[%s1508 + $0x18] sm:$0xff]
        %v1513 = vmul.f32 %v1504, %v1509
        %v1514 = vmul.f32 %v1506, %v1510
        %v1515 = vmul.f32 %v1505, %v1511
        %v1516 = vmul.f32 %v1507, %v1512
        %v1517 = vadd.f32 %v1413, %v1513
        %v1518 = vadd.f32 %v1414, %v1514
        %v1519 = vadd.f32 %v1415, %v1515
        %v1520 = vadd.f32 %v1416, %v1516
        %1521 = vrot.lane.b32.xlu0 %v302, 79
        %v1522 = vpop.permute.xlu0 %1521
        %1523 = vrot.lane.b32.xlu0 %v304, 79
        %v1524 = vpop.permute.xlu0 %1523
        %1525 = vrot.lane.b32.xlu0 %v303, 79
        %v1526 = vpop.permute.xlu0 %1525
        %1527 = vrot.lane.b32.xlu0 %v305, 79
        %v1528 = vpop.permute.xlu0 %1527
        %vm1529 = vcmp.lt.s32.totalorder %v362, 79
        %v1530 = vsel %vm1529, %v1522, %v1526
        %v1531 = vsel %vm1529, %v1524, %v1528
        %v1532 = vsel %vm1529, %v1526, %v1522
        %v1533 = vsel %vm1529, %v1528, %v1524
        %s1534 = scalar_lea.vmem [#allocation5], 1472
        %v1535 = vld [vmem:[%s1534] sm:$0xff]
        %v1536 = vld [vmem:[%s1534 + $0x8] sm:$0xff]
        %v1537 = vld [vmem:[%s1534 + $0x10] sm:$0xff]
        %v1538 = vld [vmem:[%s1534 + $0x18] sm:$0xff]
        %v1539 = vmul.f32 %v1530, %v1535
        %v1540 = vmul.f32 %v1532, %v1536
        %v1541 = vmul.f32 %v1531, %v1537
        %v1542 = vmul.f32 %v1533, %v1538
        %v1543 = vadd.f32 %v1439, %v1539
        %v1544 = vadd.f32 %v1440, %v1540
        %v1545 = vadd.f32 %v1441, %v1541
        %v1546 = vadd.f32 %v1442, %v1542
        %1547 = vrot.lane.b32.xlu0 %v302, 78
        %v1548 = vpop.permute.xlu0 %1547
        %1549 = vrot.lane.b32.xlu0 %v304, 78
        %v1550 = vpop.permute.xlu0 %1549
        %1551 = vrot.lane.b32.xlu0 %v303, 78
        %v1552 = vpop.permute.xlu0 %1551
        %1553 = vrot.lane.b32.xlu0 %v305, 78
        %v1554 = vpop.permute.xlu0 %1553
        %vm1555 = vcmp.lt.s32.totalorder %v362, 78
        %v1556 = vsel %vm1555, %v1548, %v1552
        %v1557 = vsel %vm1555, %v1550, %v1554
        %v1558 = vsel %vm1555, %v1552, %v1548
        %v1559 = vsel %vm1555, %v1554, %v1550
        %s1560 = scalar_lea.vmem [#allocation5], 1504
        %v1561 = vld [vmem:[%s1560] sm:$0xff]
        %v1562 = vld [vmem:[%s1560 + $0x8] sm:$0xff]
        %v1563 = vld [vmem:[%s1560 + $0x10] sm:$0xff]
        %v1564 = vld [vmem:[%s1560 + $0x18] sm:$0xff]
        %v1565 = vmul.f32 %v1556, %v1561
        %v1566 = vmul.f32 %v1558, %v1562
        %v1567 = vmul.f32 %v1557, %v1563
        %v1568 = vmul.f32 %v1559, %v1564
        %v1569 = vadd.f32 %v1465, %v1565
        %v1570 = vadd.f32 %v1466, %v1566
        %v1571 = vadd.f32 %v1467, %v1567
        %v1572 = vadd.f32 %v1468, %v1568
        %1573 = vrot.lane.b32.xlu0 %v302, 77
        %v1574 = vpop.permute.xlu0 %1573
        %1575 = vrot.lane.b32.xlu0 %v304, 77
        %v1576 = vpop.permute.xlu0 %1575
        %1577 = vrot.lane.b32.xlu0 %v303, 77
        %v1578 = vpop.permute.xlu0 %1577
        %1579 = vrot.lane.b32.xlu0 %v305, 77
        %v1580 = vpop.permute.xlu0 %1579
        %vm1581 = vcmp.lt.s32.totalorder %v362, 77
        %v1582 = vsel %vm1581, %v1574, %v1578
        %v1583 = vsel %vm1581, %v1576, %v1580
        %v1584 = vsel %vm1581, %v1578, %v1574
        %v1585 = vsel %vm1581, %v1580, %v1576
        %s1586 = scalar_lea.vmem [#allocation5], 1536
        %v1587 = vld [vmem:[%s1586] sm:$0xff]
        %v1588 = vld [vmem:[%s1586 + $0x8] sm:$0xff]
        %v1589 = vld [vmem:[%s1586 + $0x10] sm:$0xff]
        %v1590 = vld [vmem:[%s1586 + $0x18] sm:$0xff]
        %v1591 = vmul.f32 %v1582, %v1587
        %v1592 = vmul.f32 %v1584, %v1588
        %v1593 = vmul.f32 %v1583, %v1589
        %v1594 = vmul.f32 %v1585, %v1590
        %v1595 = vadd.f32 %v1491, %v1591
        %v1596 = vadd.f32 %v1492, %v1592
        %v1597 = vadd.f32 %v1493, %v1593
        %v1598 = vadd.f32 %v1494, %v1594
        %v1599 = vadd.f32 %v1595, %v1517
        %v1600 = vadd.f32 %v1596, %v1518
        %v1601 = vadd.f32 %v1597, %v1519
        %v1602 = vadd.f32 %v1598, %v1520
        %v1603 = vadd.f32 %v1543, %v1569
        %v1604 = vadd.f32 %v1544, %v1570
        %v1605 = vadd.f32 %v1545, %v1571
        %v1606 = vadd.f32 %v1546, %v1572
        %v1607 = vadd.f32 %v1599, %v1603
        %v1608 = vadd.f32 %v1600, %v1604
        %v1609 = vadd.f32 %v1601, %v1605
        %v1610 = vadd.f32 %v1602, %v1606
        %1612 = vset.pattern.permute.xlu0 0
        %1613 = vperm.xlu0 %1612, %v306
        %v1614 = vpop.permute.xlu0 %1613
        %1617 = vset.pattern.permute.xlu0 0
        %1618 = vperm.xlu0 %1617, %v307
        %v1619 = vpop.permute.xlu0 %1618
        %v1621 = vadd.f32 %v1607, %v1614
        %v1622 = vadd.f32 %v1608, %v1614
        %v1623 = vadd.f32 %v1609, %v1619
        %v1624 = vadd.f32 %v1610, %v1619
        %v1625 = vrot.slane %v1621, 4
        %v1626 = vadd.f32 %v1621, %v1625
        %v1627 = vrot.slane %v1626, 2
        %v1628 = vadd.f32 %v1626, %v1627
        %v1629 = vrot.slane %v1628, 1
        %v1630 = vadd.f32 %v1628, %v1629
        %v1631 = vrot.slane %v1622, 4
        %v1632 = vadd.f32 %v1622, %v1631
        %v1633 = vrot.slane %v1632, 2
        %v1634 = vadd.f32 %v1632, %v1633
        %v1635 = vrot.slane %v1634, 1
        %v1636 = vadd.f32 %v1634, %v1635
        %v1637 = vrcp.pop 8.0
        %v1638 = vmul.f32 %v1630, %v1637
        %v1639 = vmul.f32 %v1636, %v1637
        %v1640 = vsub.f32 %v1621, %v1638
        %v1641 = vsub.f32 %v1622, %v1639
        %v1642 = vmul.f32 %v1640, %v1640
        %v1643 = vmul.f32 %v1641, %v1641
        %v1644 = vrot.slane %v1642, 4
        %v1645 = vadd.f32 %v1642, %v1644
        %v1646 = vrot.slane %v1645, 2
        %v1647 = vadd.f32 %v1645, %v1646
        %v1648 = vrot.slane %v1647, 1
        %v1649 = vadd.f32 %v1647, %v1648
        %v1650 = vrot.slane %v1643, 4
        %v1651 = vadd.f32 %v1643, %v1650
        %v1652 = vrot.slane %v1651, 2
        %v1653 = vadd.f32 %v1651, %v1652
        %v1654 = vrot.slane %v1653, 1
        %v1655 = vadd.f32 %v1653, %v1654
        %v1656 = vmul.f32 %v1649, %v1637
        %v1657 = vmul.f32 %v1655, %v1637
        %v1658 = vadd.f32 %v1656, 1e-05
        %v1659 = vadd.f32 %v1657, 1e-05
        %v1660 = vrsqrt.pop %v1658
        %v1661 = vrsqrt.pop %v1659
        %v1662 = vmul.f32 %v1640, %v1660
        %v1663 = vmul.f32 %v1641, %v1661
        %v1664 = vrot.slane %v1623, 4
        %v1665 = vadd.f32 %v1623, %v1664
        %v1666 = vrot.slane %v1665, 2
        %v1667 = vadd.f32 %v1665, %v1666
        %v1668 = vrot.slane %v1667, 1
        %v1669 = vadd.f32 %v1667, %v1668
        %v1670 = vrot.slane %v1624, 4
        %v1671 = vadd.f32 %v1624, %v1670
        %v1672 = vrot.slane %v1671, 2
        %v1673 = vadd.f32 %v1671, %v1672
        %v1674 = vrot.slane %v1673, 1
        %v1675 = vadd.f32 %v1673, %v1674
        %v1676 = vmul.f32 %v1669, %v1637
        %v1677 = vmul.f32 %v1675, %v1637
        %v1678 = vsub.f32 %v1623, %v1676
        %v1679 = vsub.f32 %v1624, %v1677
        %v1680 = vmul.f32 %v1678, %v1678
        %v1681 = vmul.f32 %v1679, %v1679
        %v1682 = vrot.slane %v1680, 4
        %v1683 = vadd.f32 %v1680, %v1682
        %v1684 = vrot.slane %v1683, 2
        %v1685 = vadd.f32 %v1683, %v1684
        %v1686 = vrot.slane %v1685, 1
        %v1687 = vadd.f32 %v1685, %v1686
        %v1688 = vrot.slane %v1681, 4
        %v1689 = vadd.f32 %v1681, %v1688
        %v1690 = vrot.slane %v1689, 2
        %v1691 = vadd.f32 %v1689, %v1690
        %v1692 = vrot.slane %v1691, 1
        %v1693 = vadd.f32 %v1691, %v1692
        %v1694 = vmul.f32 %v1687, %v1637
        %v1695 = vmul.f32 %v1693, %v1637
        %v1696 = vadd.f32 %v1694, 1e-05
        %v1697 = vadd.f32 %v1695, 1e-05
        %v1698 = vrsqrt.pop %v1696
        %v1699 = vrsqrt.pop %v1697
        %v1700 = vmul.f32 %v1678, %v1698
        %v1701 = vmul.f32 %v1679, %v1699
        %1703 = vset.pattern.permute.xlu0 0
        %1704 = vperm.xlu0 %1703, %v309
        %v1705 = vpop.permute.xlu0 %1704
        %1708 = vset.pattern.permute.xlu0 0
        %1709 = vperm.xlu0 %1708, %v310
        %v1710 = vpop.permute.xlu0 %1709
        %v1712 = vmul.f32 %v1662, %v1705
        %v1713 = vmul.f32 %v1663, %v1705
        %v1714 = vmul.f32 %v1700, %v1710
        %v1715 = vmul.f32 %v1701, %v1710
        %1717 = vset.pattern.permute.xlu0 0
        %1718 = vperm.xlu0 %1717, %v312
        %v1719 = vpop.permute.xlu0 %1718
        %1722 = vset.pattern.permute.xlu0 0
        %1723 = vperm.xlu0 %1722, %v313
        %v1724 = vpop.permute.xlu0 %1723
        %v1726 = vadd.f32 %v1712, %v1719
        %v1727 = vadd.f32 %v1713, %v1719
        %v1728 = vadd.f32 %v1714, %v1724
        %v1729 = vadd.f32 %v1715, %v1724
        %1731 = vset.pattern.permute.xlu0 0
        %1732 = vperm.xlu0 %1731, %v317
        %v1733 = vpop.permute.xlu0 %1732
        %1736 = vset.pattern.permute.xlu0 0
        %1737 = vperm.xlu0 %1736, %v318
        %v1738 = vpop.permute.xlu0 %1737
        %1741 = vset.pattern.permute.xlu0 0
        %1742 = vperm.xlu0 %1741, %v319
        %v1743 = vpop.permute.xlu0 %1742
        %1746 = vset.pattern.permute.xlu0 0
        %1747 = vperm.xlu0 %1746, %v320
        %v1748 = vpop.permute.xlu0 %1747
        %1751 = vset.pattern.permute.xlu0 0
        %1752 = vperm.xlu0 %1751, %v321
        %v1753 = vpop.permute.xlu0 %1752
        %1756 = vset.pattern.permute.xlu0 0
        %1757 = vperm.xlu0 %1756, %v322
        %v1758 = vpop.permute.xlu0 %1757
        %1761 = vset.pattern.permute.xlu0 0
        %1762 = vperm.xlu0 %1761, %v323
        %v1763 = vpop.permute.xlu0 %1762
        %1766 = vset.pattern.permute.xlu0 0
        %1767 = vperm.xlu0 %1766, %v324
        %v1768 = vpop.permute.xlu0 %1767
        %vm1770 = vcmask 130048
        %v1772 = vsel %vm1770, %v343, 0
        %v1775 = vsel %vm1770, %v344, 0
        %v1778 = vsel %vm1770, %v345, 0
        %v1781 = vsel %vm1770, %v346, 0
        %v1784 = vsel %vm1770, %v347, 0
        %v1787 = vsel %vm1770, %v348, 0
        %v1790 = vsel %vm1770, %v349, 0
        %v1793 = vsel %vm1770, %v350, 0
        %1795 = vmatprep.subr.mxu0 %v1727
        %1796 = vmatpush1.msra.mxu0 %v1726
        %1797 = vmatprep.subr.mxu0 %v1729
        %1798 = vmatpush1.msra.mxu0 %v1728
        %1799 = vmatprep.subr.mxu0 0.0
        %1800 = vmatpush1.msra.mxu0 0.0
        %1801 = vmatprep.subr.mxu0 0.0
        %1802 = vmatpush1.msra.mxu0 0.0
        %1803 = vmatprep.subr.mxu0 0.0
        %1804 = vmatpush1.msra.mxu0 0.0
        %1805 = vmatprep.subr.mxu0 0.0
        %1806 = vmatpush1.msra.mxu0 0.0
        %1807 = vmatprep.subr.mxu0 0.0
        %1808 = vmatpush1.msra.mxu0 0.0
        %1809 = vmatprep.subr.mxu0 0.0
        %1810 = vmatpush1.msra.mxu0 0.0
        %1811 = vmatprep.subr.mxu0 0.0
        %1812 = vmatpush1.msra.mxu0 0.0
        %1813 = vmatprep.subr.mxu0 0.0
        %1814 = vmatpush1.msra.mxu0 0.0
        %1815 = vmatprep.subr.mxu0 0.0
        %1816 = vmatpush1.msra.mxu0 0.0
        %1817 = vmatprep.subr.mxu0 0.0
        %1818 = vmatpush1.msra.mxu0 0.0
        %1819 = vmatprep.subr.mxu0 0.0
        %1820 = vmatpush1.msra.mxu0 0.0
        %1821 = vmatprep.subr.mxu0 0.0
        %1822 = vmatpush1.msra.mxu0 0.0
        %1823 = vmatprep.subr.mxu0 0.0
        %1824 = vmatpush1.msra.mxu0 0.0
        %1825 = vmatprep.subr.mxu0 0.0
        %1826 = vmatpush1.msra.mxu0 0.0
        %1827 = vmatprep.subr.mxu0 0.0
        %1828 = vmatpush1.msra.mxu0 0.0
        %1829 = vmatprep.subr.mxu0 0.0
        %1830 = vmatpush1.msra.mxu0 0.0
        %1831 = vmatprep.subr.mxu0 0.0
        %1832 = vmatpush1.msra.mxu0 0.0
        %1833 = vmatprep.subr.mxu0 0.0
        %1834 = vmatpush1.msra.mxu0 0.0
        %1835 = vmatprep.subr.mxu0 0.0
        %1836 = vmatpush1.msra.mxu0 0.0
        %1837 = vmatprep.subr.mxu0 0.0
        %1838 = vmatpush1.msra.mxu0 0.0
        %1839 = vmatprep.subr.mxu0 0.0
        %1840 = vmatpush1.msra.mxu0 0.0
        %1841 = vmatprep.subr.mxu0 0.0
        %1842 = vmatpush1.msra.mxu0 0.0
        %1843 = vmatprep.subr.mxu0 0.0
        %1844 = vmatpush1.msra.mxu0 0.0
        %1845 = vmatprep.subr.mxu0 0.0
        %1846 = vmatpush1.msra.mxu0 0.0
        %1847 = vmatprep.subr.mxu0 0.0
        %1848 = vmatpush1.msra.mxu0 0.0
        %1849 = vmatprep.subr.mxu0 0.0
        %1850 = vmatpush1.msra.mxu0 0.0
        %1851 = vmatprep.subr.mxu0 0.0
        %1852 = vmatpush1.msra.mxu0 0.0
        %1853 = vmatprep.subr.mxu0 0.0
        %1854 = vmatpush1.msra.mxu0 0.0
        %1855 = vmatprep.subr.mxu0 0.0
        %1856 = vmatpush1.msra.mxu0 0.0
        %1857 = vmatprep.subr.mxu0 0.0
        %1858 = vmatpush1.msra.mxu0 0.0
        %1859 = vmatprep.mubr.f32.mxu0 0.0
        %1860 = vmatmul.mubr.f32.gmra.mrb[0].mxu0 %v1772
        %v1861 = vpop.f32.mrb[0].mxu0
        %v1862 = vadd.f32 %v1733, %v1861
        %v1863 = vpop.f32.mrb[0].mxu0
        %v1864 = vadd.f32 %v1733, %v1863
        %1865 = vmatprep.mubr.f32.mxu0 0.0
        %1866 = vmatmul.mubr.f32.gmra.mrb[0].mxu0 %v1775
        %v1867 = vpop.f32.mrb[0].mxu0
        %v1868 = vadd.f32 %v1738, %v1867
        %v1869 = vpop.f32.mrb[0].mxu0
        %v1870 = vadd.f32 %v1738, %v1869
        %1871 = vmatprep.mubr.f32.mxu0 0.0
        %1872 = vmatmul.mubr.f32.gmra.mrb[0].mxu0 %v1778
        %v1873 = vpop.f32.mrb[0].mxu0
        %v1874 = vadd.f32 %v1743, %v1873
        %v1875 = vpop.f32.mrb[0].mxu0
        %v1876 = vadd.f32 %v1743, %v1875
        %1877 = vmatprep.mubr.f32.mxu0 0.0
        %1878 = vmatmul.mubr.f32.gmra.mrb[0].mxu0 %v1781
        %v1879 = vpop.f32.mrb[0].mxu0
        %v1880 = vadd.f32 %v1748, %v1879
        %v1881 = vpop.f32.mrb[0].mxu0
        %v1882 = vadd.f32 %v1748, %v1881
        %1883 = vmatprep.mubr.f32.mxu0 0.0
        %1884 = vmatmul.mubr.f32.gmra.mrb[0].mxu0 %v1784
        %v1885 = vpop.f32.mrb[0].mxu0
        %v1886 = vadd.f32 %v1753, %v1885
        %v1887 = vpop.f32.mrb[0].mxu0
        %v1888 = vadd.f32 %v1753, %v1887
        %1889 = vmatprep.mubr.f32.mxu0 0.0
        %1890 = vmatmul.mubr.f32.gmra.mrb[0].mxu0 %v1787
        %v1891 = vpop.f32.mrb[0].mxu0
        %v1892 = vadd.f32 %v1758, %v1891
        %v1893 = vpop.f32.mrb[0].mxu0
        %v1894 = vadd.f32 %v1758, %v1893
        %1895 = vmatprep.mubr.f32.mxu0 0.0
        %1896 = vmatmul.mubr.f32.gmra.mrb[0].mxu0 %v1790
        %v1897 = vpop.f32.mrb[0].mxu0
        %v1898 = vadd.f32 %v1763, %v1897
        %v1899 = vpop.f32.mrb[0].mxu0
        %v1900 = vadd.f32 %v1763, %v1899
        %1901 = vmatprep.mubr.f32.mxu0 0.0
        %1902 = vmatmul.mubr.f32.gmra.mrb[0].mxu0 %v1793
        %v1903 = vpop.f32.mrb[0].mxu0
        %v1904 = vadd.f32 %v1768, %v1903
        %v1905 = vpop.f32.mrb[0].mxu0
        %v1906 = vadd.f32 %v1768, %v1905
        %1907 = vdwg.mxu0
        %v1908 = vmul.f32 %v1862, 0.5
        %v1909 = vmul.f32 %v1864, 0.5
        %v1910 = vmul.f32 %v1868, 0.5
        %v1911 = vmul.f32 %v1870, 0.5
        %v1912 = vmul.f32 %v1874, 0.5
        %v1913 = vmul.f32 %v1876, 0.5
        %v1914 = vmul.f32 %v1880, 0.5
        %v1915 = vmul.f32 %v1882, 0.5
        %v1916 = vmul.f32 %v1886, 0.5
        %v1917 = vmul.f32 %v1888, 0.5
        %v1918 = vmul.f32 %v1892, 0.5
        %v1919 = vmul.f32 %v1894, 0.5
        %v1920 = vmul.f32 %v1898, 0.5
        %v1921 = vmul.f32 %v1900, 0.5
        %v1922 = vmul.f32 %v1904, 0.5
        %v1923 = vmul.f32 %v1906, 0.5
        %v1924 = vmul.f32 %v1862, 0.70710677
        %v1925 = vmul.f32 %v1864, 0.70710677
        %v1926 = vmul.f32 %v1868, 0.70710677
        %v1927 = vmul.f32 %v1870, 0.70710677
        %v1928 = vmul.f32 %v1874, 0.70710677
        %v1929 = vmul.f32 %v1876, 0.70710677
        %v1930 = vmul.f32 %v1880, 0.70710677
        %v1931 = vmul.f32 %v1882, 0.70710677
        %v1932 = vmul.f32 %v1886, 0.70710677
        %v1933 = vmul.f32 %v1888, 0.70710677
        %v1934 = vmul.f32 %v1892, 0.70710677
        %v1935 = vmul.f32 %v1894, 0.70710677
        %v1936 = vmul.f32 %v1898, 0.70710677
        %v1937 = vmul.f32 %v1900, 0.70710677
        %v1938 = vmul.f32 %v1904, 0.70710677
        %v1939 = vmul.f32 %v1906, 0.70710677
        %v1940 = verf.f32.pop %v1924
        %v1941 = verf.f32.pop %v1925
        %v1942 = verf.f32.pop %v1926
        %v1943 = verf.f32.pop %v1927
        %v1944 = verf.f32.pop %v1928
        %v1945 = verf.f32.pop %v1929
        %v1946 = verf.f32.pop %v1930
        %v1947 = verf.f32.pop %v1931
        %v1948 = verf.f32.pop %v1932
        %v1949 = verf.f32.pop %v1933
        %v1950 = verf.f32.pop %v1934
        %v1951 = verf.f32.pop %v1935
        %v1952 = verf.f32.pop %v1936
        %v1953 = verf.f32.pop %v1937
        %v1954 = verf.f32.pop %v1938
        %v1955 = verf.f32.pop %v1939
        %v1956 = vadd.f32 %v1940, 1.0
        %v1957 = vadd.f32 %v1941, 1.0
        %v1958 = vadd.f32 %v1942, 1.0
        %v1959 = vadd.f32 %v1943, 1.0
        %v1960 = vadd.f32 %v1944, 1.0
        %v1961 = vadd.f32 %v1945, 1.0
        %v1962 = vadd.f32 %v1946, 1.0
        %v1963 = vadd.f32 %v1947, 1.0
        %v1964 = vadd.f32 %v1948, 1.0
        %v1965 = vadd.f32 %v1949, 1.0
        %v1966 = vadd.f32 %v1950, 1.0
        %v1967 = vadd.f32 %v1951, 1.0
        %v1968 = vadd.f32 %v1952, 1.0
        %v1969 = vadd.f32 %v1953, 1.0
        %v1970 = vadd.f32 %v1954, 1.0
        %v1971 = vadd.f32 %v1955, 1.0
        %v1972 = vmul.f32 %v1908, %v1956
        %v1973 = vmul.f32 %v1909, %v1957
        %v1974 = vmul.f32 %v1910, %v1958
        %v1975 = vmul.f32 %v1911, %v1959
        %v1976 = vmul.f32 %v1912, %v1960
        %v1977 = vmul.f32 %v1913, %v1961
        %v1978 = vmul.f32 %v1914, %v1962
        %v1979 = vmul.f32 %v1915, %v1963
        %v1980 = vmul.f32 %v1916, %v1964
        %v1981 = vmul.f32 %v1917, %v1965
        %v1982 = vmul.f32 %v1918, %v1966
        %v1983 = vmul.f32 %v1919, %v1967
        %v1984 = vmul.f32 %v1920, %v1968
        %v1985 = vmul.f32 %v1921, %v1969
        %v1986 = vmul.f32 %v1922, %v1970
        %v1987 = vmul.f32 %v1923, %v1971
        %v1988 = vmul.f32 %v1972, %v1972
        %v1989 = vmul.f32 %v1973, %v1973
        %v1990 = vmul.f32 %v1974, %v1974
        %v1991 = vmul.f32 %v1975, %v1975
        %v1992 = vmul.f32 %v1976, %v1976
        %v1993 = vmul.f32 %v1977, %v1977
        %v1994 = vmul.f32 %v1978, %v1978
        %v1995 = vmul.f32 %v1979, %v1979
        %v1996 = vmul.f32 %v1980, %v1980
        %v1997 = vmul.f32 %v1981, %v1981
        %v1998 = vmul.f32 %v1982, %v1982
        %v1999 = vmul.f32 %v1983, %v1983
        %v2000 = vmul.f32 %v1984, %v1984
        %v2001 = vmul.f32 %v1985, %v1985
        %v2002 = vmul.f32 %v1986, %v1986
        %v2003 = vmul.f32 %v1987, %v1987
        %v2004 = vadd.f32 %v1988, %v1989
        %2005 = vadd.xlane.f32.xlu0 %v2004
        %v2006 = vpop.xlane.xlu0 %2005
        %v2007 = vadd.f32 %v1990, %v1991
        %2008 = vadd.xlane.f32.xlu0 %v2007
        %v2009 = vpop.xlane.xlu0 %2008
        %v2010 = vadd.f32 %v1992, %v1993
        %2011 = vadd.xlane.f32.xlu0 %v2010
        %v2012 = vpop.xlane.xlu0 %2011
        %v2013 = vadd.f32 %v1994, %v1995
        %2014 = vadd.xlane.f32.xlu0 %v2013
        %v2015 = vpop.xlane.xlu0 %2014
        %v2016 = vadd.f32 %v1996, %v1997
        %2017 = vadd.xlane.f32.xlu0 %v2016
        %v2018 = vpop.xlane.xlu0 %2017
        %v2019 = vadd.f32 %v1998, %v1999
        %2020 = vadd.xlane.f32.xlu0 %v2019
        %v2021 = vpop.xlane.xlu0 %2020
        %v2022 = vadd.f32 %v2000, %v2001
        %2023 = vadd.xlane.f32.xlu0 %v2022
        %v2024 = vpop.xlane.xlu0 %2023
        %v2025 = vadd.f32 %v2002, %v2003
        %2026 = vadd.xlane.f32.xlu0 %v2025
        %v2027 = vpop.xlane.xlu0 %2026
        %v2028 = vrsqrt.pop %v2006
        %v2029 = vmul.f32 %v2006, %v2028
        %vm2030 = vcmp.eq.f32.partialorder %v2006, inf
        %v2031 = vsel %vm2030, %v2006, %v2029
        %vm2032 = vcmp.eq.f32.partialorder %v2006, 0.0
        %v2033 = vand.u32 %v2006, 2147483648
        %v2034 = vsel %vm2032, %v2033, %v2031
        %v2035 = vrsqrt.pop %v2009
        %v2036 = vmul.f32 %v2009, %v2035
        %vm2037 = vcmp.eq.f32.partialorder %v2009, inf
        %v2038 = vsel %vm2037, %v2009, %v2036
        %vm2039 = vcmp.eq.f32.partialorder %v2009, 0.0
        %v2040 = vand.u32 %v2009, 2147483648
        %v2041 = vsel %vm2039, %v2040, %v2038
        %v2042 = vrsqrt.pop %v2012
        %v2043 = vmul.f32 %v2012, %v2042
        %vm2044 = vcmp.eq.f32.partialorder %v2012, inf
        %v2045 = vsel %vm2044, %v2012, %v2043
        %vm2046 = vcmp.eq.f32.partialorder %v2012, 0.0
        %v2047 = vand.u32 %v2012, 2147483648
        %v2048 = vsel %vm2046, %v2047, %v2045
        %v2049 = vrsqrt.pop %v2015
        %v2050 = vmul.f32 %v2015, %v2049
        %vm2051 = vcmp.eq.f32.partialorder %v2015, inf
        %v2052 = vsel %vm2051, %v2015, %v2050
        %vm2053 = vcmp.eq.f32.partialorder %v2015, 0.0
        %v2054 = vand.u32 %v2015, 2147483648
        %v2055 = vsel %vm2053, %v2054, %v2052
        %v2056 = vrsqrt.pop %v2018
        %v2057 = vmul.f32 %v2018, %v2056
        %vm2058 = vcmp.eq.f32.partialorder %v2018, inf
        %v2059 = vsel %vm2058, %v2018, %v2057
        %vm2060 = vcmp.eq.f32.partialorder %v2018, 0.0
        %v2061 = vand.u32 %v2018, 2147483648
        %v2062 = vsel %vm2060, %v2061, %v2059
        %v2063 = vrsqrt.pop %v2021
        %v2064 = vmul.f32 %v2021, %v2063
        %vm2065 = vcmp.eq.f32.partialorder %v2021, inf
        %v2066 = vsel %vm2065, %v2021, %v2064
        %vm2067 = vcmp.eq.f32.partialorder %v2021, 0.0
        %v2068 = vand.u32 %v2021, 2147483648
        %v2069 = vsel %vm2067, %v2068, %v2066
        %v2070 = vrsqrt.pop %v2024
        %v2071 = vmul.f32 %v2024, %v2070
        %vm2072 = vcmp.eq.f32.partialorder %v2024, inf
        %v2073 = vsel %vm2072, %v2024, %v2071
        %vm2074 = vcmp.eq.f32.partialorder %v2024, 0.0
        %v2075 = vand.u32 %v2024, 2147483648
        %v2076 = vsel %vm2074, %v2075, %v2073
        %v2077 = vrsqrt.pop %v2027
        %v2078 = vmul.f32 %v2027, %v2077
        %vm2079 = vcmp.eq.f32.partialorder %v2027, inf
        %v2080 = vsel %vm2079, %v2027, %v2078
        %vm2081 = vcmp.eq.f32.partialorder %v2027, 0.0
        %v2082 = vand.u32 %v2027, 2147483648
        %v2083 = vsel %vm2081, %v2082, %v2080
        %v2084 = vadd.f32 %v2034, %v2041
        %v2085 = vadd.f32 %v2084, %v2048
        %v2086 = vadd.f32 %v2085, %v2055
        %v2087 = vrot.slane %v2086, 4
        %v2088 = vadd.f32 %v2086, %v2087
        %v2089 = vrot.slane %v2088, 2
        %v2090 = vadd.f32 %v2088, %v2089
        %v2091 = vrot.slane %v2090, 1
        %v2092 = vadd.f32 %v2090, %v2091
        %v2093 = vrcp.pop 32.0
        %v2094 = vmul.f32 %v2092, %v2093
        %v2095 = vadd.f32 %v2062, %v2069
        %v2096 = vadd.f32 %v2095, %v2076
        %v2097 = vadd.f32 %v2096, %v2083
        %v2098 = vrot.slane %v2097, 4
        %v2099 = vadd.f32 %v2097, %v2098
        %v2100 = vrot.slane %v2099, 2
        %v2101 = vadd.f32 %v2099, %v2100
        %v2102 = vrot.slane %v2101, 1
        %v2103 = vadd.f32 %v2101, %v2102
        %v2104 = vmul.f32 %v2103, %v2093
        %v2105 = vadd.f32 %v2094, 1e-06
        %v2106 = vadd.f32 %v2104, 1e-06
        %v2107 = vrcp.pop %v2105
        %v2108 = vmul.f32 %v2034, %v2107
        %v2109 = vmul.f32 %v2041, %v2107
        %v2110 = vmul.f32 %v2048, %v2107
        %v2111 = vmul.f32 %v2055, %v2107
        %v2112 = vrcp.pop %v2106
        %v2113 = vmul.f32 %v2062, %v2112
        %v2114 = vmul.f32 %v2069, %v2112
        %v2115 = vmul.f32 %v2076, %v2112
        %v2116 = vmul.f32 %v2083, %v2112
        %2118 = vset.pattern.permute.xlu0 0
        %2119 = vperm.xlu0 %2118, %v2108
        %v2120 = vpop.permute.xlu0 %2119
        %2123 = vset.pattern.permute.xlu0 0
        %2124 = vperm.xlu0 %2123, %v2109
        %v2125 = vpop.permute.xlu0 %2124
        %2128 = vset.pattern.permute.xlu0 0
        %2129 = vperm.xlu0 %2128, %v2110
        %v2130 = vpop.permute.xlu0 %2129
        %2133 = vset.pattern.permute.xlu0 0
        %2134 = vperm.xlu0 %2133, %v2111
        %v2135 = vpop.permute.xlu0 %2134
        %2138 = vset.pattern.permute.xlu0 0
        %2139 = vperm.xlu0 %2138, %v2113
        %v2140 = vpop.permute.xlu0 %2139
        %2143 = vset.pattern.permute.xlu0 0
        %2144 = vperm.xlu0 %2143, %v2114
        %v2145 = vpop.permute.xlu0 %2144
        %2148 = vset.pattern.permute.xlu0 0
        %2149 = vperm.xlu0 %2148, %v2115
        %v2150 = vpop.permute.xlu0 %2149
        %2153 = vset.pattern.permute.xlu0 0
        %2154 = vperm.xlu0 %2153, %v2116
        %v2155 = vpop.permute.xlu0 %2154
        %v2157 = vmul.f32 %v1972, %v2120
        %v2158 = vmul.f32 %v1973, %v2120
        %v2159 = vmul.f32 %v1974, %v2125
        %v2160 = vmul.f32 %v1975, %v2125
        %v2161 = vmul.f32 %v1976, %v2130
        %v2162 = vmul.f32 %v1977, %v2130
        %v2163 = vmul.f32 %v1978, %v2135
        %v2164 = vmul.f32 %v1979, %v2135
        %v2165 = vmul.f32 %v1980, %v2140
        %v2166 = vmul.f32 %v1981, %v2140
        %v2167 = vmul.f32 %v1982, %v2145
        %v2168 = vmul.f32 %v1983, %v2145
        %v2169 = vmul.f32 %v1984, %v2150
        %v2170 = vmul.f32 %v1985, %v2150
        %v2171 = vmul.f32 %v1986, %v2155
        %v2172 = vmul.f32 %v1987, %v2155
        %2174 = vset.pattern.permute.xlu0 0
        %2175 = vperm.xlu0 %2174, %v326
        %v2176 = vpop.permute.xlu0 %2175
        %2179 = vset.pattern.permute.xlu0 0
        %2180 = vperm.xlu0 %2179, %v327
        %v2181 = vpop.permute.xlu0 %2180
        %2184 = vset.pattern.permute.xlu0 0
        %2185 = vperm.xlu0 %2184, %v328
        %v2186 = vpop.permute.xlu0 %2185
        %2189 = vset.pattern.permute.xlu0 0
        %2190 = vperm.xlu0 %2189, %v329
        %v2191 = vpop.permute.xlu0 %2190
        %2194 = vset.pattern.permute.xlu0 0
        %2195 = vperm.xlu0 %2194, %v330
        %v2196 = vpop.permute.xlu0 %2195
        %2199 = vset.pattern.permute.xlu0 0
        %2200 = vperm.xlu0 %2199, %v331
        %v2201 = vpop.permute.xlu0 %2200
        %2204 = vset.pattern.permute.xlu0 0
        %2205 = vperm.xlu0 %2204, %v332
        %v2206 = vpop.permute.xlu0 %2205
        %2209 = vset.pattern.permute.xlu0 0
        %2210 = vperm.xlu0 %2209, %v333
        %v2211 = vpop.permute.xlu0 %2210
        %v2213 = vmul.f32 %v2176, %v2157
        %v2214 = vmul.f32 %v2176, %v2158
        %v2215 = vmul.f32 %v2181, %v2159
        %v2216 = vmul.f32 %v2181, %v2160
        %v2217 = vmul.f32 %v2186, %v2161
        %v2218 = vmul.f32 %v2186, %v2162
        %v2219 = vmul.f32 %v2191, %v2163
        %v2220 = vmul.f32 %v2191, %v2164
        %v2221 = vmul.f32 %v2196, %v2165
        %v2222 = vmul.f32 %v2196, %v2166
        %v2223 = vmul.f32 %v2201, %v2167
        %v2224 = vmul.f32 %v2201, %v2168
        %v2225 = vmul.f32 %v2206, %v2169
        %v2226 = vmul.f32 %v2206, %v2170
        %v2227 = vmul.f32 %v2211, %v2171
        %v2228 = vmul.f32 %v2211, %v2172
        %2230 = vset.pattern.permute.xlu0 0
        %2231 = vperm.xlu0 %2230, %v335
        %v2232 = vpop.permute.xlu0 %2231
        %2235 = vset.pattern.permute.xlu0 0
        %2236 = vperm.xlu0 %2235, %v336
        %v2237 = vpop.permute.xlu0 %2236
        %2240 = vset.pattern.permute.xlu0 0
        %2241 = vperm.xlu0 %2240, %v337
        %v2242 = vpop.permute.xlu0 %2241
        %2245 = vset.pattern.permute.xlu0 0
        %2246 = vperm.xlu0 %2245, %v338
        %v2247 = vpop.permute.xlu0 %2246
        %2250 = vset.pattern.permute.xlu0 0
        %2251 = vperm.xlu0 %2250, %v339
        %v2252 = vpop.permute.xlu0 %2251
        %2255 = vset.pattern.permute.xlu0 0
        %2256 = vperm.xlu0 %2255, %v340
        %v2257 = vpop.permute.xlu0 %2256
        %2260 = vset.pattern.permute.xlu0 0
        %2261 = vperm.xlu0 %2260, %v341
        %v2262 = vpop.permute.xlu0 %2261
        %2265 = vset.pattern.permute.xlu0 0
        %2266 = vperm.xlu0 %2265, %v342
        %v2267 = vpop.permute.xlu0 %2266
        %v2269 = vadd.f32 %v2213, %v2232
        %v2270 = vadd.f32 %v2214, %v2232
        %v2271 = vadd.f32 %v2215, %v2237
        %v2272 = vadd.f32 %v2216, %v2237
        %v2273 = vadd.f32 %v2217, %v2242
        %v2274 = vadd.f32 %v2218, %v2242
        %v2275 = vadd.f32 %v2219, %v2247
        %v2276 = vadd.f32 %v2220, %v2247
        %v2277 = vadd.f32 %v2221, %v2252
        %v2278 = vadd.f32 %v2222, %v2252
        %v2279 = vadd.f32 %v2223, %v2257
        %v2280 = vadd.f32 %v2224, %v2257
        %v2281 = vadd.f32 %v2225, %v2262
        %v2282 = vadd.f32 %v2226, %v2262
        %v2283 = vadd.f32 %v2227, %v2267
        %v2284 = vadd.f32 %v2228, %v2267
        %v2285 = vadd.f32 %v2269, %v1972
        %v2286 = vadd.f32 %v2270, %v1973
        %v2287 = vadd.f32 %v2271, %v1974
        %v2288 = vadd.f32 %v2272, %v1975
        %v2289 = vadd.f32 %v2273, %v1976
        %v2290 = vadd.f32 %v2274, %v1977
        %v2291 = vadd.f32 %v2275, %v1978
        %v2292 = vadd.f32 %v2276, %v1979
        %v2293 = vadd.f32 %v2277, %v1980
        %v2294 = vadd.f32 %v2278, %v1981
        %v2295 = vadd.f32 %v2279, %v1982
        %v2296 = vadd.f32 %v2280, %v1983
        %v2297 = vadd.f32 %v2281, %v1984
        %v2298 = vadd.f32 %v2282, %v1985
        %v2299 = vadd.f32 %v2283, %v1986
        %v2300 = vadd.f32 %v2284, %v1987
        %2302 = vset.pattern.permute.xlu0 0
        %2303 = vperm.xlu0 %2302, %v315
        %v2304 = vpop.permute.xlu0 %2303
        %2307 = vset.pattern.permute.xlu0 0
        %2308 = vperm.xlu0 %2307, %v316
        %v2309 = vpop.permute.xlu0 %2308
        %vm2311 = vcmask 523264
        %v2313 = vsel %vm2311, %v351, 0
        %v2316 = vsel %vm2311, %v352, 0
        %2318 = vmatprep.subr.mxu0 %v2286
        %2319 = vmatpush1.msra.mxu0 %v2285
        %2320 = vmatprep.subr.mxu0 %v2288
        %2321 = vmatpush1.msra.mxu0 %v2287
        %2322 = vmatprep.subr.mxu0 %v2290
        %2323 = vmatpush1.msra.mxu0 %v2289
        %2324 = vmatprep.subr.mxu0 %v2292
        %2325 = vmatpush1.msra.mxu0 %v2291
        %2326 = vmatprep.subr.mxu0 %v2294
        %2327 = vmatpush1.msra.mxu0 %v2293
        %2328 = vmatprep.subr.mxu0 %v2296
        %2329 = vmatpush1.msra.mxu0 %v2295
        %2330 = vmatprep.subr.mxu0 %v2298
        %2331 = vmatpush1.msra.mxu0 %v2297
        %2332 = vmatprep.subr.mxu0 %v2300
        %2333 = vmatpush1.msra.mxu0 %v2299
        %2334 = vmatprep.subr.mxu0 0.0
        %2335 = vmatpush1.msra.mxu0 0.0
        %2336 = vmatprep.subr.mxu0 0.0
        %2337 = vmatpush1.msra.mxu0 0.0
        %2338 = vmatprep.subr.mxu0 0.0
        %2339 = vmatpush1.msra.mxu0 0.0
        %2340 = vmatprep.subr.mxu0 0.0
        %2341 = vmatpush1.msra.mxu0 0.0
        %2342 = vmatprep.subr.mxu0 0.0
        %2343 = vmatpush1.msra.mxu0 0.0
        %2344 = vmatprep.subr.mxu0 0.0
        %2345 = vmatpush1.msra.mxu0 0.0
        %2346 = vmatprep.subr.mxu0 0.0
        %2347 = vmatpush1.msra.mxu0 0.0
        %2348 = vmatprep.subr.mxu0 0.0
        %2349 = vmatpush1.msra.mxu0 0.0
        %2350 = vmatprep.subr.mxu0 0.0
        %2351 = vmatpush1.msra.mxu0 0.0
        %2352 = vmatprep.subr.mxu0 0.0
        %2353 = vmatpush1.msra.mxu0 0.0
        %2354 = vmatprep.subr.mxu0 0.0
        %2355 = vmatpush1.msra.mxu0 0.0
        %2356 = vmatprep.subr.mxu0 0.0
        %2357 = vmatpush1.msra.mxu0 0.0
        %2358 = vmatprep.subr.mxu0 0.0
        %2359 = vmatpush1.msra.mxu0 0.0
        %2360 = vmatprep.subr.mxu0 0.0
        %2361 = vmatpush1.msra.mxu0 0.0
        %2362 = vmatprep.subr.mxu0 0.0
        %2363 = vmatpush1.msra.mxu0 0.0
        %2364 = vmatprep.subr.mxu0 0.0
        %2365 = vmatpush1.msra.mxu0 0.0
        %2366 = vmatprep.subr.mxu0 0.0
        %2367 = vmatpush1.msra.mxu0 0.0
        %2368 = vmatprep.subr.mxu0 0.0
        %2369 = vmatpush1.msra.mxu0 0.0
        %2370 = vmatprep.subr.mxu0 0.0
        %2371 = vmatpush1.msra.mxu0 0.0
        %2372 = vmatprep.subr.mxu0 0.0
        %2373 = vmatpush1.msra.mxu0 0.0
        %2374 = vmatprep.subr.mxu0 0.0
        %2375 = vmatpush1.msra.mxu0 0.0
        %2376 = vmatprep.subr.mxu0 0.0
        %2377 = vmatpush1.msra.mxu0 0.0
        %2378 = vmatprep.subr.mxu0 0.0
        %2379 = vmatpush1.msra.mxu0 0.0
        %2380 = vmatprep.subr.mxu0 0.0
        %2381 = vmatpush1.msra.mxu0 0.0
        %2382 = vmatprep.mubr.f32.mxu0 0.0
        %2383 = vmatmul.mubr.f32.gmra.mrb[0].mxu0 %v2313
        %v2384 = vpop.f32.mrb[0].mxu0
        %v2385 = vadd.f32 %v2304, %v2384
        %v2386 = vpop.f32.mrb[0].mxu0
        %v2387 = vadd.f32 %v2304, %v2386
        %2388 = vmatprep.mubr.f32.mxu0 0.0
        %2389 = vmatmul.mubr.f32.gmra.mrb[0].mxu0 %v2316
        %v2390 = vpop.f32.mrb[0].mxu0
        %v2391 = vadd.f32 %v2309, %v2390
        %v2392 = vpop.f32.mrb[0].mxu0
        %v2393 = vadd.f32 %v2309, %v2392
        %2394 = vdwg.mxu0
        %v2395 = vadd.f32 %v2385, %v302
        %v2396 = vadd.f32 %v2387, %v303
        %v2397 = vadd.f32 %v2391, %v304
        %v2398 = vadd.f32 %v2393, %v305
        %s2399 = scalar_lea.vmem %s2, 64
        %v2400 = vld [vmem:[%s2399] sm:$0xff]
        %v2401 = vld [vmem:[%s2399 + $0x8] sm:$0xff]
        %s2402 = scalar_lea.vmem %s2, 80
        %v2403 = vld [vmem:[%s2402] sm:$0xff]
        %v2404 = vld [vmem:[%s2402 + $0x8] sm:$0xff]
        %s2405 = scalar_lea.vmem %s2, 96
        %v2406 = vld [vmem:[%s2405] sm:$0xff]
        %v2407 = vld [vmem:[%s2405 + $0x8] sm:$0xff]
        %s2408 = scalar_lea.vmem %s2, 112
        %v2409 = vld [vmem:[%s2408] sm:$0xff]
        %v2410 = vld [vmem:[%s2408 + $0x8] sm:$0xff]
        %s2411 = scalar_lea.vmem %s3, 192
        %v2412 = vld [vmem:[%s2411] sm:$0xff]
        %v2413 = vld [vmem:[%s2411 + $0x8] sm:$0xff]
        %v2414 = vld [vmem:[%s2411 + $0x10] sm:$0xff]
        %v2415 = vld [vmem:[%s2411 + $0x18] sm:$0xff]
        %v2416 = vld [vmem:[%s2411 + $0x20] sm:$0xff]
        %v2417 = vld [vmem:[%s2411 + $0x28] sm:$0xff]
        %v2418 = vld [vmem:[%s2411 + $0x30] sm:$0xff]
        %v2419 = vld [vmem:[%s2411 + $0x38] sm:$0xff]
        %s2420 = scalar_lea.vmem %s3, 256
        %v2421 = vld [vmem:[%s2420] sm:$0xff]
        %v2422 = vld [vmem:[%s2420 + $0x8] sm:$0xff]
        %v2423 = vld [vmem:[%s2420 + $0x10] sm:$0xff]
        %v2424 = vld [vmem:[%s2420 + $0x18] sm:$0xff]
        %v2425 = vld [vmem:[%s2420 + $0x20] sm:$0xff]
        %v2426 = vld [vmem:[%s2420 + $0x28] sm:$0xff]
        %v2427 = vld [vmem:[%s2420 + $0x30] sm:$0xff]
        %v2428 = vld [vmem:[%s2420 + $0x38] sm:$0xff]
        %s2429 = scalar_lea.vmem %s3, 320
        %v2430 = vld [vmem:[%s2429] sm:$0xff]
        %v2431 = vld [vmem:[%s2429 + $0x8] sm:$0xff]
        %v2432 = vld [vmem:[%s2429 + $0x10] sm:$0xff]
        %v2433 = vld [vmem:[%s2429 + $0x18] sm:$0xff]
        %v2434 = vld [vmem:[%s2429 + $0x20] sm:$0xff]
        %v2435 = vld [vmem:[%s2429 + $0x28] sm:$0xff]
        %v2436 = vld [vmem:[%s2429 + $0x30] sm:$0xff]
        %v2437 = vld [vmem:[%s2429 + $0x38] sm:$0xff]
        %s2438 = scalar_lea.vmem %s4, 64
        %v2439 = vld [vmem:[%s2438] sm:$0xff]
        %v2440 = vld [vmem:[%s2438 + $0x8] sm:$0xff]
        %v2441 = vld [vmem:[%s2438 + $0x10] sm:$0xff]
        %v2442 = vld [vmem:[%s2438 + $0x18] sm:$0xff]
        %v2443 = vld [vmem:[%s2438 + $0x20] sm:$0xff]
        %v2444 = vld [vmem:[%s2438 + $0x28] sm:$0xff]
        %v2445 = vld [vmem:[%s2438 + $0x30] sm:$0xff]
        %v2446 = vld [vmem:[%s2438 + $0x38] sm:$0xff]
        %s2447 = scalar_lea.vmem [#allocation7], 16
        %v2448 = vld [vmem:[%s2447] sm:$0xff]
        %v2449 = vld [vmem:[%s2447 + $0x8] sm:$0xff]
        %2450 = vrot.lane.b32.xlu0 %v2395, 51
        %v2451 = vpop.permute.xlu0 %2450
        %2452 = vrot.lane.b32.xlu0 %v2397, 51
        %v2453 = vpop.permute.xlu0 %2452
        %2454 = vrot.lane.b32.xlu0 %v2396, 51
        %v2455 = vpop.permute.xlu0 %2454
        %2456 = vrot.lane.b32.xlu0 %v2398, 51
        %v2457 = vpop.permute.xlu0 %2456
        %v2458 = vsel %vm363, %v2451, %v2455
        %v2459 = vsel %vm363, %v2453, %v2457
        %v2460 = vsel %vm363, %v2455, %v2451
        %v2461 = vsel %vm363, %v2457, %v2453
        %s2462 = scalar_lea.vmem [#allocation5], 1568
        %v2463 = vld [vmem:[%s2462] sm:$0xff]
        %v2464 = vld [vmem:[%s2462 + $0x8] sm:$0xff]
        %v2465 = vld [vmem:[%s2462 + $0x10] sm:$0xff]
        %v2466 = vld [vmem:[%s2462 + $0x18] sm:$0xff]
        %v2467 = vmul.f32 %v2460, %v2463
        %v2468 = vmul.f32 %v2458, %v2464
        %v2469 = vmul.f32 %v2461, %v2465
        %v2470 = vmul.f32 %v2459, %v2466
        %2471 = vrot.lane.b32.xlu0 %v2395, 50
        %v2472 = vpop.permute.xlu0 %2471
        %2473 = vrot.lane.b32.xlu0 %v2397, 50
        %v2474 = vpop.permute.xlu0 %2473
        %2475 = vrot.lane.b32.xlu0 %v2396, 50
        %v2476 = vpop.permute.xlu0 %2475
        %2477 = vrot.lane.b32.xlu0 %v2398, 50
        %v2478 = vpop.permute.xlu0 %2477
        %v2479 = vsel %vm384, %v2472, %v2476
        %v2480 = vsel %vm384, %v2474, %v2478
        %v2481 = vsel %vm384, %v2476, %v2472
        %v2482 = vsel %vm384, %v2478, %v2474
        %s2483 = scalar_lea.vmem [#allocation5], 1600
        %v2484 = vld [vmem:[%s2483] sm:$0xff]
        %v2485 = vld [vmem:[%s2483 + $0x8] sm:$0xff]
        %v2486 = vld [vmem:[%s2483 + $0x10] sm:$0xff]
        %v2487 = vld [vmem:[%s2483 + $0x18] sm:$0xff]
        %v2488 = vmul.f32 %v2481, %v2484
        %v2489 = vmul.f32 %v2479, %v2485
        %v2490 = vmul.f32 %v2482, %v2486
        %v2491 = vmul.f32 %v2480, %v2487
        %2492 = vrot.lane.b32.xlu0 %v2395, 49
        %v2493 = vpop.permute.xlu0 %2492
        %2494 = vrot.lane.b32.xlu0 %v2397, 49
        %v2495 = vpop.permute.xlu0 %2494
        %2496 = vrot.lane.b32.xlu0 %v2396, 49
        %v2497 = vpop.permute.xlu0 %2496
        %2498 = vrot.lane.b32.xlu0 %v2398, 49
        %v2499 = vpop.permute.xlu0 %2498
        %v2500 = vsel %vm406, %v2493, %v2497
        %v2501 = vsel %vm406, %v2495, %v2499
        %v2502 = vsel %vm406, %v2497, %v2493
        %v2503 = vsel %vm406, %v2499, %v2495
        %s2504 = scalar_lea.vmem [#allocation5], 1632
        %v2505 = vld [vmem:[%s2504] sm:$0xff]
        %v2506 = vld [vmem:[%s2504 + $0x8] sm:$0xff]
        %v2507 = vld [vmem:[%s2504 + $0x10] sm:$0xff]
        %v2508 = vld [vmem:[%s2504 + $0x18] sm:$0xff]
        %v2509 = vmul.f32 %v2502, %v2505
        %v2510 = vmul.f32 %v2500, %v2506
        %v2511 = vmul.f32 %v2503, %v2507
        %v2512 = vmul.f32 %v2501, %v2508
        %2513 = vrot.lane.b32.xlu0 %v2395, 48
        %v2514 = vpop.permute.xlu0 %2513
        %2515 = vrot.lane.b32.xlu0 %v2397, 48
        %v2516 = vpop.permute.xlu0 %2515
        %2517 = vrot.lane.b32.xlu0 %v2396, 48
        %v2518 = vpop.permute.xlu0 %2517
        %2519 = vrot.lane.b32.xlu0 %v2398, 48
        %v2520 = vpop.permute.xlu0 %2519
        %v2521 = vsel %vm428, %v2514, %v2518
        %v2522 = vsel %vm428, %v2516, %v2520
        %v2523 = vsel %vm428, %v2518, %v2514
        %v2524 = vsel %vm428, %v2520, %v2516
        %s2525 = scalar_lea.vmem [#allocation5], 1664
        %v2526 = vld [vmem:[%s2525] sm:$0xff]
        %v2527 = vld [vmem:[%s2525 + $0x8] sm:$0xff]
        %v2528 = vld [vmem:[%s2525 + $0x10] sm:$0xff]
        %v2529 = vld [vmem:[%s2525 + $0x18] sm:$0xff]
        %v2530 = vmul.f32 %v2523, %v2526
        %v2531 = vmul.f32 %v2521, %v2527
        %v2532 = vmul.f32 %v2524, %v2528
        %v2533 = vmul.f32 %v2522, %v2529
        %2534 = vrot.lane.b32.xlu0 %v2395, 47
        %v2535 = vpop.permute.xlu0 %2534
        %2536 = vrot.lane.b32.xlu0 %v2397, 47
        %v2537 = vpop.permute.xlu0 %2536
        %2538 = vrot.lane.b32.xlu0 %v2396, 47
        %v2539 = vpop.permute.xlu0 %2538
        %2540 = vrot.lane.b32.xlu0 %v2398, 47
        %v2541 = vpop.permute.xlu0 %2540
        %v2542 = vsel %vm450, %v2535, %v2539
        %v2543 = vsel %vm450, %v2537, %v2541
        %v2544 = vsel %vm450, %v2539, %v2535
        %v2545 = vsel %vm450, %v2541, %v2537
        %s2546 = scalar_lea.vmem [#allocation5], 1696
        %v2547 = vld [vmem:[%s2546] sm:$0xff]
        %v2548 = vld [vmem:[%s2546 + $0x8] sm:$0xff]
        %v2549 = vld [vmem:[%s2546 + $0x10] sm:$0xff]
        %v2550 = vld [vmem:[%s2546 + $0x18] sm:$0xff]
        %v2551 = vmul.f32 %v2544, %v2547
        %v2552 = vmul.f32 %v2542, %v2548
        %v2553 = vmul.f32 %v2545, %v2549
        %v2554 = vmul.f32 %v2543, %v2550
        %v2555 = vadd.f32 %v2467, %v2551
        %v2556 = vadd.f32 %v2468, %v2552
        %v2557 = vadd.f32 %v2469, %v2553
        %v2558 = vadd.f32 %v2470, %v2554
        %2559 = vrot.lane.b32.xlu0 %v2395, 46
        %v2560 = vpop.permute.xlu0 %2559
        %2561 = vrot.lane.b32.xlu0 %v2397, 46
        %v2562 = vpop.permute.xlu0 %2561
        %2563 = vrot.lane.b32.xlu0 %v2396, 46
        %v2564 = vpop.permute.xlu0 %2563
        %2565 = vrot.lane.b32.xlu0 %v2398, 46
        %v2566 = vpop.permute.xlu0 %2565
        %v2567 = vsel %vm476, %v2560, %v2564
        %v2568 = vsel %vm476, %v2562, %v2566
        %v2569 = vsel %vm476, %v2564, %v2560
        %v2570 = vsel %vm476, %v2566, %v2562
        %s2571 = scalar_lea.vmem [#allocation5], 1728
        %v2572 = vld [vmem:[%s2571] sm:$0xff]
        %v2573 = vld [vmem:[%s2571 + $0x8] sm:$0xff]
        %v2574 = vld [vmem:[%s2571 + $0x10] sm:$0xff]
        %v2575 = vld [vmem:[%s2571 + $0x18] sm:$0xff]
        %v2576 = vmul.f32 %v2569, %v2572
        %v2577 = vmul.f32 %v2567, %v2573
        %v2578 = vmul.f32 %v2570, %v2574
        %v2579 = vmul.f32 %v2568, %v2575
        %v2580 = vadd.f32 %v2488, %v2576
        %v2581 = vadd.f32 %v2489, %v2577
        %v2582 = vadd.f32 %v2490, %v2578
        %v2583 = vadd.f32 %v2491, %v2579
        %2584 = vrot.lane.b32.xlu0 %v2395, 45
        %v2585 = vpop.permute.xlu0 %2584
        %2586 = vrot.lane.b32.xlu0 %v2397, 45
        %v2587 = vpop.permute.xlu0 %2586
        %2588 = vrot.lane.b32.xlu0 %v2396, 45
        %v2589 = vpop.permute.xlu0 %2588
        %2590 = vrot.lane.b32.xlu0 %v2398, 45
        %v2591 = vpop.permute.xlu0 %2590
        %v2592 = vsel %vm502, %v2585, %v2589
        %v2593 = vsel %vm502, %v2587, %v2591
        %v2594 = vsel %vm502, %v2589, %v2585
        %v2595 = vsel %vm502, %v2591, %v2587
        %s2596 = scalar_lea.vmem [#allocation5], 1760
        %v2597 = vld [vmem:[%s2596] sm:$0xff]
        %v2598 = vld [vmem:[%s2596 + $0x8] sm:$0xff]
        %v2599 = vld [vmem:[%s2596 + $0x10] sm:$0xff]
        %v2600 = vld [vmem:[%s2596 + $0x18] sm:$0xff]
        %v2601 = vmul.f32 %v2594, %v2597
        %v2602 = vmul.f32 %v2592, %v2598
        %v2603 = vmul.f32 %v2595, %v2599
        %v2604 = vmul.f32 %v2593, %v2600
        %v2605 = vadd.f32 %v2509, %v2601
        %v2606 = vadd.f32 %v2510, %v2602
        %v2607 = vadd.f32 %v2511, %v2603
        %v2608 = vadd.f32 %v2512, %v2604
        %2609 = vrot.lane.b32.xlu0 %v2395, 35
        %v2610 = vpop.permute.xlu0 %2609
        %2611 = vrot.lane.b32.xlu0 %v2397, 35
        %v2612 = vpop.permute.xlu0 %2611
        %2613 = vrot.lane.b32.xlu0 %v2396, 35
        %v2614 = vpop.permute.xlu0 %2613
        %2615 = vrot.lane.b32.xlu0 %v2398, 35
        %v2616 = vpop.permute.xlu0 %2615
        %v2617 = vsel %vm528, %v2610, %v2614
        %v2618 = vsel %vm528, %v2612, %v2616
        %v2619 = vsel %vm528, %v2614, %v2610
        %v2620 = vsel %vm528, %v2616, %v2612
        %s2621 = scalar_lea.vmem [#allocation5], 1792
        %v2622 = vld [vmem:[%s2621] sm:$0xff]
        %v2623 = vld [vmem:[%s2621 + $0x8] sm:$0xff]
        %v2624 = vld [vmem:[%s2621 + $0x10] sm:$0xff]
        %v2625 = vld [vmem:[%s2621 + $0x18] sm:$0xff]
        %v2626 = vmul.f32 %v2619, %v2622
        %v2627 = vmul.f32 %v2617, %v2623
        %v2628 = vmul.f32 %v2620, %v2624
        %v2629 = vmul.f32 %v2618, %v2625
        %v2630 = vadd.f32 %v2530, %v2626
        %v2631 = vadd.f32 %v2531, %v2627
        %v2632 = vadd.f32 %v2532, %v2628
        %v2633 = vadd.f32 %v2533, %v2629
        %2634 = vrot.lane.b32.xlu0 %v2395, 34
        %v2635 = vpop.permute.xlu0 %2634
        %2636 = vrot.lane.b32.xlu0 %v2397, 34
        %v2637 = vpop.permute.xlu0 %2636
        %2638 = vrot.lane.b32.xlu0 %v2396, 34
        %v2639 = vpop.permute.xlu0 %2638
        %2640 = vrot.lane.b32.xlu0 %v2398, 34
        %v2641 = vpop.permute.xlu0 %2640
        %v2642 = vsel %vm554, %v2635, %v2639
        %v2643 = vsel %vm554, %v2637, %v2641
        %v2644 = vsel %vm554, %v2639, %v2635
        %v2645 = vsel %vm554, %v2641, %v2637
        %s2646 = scalar_lea.vmem [#allocation5], 1824
        %v2647 = vld [vmem:[%s2646] sm:$0xff]
        %v2648 = vld [vmem:[%s2646 + $0x8] sm:$0xff]
        %v2649 = vld [vmem:[%s2646 + $0x10] sm:$0xff]
        %v2650 = vld [vmem:[%s2646 + $0x18] sm:$0xff]
        %v2651 = vmul.f32 %v2644, %v2647
        %v2652 = vmul.f32 %v2642, %v2648
        %v2653 = vmul.f32 %v2645, %v2649
        %v2654 = vmul.f32 %v2643, %v2650
        %v2655 = vadd.f32 %v2555, %v2651
        %v2656 = vadd.f32 %v2556, %v2652
        %v2657 = vadd.f32 %v2557, %v2653
        %v2658 = vadd.f32 %v2558, %v2654
        %2659 = vrot.lane.b32.xlu0 %v2395, 33
        %v2660 = vpop.permute.xlu0 %2659
        %2661 = vrot.lane.b32.xlu0 %v2397, 33
        %v2662 = vpop.permute.xlu0 %2661
        %2663 = vrot.lane.b32.xlu0 %v2396, 33
        %v2664 = vpop.permute.xlu0 %2663
        %2665 = vrot.lane.b32.xlu0 %v2398, 33
        %v2666 = vpop.permute.xlu0 %2665
        %v2667 = vsel %vm580, %v2660, %v2664
        %v2668 = vsel %vm580, %v2662, %v2666
        %v2669 = vsel %vm580, %v2664, %v2660
        %v2670 = vsel %vm580, %v2666, %v2662
        %s2671 = scalar_lea.vmem [#allocation5], 1856
        %v2672 = vld [vmem:[%s2671] sm:$0xff]
        %v2673 = vld [vmem:[%s2671 + $0x8] sm:$0xff]
        %v2674 = vld [vmem:[%s2671 + $0x10] sm:$0xff]
        %v2675 = vld [vmem:[%s2671 + $0x18] sm:$0xff]
        %v2676 = vmul.f32 %v2669, %v2672
        %v2677 = vmul.f32 %v2667, %v2673
        %v2678 = vmul.f32 %v2670, %v2674
        %v2679 = vmul.f32 %v2668, %v2675
        %v2680 = vadd.f32 %v2580, %v2676
        %v2681 = vadd.f32 %v2581, %v2677
        %v2682 = vadd.f32 %v2582, %v2678
        %v2683 = vadd.f32 %v2583, %v2679
        %2684 = vrot.lane.b32.xlu0 %v2395, 32
        %v2685 = vpop.permute.xlu0 %2684
        %2686 = vrot.lane.b32.xlu0 %v2397, 32
        %v2687 = vpop.permute.xlu0 %2686
        %2688 = vrot.lane.b32.xlu0 %v2396, 32
        %v2689 = vpop.permute.xlu0 %2688
        %2690 = vrot.lane.b32.xlu0 %v2398, 32
        %v2691 = vpop.permute.xlu0 %2690
        %v2692 = vsel %vm606, %v2685, %v2689
        %v2693 = vsel %vm606, %v2687, %v2691
        %v2694 = vsel %vm606, %v2689, %v2685
        %v2695 = vsel %vm606, %v2691, %v2687
        %s2696 = scalar_lea.vmem [#allocation5], 1888
        %v2697 = vld [vmem:[%s2696] sm:$0xff]
        %v2698 = vld [vmem:[%s2696 + $0x8] sm:$0xff]
        %v2699 = vld [vmem:[%s2696 + $0x10] sm:$0xff]
        %v2700 = vld [vmem:[%s2696 + $0x18] sm:$0xff]
        %v2701 = vmul.f32 %v2694, %v2697
        %v2702 = vmul.f32 %v2692, %v2698
        %v2703 = vmul.f32 %v2695, %v2699
        %v2704 = vmul.f32 %v2693, %v2700
        %v2705 = vadd.f32 %v2605, %v2701
        %v2706 = vadd.f32 %v2606, %v2702
        %v2707 = vadd.f32 %v2607, %v2703
        %v2708 = vadd.f32 %v2608, %v2704
        %2709 = vrot.lane.b32.xlu0 %v2395, 31
        %v2710 = vpop.permute.xlu0 %2709
        %2711 = vrot.lane.b32.xlu0 %v2397, 31
        %v2712 = vpop.permute.xlu0 %2711
        %2713 = vrot.lane.b32.xlu0 %v2396, 31
        %v2714 = vpop.permute.xlu0 %2713
        %2715 = vrot.lane.b32.xlu0 %v2398, 31
        %v2716 = vpop.permute.xlu0 %2715
        %v2717 = vsel %vm632, %v2710, %v2714
        %v2718 = vsel %vm632, %v2712, %v2716
        %v2719 = vsel %vm632, %v2714, %v2710
        %v2720 = vsel %vm632, %v2716, %v2712
        %s2721 = scalar_lea.vmem [#allocation5], 1920
        %v2722 = vld [vmem:[%s2721] sm:$0xff]
        %v2723 = vld [vmem:[%s2721 + $0x8] sm:$0xff]
        %v2724 = vld [vmem:[%s2721 + $0x10] sm:$0xff]
        %v2725 = vld [vmem:[%s2721 + $0x18] sm:$0xff]
        %v2726 = vmul.f32 %v2719, %v2722
        %v2727 = vmul.f32 %v2717, %v2723
        %v2728 = vmul.f32 %v2720, %v2724
        %v2729 = vmul.f32 %v2718, %v2725
        %v2730 = vadd.f32 %v2630, %v2726
        %v2731 = vadd.f32 %v2631, %v2727
        %v2732 = vadd.f32 %v2632, %v2728
        %v2733 = vadd.f32 %v2633, %v2729
        %2734 = vrot.lane.b32.xlu0 %v2395, 30
        %v2735 = vpop.permute.xlu0 %2734
        %2736 = vrot.lane.b32.xlu0 %v2397, 30
        %v2737 = vpop.permute.xlu0 %2736
        %2738 = vrot.lane.b32.xlu0 %v2396, 30
        %v2739 = vpop.permute.xlu0 %2738
        %2740 = vrot.lane.b32.xlu0 %v2398, 30
        %v2741 = vpop.permute.xlu0 %2740
        %v2742 = vsel %vm658, %v2735, %v2739
        %v2743 = vsel %vm658, %v2737, %v2741
        %v2744 = vsel %vm658, %v2739, %v2735
        %v2745 = vsel %vm658, %v2741, %v2737
        %s2746 = scalar_lea.vmem [#allocation5], 1952
        %v2747 = vld [vmem:[%s2746] sm:$0xff]
        %v2748 = vld [vmem:[%s2746 + $0x8] sm:$0xff]
        %v2749 = vld [vmem:[%s2746 + $0x10] sm:$0xff]
        %v2750 = vld [vmem:[%s2746 + $0x18] sm:$0xff]
        %v2751 = vmul.f32 %v2744, %v2747
        %v2752 = vmul.f32 %v2742, %v2748
        %v2753 = vmul.f32 %v2745, %v2749
        %v2754 = vmul.f32 %v2743, %v2750
        %v2755 = vadd.f32 %v2655, %v2751
        %v2756 = vadd.f32 %v2656, %v2752
        %v2757 = vadd.f32 %v2657, %v2753
        %v2758 = vadd.f32 %v2658, %v2754
        %2759 = vrot.lane.b32.xlu0 %v2395, 29
        %v2760 = vpop.permute.xlu0 %2759
        %2761 = vrot.lane.b32.xlu0 %v2397, 29
        %v2762 = vpop.permute.xlu0 %2761
        %2763 = vrot.lane.b32.xlu0 %v2396, 29
        %v2764 = vpop.permute.xlu0 %2763
        %2765 = vrot.lane.b32.xlu0 %v2398, 29
        %v2766 = vpop.permute.xlu0 %2765
        %v2767 = vsel %vm684, %v2760, %v2764
        %v2768 = vsel %vm684, %v2762, %v2766
        %v2769 = vsel %vm684, %v2764, %v2760
        %v2770 = vsel %vm684, %v2766, %v2762
        %s2771 = scalar_lea.vmem [#allocation5], 1984
        %v2772 = vld [vmem:[%s2771] sm:$0xff]
        %v2773 = vld [vmem:[%s2771 + $0x8] sm:$0xff]
        %v2774 = vld [vmem:[%s2771 + $0x10] sm:$0xff]
        %v2775 = vld [vmem:[%s2771 + $0x18] sm:$0xff]
        %v2776 = vmul.f32 %v2769, %v2772
        %v2777 = vmul.f32 %v2767, %v2773
        %v2778 = vmul.f32 %v2770, %v2774
        %v2779 = vmul.f32 %v2768, %v2775
        %v2780 = vadd.f32 %v2680, %v2776
        %v2781 = vadd.f32 %v2681, %v2777
        %v2782 = vadd.f32 %v2682, %v2778
        %v2783 = vadd.f32 %v2683, %v2779
        %2784 = vrot.lane.b32.xlu0 %v2395, 19
        %v2785 = vpop.permute.xlu0 %2784
        %2786 = vrot.lane.b32.xlu0 %v2397, 19
        %v2787 = vpop.permute.xlu0 %2786
        %2788 = vrot.lane.b32.xlu0 %v2396, 19
        %v2789 = vpop.permute.xlu0 %2788
        %2790 = vrot.lane.b32.xlu0 %v2398, 19
        %v2791 = vpop.permute.xlu0 %2790
        %v2792 = vsel %vm710, %v2785, %v2789
        %v2793 = vsel %vm710, %v2787, %v2791
        %v2794 = vsel %vm710, %v2789, %v2785
        %v2795 = vsel %vm710, %v2791, %v2787
        %s2796 = scalar_lea.vmem [#allocation5], 2016
        %v2797 = vld [vmem:[%s2796] sm:$0xff]
        %v2798 = vld [vmem:[%s2796 + $0x8] sm:$0xff]
        %v2799 = vld [vmem:[%s2796 + $0x10] sm:$0xff]
        %v2800 = vld [vmem:[%s2796 + $0x18] sm:$0xff]
        %v2801 = vmul.f32 %v2794, %v2797
        %v2802 = vmul.f32 %v2792, %v2798
        %v2803 = vmul.f32 %v2795, %v2799
        %v2804 = vmul.f32 %v2793, %v2800
        %v2805 = vadd.f32 %v2705, %v2801
        %v2806 = vadd.f32 %v2706, %v2802
        %v2807 = vadd.f32 %v2707, %v2803
        %v2808 = vadd.f32 %v2708, %v2804
        %2809 = vrot.lane.b32.xlu0 %v2395, 18
        %v2810 = vpop.permute.xlu0 %2809
        %2811 = vrot.lane.b32.xlu0 %v2397, 18
        %v2812 = vpop.permute.xlu0 %2811
        %2813 = vrot.lane.b32.xlu0 %v2396, 18
        %v2814 = vpop.permute.xlu0 %2813
        %2815 = vrot.lane.b32.xlu0 %v2398, 18
        %v2816 = vpop.permute.xlu0 %2815
        %v2817 = vsel %vm736, %v2810, %v2814
        %v2818 = vsel %vm736, %v2812, %v2816
        %v2819 = vsel %vm736, %v2814, %v2810
        %v2820 = vsel %vm736, %v2816, %v2812
        %s2821 = scalar_lea.vmem [#allocation5], 2048
        %v2822 = vld [vmem:[%s2821] sm:$0xff]
        %v2823 = vld [vmem:[%s2821 + $0x8] sm:$0xff]
        %v2824 = vld [vmem:[%s2821 + $0x10] sm:$0xff]
        %v2825 = vld [vmem:[%s2821 + $0x18] sm:$0xff]
        %v2826 = vmul.f32 %v2819, %v2822
        %v2827 = vmul.f32 %v2817, %v2823
        %v2828 = vmul.f32 %v2820, %v2824
        %v2829 = vmul.f32 %v2818, %v2825
        %v2830 = vadd.f32 %v2730, %v2826
        %v2831 = vadd.f32 %v2731, %v2827
        %v2832 = vadd.f32 %v2732, %v2828
        %v2833 = vadd.f32 %v2733, %v2829
        %2834 = vrot.lane.b32.xlu0 %v2395, 17
        %v2835 = vpop.permute.xlu0 %2834
        %2836 = vrot.lane.b32.xlu0 %v2397, 17
        %v2837 = vpop.permute.xlu0 %2836
        %2838 = vrot.lane.b32.xlu0 %v2396, 17
        %v2839 = vpop.permute.xlu0 %2838
        %2840 = vrot.lane.b32.xlu0 %v2398, 17
        %v2841 = vpop.permute.xlu0 %2840
        %v2842 = vsel %vm762, %v2835, %v2839
        %v2843 = vsel %vm762, %v2837, %v2841
        %v2844 = vsel %vm762, %v2839, %v2835
        %v2845 = vsel %vm762, %v2841, %v2837
        %s2846 = scalar_lea.vmem [#allocation5], 2080
        %v2847 = vld [vmem:[%s2846] sm:$0xff]
        %v2848 = vld [vmem:[%s2846 + $0x8] sm:$0xff]
        %v2849 = vld [vmem:[%s2846 + $0x10] sm:$0xff]
        %v2850 = vld [vmem:[%s2846 + $0x18] sm:$0xff]
        %v2851 = vmul.f32 %v2844, %v2847
        %v2852 = vmul.f32 %v2842, %v2848
        %v2853 = vmul.f32 %v2845, %v2849
        %v2854 = vmul.f32 %v2843, %v2850
        %v2855 = vadd.f32 %v2755, %v2851
        %v2856 = vadd.f32 %v2756, %v2852
        %v2857 = vadd.f32 %v2757, %v2853
        %v2858 = vadd.f32 %v2758, %v2854
        %2859 = vrot.lane.b32.xlu0 %v2395, 16
        %v2860 = vpop.permute.xlu0 %2859
        %2861 = vrot.lane.b32.xlu0 %v2397, 16
        %v2862 = vpop.permute.xlu0 %2861
        %2863 = vrot.lane.b32.xlu0 %v2396, 16
        %v2864 = vpop.permute.xlu0 %2863
        %2865 = vrot.lane.b32.xlu0 %v2398, 16
        %v2866 = vpop.permute.xlu0 %2865
        %v2867 = vsel %vm788, %v2860, %v2864
        %v2868 = vsel %vm788, %v2862, %v2866
        %v2869 = vsel %vm788, %v2864, %v2860
        %v2870 = vsel %vm788, %v2866, %v2862
        %s2871 = scalar_lea.vmem [#allocation5], 2112
        %v2872 = vld [vmem:[%s2871] sm:$0xff]
        %v2873 = vld [vmem:[%s2871 + $0x8] sm:$0xff]
        %v2874 = vld [vmem:[%s2871 + $0x10] sm:$0xff]
        %v2875 = vld [vmem:[%s2871 + $0x18] sm:$0xff]
        %v2876 = vmul.f32 %v2869, %v2872
        %v2877 = vmul.f32 %v2867, %v2873
        %v2878 = vmul.f32 %v2870, %v2874
        %v2879 = vmul.f32 %v2868, %v2875
        %v2880 = vadd.f32 %v2780, %v2876
        %v2881 = vadd.f32 %v2781, %v2877
        %v2882 = vadd.f32 %v2782, %v2878
        %v2883 = vadd.f32 %v2783, %v2879
        %2884 = vrot.lane.b32.xlu0 %v2395, 15
        %v2885 = vpop.permute.xlu0 %2884
        %2886 = vrot.lane.b32.xlu0 %v2397, 15
        %v2887 = vpop.permute.xlu0 %2886
        %2888 = vrot.lane.b32.xlu0 %v2396, 15
        %v2889 = vpop.permute.xlu0 %2888
        %2890 = vrot.lane.b32.xlu0 %v2398, 15
        %v2891 = vpop.permute.xlu0 %2890
        %v2892 = vsel %vm814, %v2885, %v2889
        %v2893 = vsel %vm814, %v2887, %v2891
        %v2894 = vsel %vm814, %v2889, %v2885
        %v2895 = vsel %vm814, %v2891, %v2887
        %s2896 = scalar_lea.vmem [#allocation5], 2144
        %v2897 = vld [vmem:[%s2896] sm:$0xff]
        %v2898 = vld [vmem:[%s2896 + $0x8] sm:$0xff]
        %v2899 = vld [vmem:[%s2896 + $0x10] sm:$0xff]
        %v2900 = vld [vmem:[%s2896 + $0x18] sm:$0xff]
        %v2901 = vmul.f32 %v2894, %v2897
        %v2902 = vmul.f32 %v2892, %v2898
        %v2903 = vmul.f32 %v2895, %v2899
        %v2904 = vmul.f32 %v2893, %v2900
        %v2905 = vadd.f32 %v2805, %v2901
        %v2906 = vadd.f32 %v2806, %v2902
        %v2907 = vadd.f32 %v2807, %v2903
        %v2908 = vadd.f32 %v2808, %v2904
        %2909 = vrot.lane.b32.xlu0 %v2395, 14
        %v2910 = vpop.permute.xlu0 %2909
        %2911 = vrot.lane.b32.xlu0 %v2397, 14
        %v2912 = vpop.permute.xlu0 %2911
        %2913 = vrot.lane.b32.xlu0 %v2396, 14
        %v2914 = vpop.permute.xlu0 %2913
        %2915 = vrot.lane.b32.xlu0 %v2398, 14
        %v2916 = vpop.permute.xlu0 %2915
        %v2917 = vsel %vm840, %v2910, %v2914
        %v2918 = vsel %vm840, %v2912, %v2916
        %v2919 = vsel %vm840, %v2914, %v2910
        %v2920 = vsel %vm840, %v2916, %v2912
        %s2921 = scalar_lea.vmem [#allocation5], 2176
        %v2922 = vld [vmem:[%s2921] sm:$0xff]
        %v2923 = vld [vmem:[%s2921 + $0x8] sm:$0xff]
        %v2924 = vld [vmem:[%s2921 + $0x10] sm:$0xff]
        %v2925 = vld [vmem:[%s2921 + $0x18] sm:$0xff]
        %v2926 = vmul.f32 %v2919, %v2922
        %v2927 = vmul.f32 %v2917, %v2923
        %v2928 = vmul.f32 %v2920, %v2924
        %v2929 = vmul.f32 %v2918, %v2925
        %v2930 = vadd.f32 %v2830, %v2926
        %v2931 = vadd.f32 %v2831, %v2927
        %v2932 = vadd.f32 %v2832, %v2928
        %v2933 = vadd.f32 %v2833, %v2929
        %2934 = vrot.lane.b32.xlu0 %v2395, 13
        %v2935 = vpop.permute.xlu0 %2934
        %2936 = vrot.lane.b32.xlu0 %v2397, 13
        %v2937 = vpop.permute.xlu0 %2936
        %2938 = vrot.lane.b32.xlu0 %v2396, 13
        %v2939 = vpop.permute.xlu0 %2938
        %2940 = vrot.lane.b32.xlu0 %v2398, 13
        %v2941 = vpop.permute.xlu0 %2940
        %v2942 = vsel %vm866, %v2935, %v2939
        %v2943 = vsel %vm866, %v2937, %v2941
        %v2944 = vsel %vm866, %v2939, %v2935
        %v2945 = vsel %vm866, %v2941, %v2937
        %s2946 = scalar_lea.vmem [#allocation5], 2208
        %v2947 = vld [vmem:[%s2946] sm:$0xff]
        %v2948 = vld [vmem:[%s2946 + $0x8] sm:$0xff]
        %v2949 = vld [vmem:[%s2946 + $0x10] sm:$0xff]
        %v2950 = vld [vmem:[%s2946 + $0x18] sm:$0xff]
        %v2951 = vmul.f32 %v2944, %v2947
        %v2952 = vmul.f32 %v2942, %v2948
        %v2953 = vmul.f32 %v2945, %v2949
        %v2954 = vmul.f32 %v2943, %v2950
        %v2955 = vadd.f32 %v2855, %v2951
        %v2956 = vadd.f32 %v2856, %v2952
        %v2957 = vadd.f32 %v2857, %v2953
        %v2958 = vadd.f32 %v2858, %v2954
        %2959 = vrot.lane.b32.xlu0 %v2395, 3
        %v2960 = vpop.permute.xlu0 %2959
        %2961 = vrot.lane.b32.xlu0 %v2397, 3
        %v2962 = vpop.permute.xlu0 %2961
        %2963 = vrot.lane.b32.xlu0 %v2396, 3
        %v2964 = vpop.permute.xlu0 %2963
        %2965 = vrot.lane.b32.xlu0 %v2398, 3
        %v2966 = vpop.permute.xlu0 %2965
        %v2967 = vsel %vm892, %v2960, %v2964
        %v2968 = vsel %vm892, %v2962, %v2966
        %v2969 = vsel %vm892, %v2964, %v2960
        %v2970 = vsel %vm892, %v2966, %v2962
        %s2971 = scalar_lea.vmem [#allocation5], 2240
        %v2972 = vld [vmem:[%s2971] sm:$0xff]
        %v2973 = vld [vmem:[%s2971 + $0x8] sm:$0xff]
        %v2974 = vld [vmem:[%s2971 + $0x10] sm:$0xff]
        %v2975 = vld [vmem:[%s2971 + $0x18] sm:$0xff]
        %v2976 = vmul.f32 %v2969, %v2972
        %v2977 = vmul.f32 %v2967, %v2973
        %v2978 = vmul.f32 %v2970, %v2974
        %v2979 = vmul.f32 %v2968, %v2975
        %v2980 = vadd.f32 %v2880, %v2976
        %v2981 = vadd.f32 %v2881, %v2977
        %v2982 = vadd.f32 %v2882, %v2978
        %v2983 = vadd.f32 %v2883, %v2979
        %2984 = vrot.lane.b32.xlu0 %v2395, 2
        %v2985 = vpop.permute.xlu0 %2984
        %2986 = vrot.lane.b32.xlu0 %v2397, 2
        %v2987 = vpop.permute.xlu0 %2986
        %2988 = vrot.lane.b32.xlu0 %v2396, 2
        %v2989 = vpop.permute.xlu0 %2988
        %2990 = vrot.lane.b32.xlu0 %v2398, 2
        %v2991 = vpop.permute.xlu0 %2990
        %v2992 = vsel %vm918, %v2985, %v2989
        %v2993 = vsel %vm918, %v2987, %v2991
        %v2994 = vsel %vm918, %v2989, %v2985
        %v2995 = vsel %vm918, %v2991, %v2987
        %s2996 = scalar_lea.vmem [#allocation5], 2272
        %v2997 = vld [vmem:[%s2996] sm:$0xff]
        %v2998 = vld [vmem:[%s2996 + $0x8] sm:$0xff]
        %v2999 = vld [vmem:[%s2996 + $0x10] sm:$0xff]
        %v3000 = vld [vmem:[%s2996 + $0x18] sm:$0xff]
        %v3001 = vmul.f32 %v2994, %v2997
        %v3002 = vmul.f32 %v2992, %v2998
        %v3003 = vmul.f32 %v2995, %v2999
        %v3004 = vmul.f32 %v2993, %v3000
        %v3005 = vadd.f32 %v2905, %v3001
        %v3006 = vadd.f32 %v2906, %v3002
        %v3007 = vadd.f32 %v2907, %v3003
        %v3008 = vadd.f32 %v2908, %v3004
        %3009 = vrot.lane.b32.xlu0 %v2395, 1
        %v3010 = vpop.permute.xlu0 %3009
        %3011 = vrot.lane.b32.xlu0 %v2397, 1
        %v3012 = vpop.permute.xlu0 %3011
        %3013 = vrot.lane.b32.xlu0 %v2396, 1
        %v3014 = vpop.permute.xlu0 %3013
        %3015 = vrot.lane.b32.xlu0 %v2398, 1
        %v3016 = vpop.permute.xlu0 %3015
        %v3017 = vsel %vm944, %v3010, %v3014
        %v3018 = vsel %vm944, %v3012, %v3016
        %v3019 = vsel %vm944, %v3014, %v3010
        %v3020 = vsel %vm944, %v3016, %v3012
        %s3021 = scalar_lea.vmem [#allocation5], 2304
        %v3022 = vld [vmem:[%s3021] sm:$0xff]
        %v3023 = vld [vmem:[%s3021 + $0x8] sm:$0xff]
        %v3024 = vld [vmem:[%s3021 + $0x10] sm:$0xff]
        %v3025 = vld [vmem:[%s3021 + $0x18] sm:$0xff]
        %v3026 = vmul.f32 %v3019, %v3022
        %v3027 = vmul.f32 %v3017, %v3023
        %v3028 = vmul.f32 %v3020, %v3024
        %v3029 = vmul.f32 %v3018, %v3025
        %v3030 = vadd.f32 %v2930, %v3026
        %v3031 = vadd.f32 %v2931, %v3027
        %v3032 = vadd.f32 %v2932, %v3028
        %v3033 = vadd.f32 %v2933, %v3029
        %s3034 = scalar_lea.vmem [#allocation5], 2336
        %v3035 = vld [vmem:[%s3034] sm:$0xff]
        %v3036 = vld [vmem:[%s3034 + $0x8] sm:$0xff]
        %v3037 = vld [vmem:[%s3034 + $0x10] sm:$0xff]
        %v3038 = vld [vmem:[%s3034 + $0x18] sm:$0xff]
        %v3039 = vmul.f32 %v2395, %v3035
        %v3040 = vmul.f32 %v2396, %v3036
        %v3041 = vmul.f32 %v2397, %v3037
        %v3042 = vmul.f32 %v2398, %v3038
        %v3043 = vadd.f32 %v2955, %v3039
        %v3044 = vadd.f32 %v2956, %v3040
        %v3045 = vadd.f32 %v2957, %v3041
        %v3046 = vadd.f32 %v2958, %v3042
        %3047 = vrot.lane.b32.xlu0 %v2395, 127
        %v3048 = vpop.permute.xlu0 %3047
        %3049 = vrot.lane.b32.xlu0 %v2397, 127
        %v3050 = vpop.permute.xlu0 %3049
        %3051 = vrot.lane.b32.xlu0 %v2396, 127
        %v3052 = vpop.permute.xlu0 %3051
        %3053 = vrot.lane.b32.xlu0 %v2398, 127
        %v3054 = vpop.permute.xlu0 %3053
        %v3055 = vsel %vm983, %v3048, %v3052
        %v3056 = vsel %vm983, %v3050, %v3054
        %v3057 = vsel %vm983, %v3052, %v3048
        %v3058 = vsel %vm983, %v3054, %v3050
        %s3059 = scalar_lea.vmem [#allocation5], 2368
        %v3060 = vld [vmem:[%s3059] sm:$0xff]
        %v3061 = vld [vmem:[%s3059 + $0x8] sm:$0xff]
        %v3062 = vld [vmem:[%s3059 + $0x10] sm:$0xff]
        %v3063 = vld [vmem:[%s3059 + $0x18] sm:$0xff]
        %v3064 = vmul.f32 %v3055, %v3060
        %v3065 = vmul.f32 %v3057, %v3061
        %v3066 = vmul.f32 %v3056, %v3062
        %v3067 = vmul.f32 %v3058, %v3063
        %v3068 = vadd.f32 %v2980, %v3064
        %v3069 = vadd.f32 %v2981, %v3065
        %v3070 = vadd.f32 %v2982, %v3066
        %v3071 = vadd.f32 %v2983, %v3067
        %3072 = vrot.lane.b32.xlu0 %v2395, 126
        %v3073 = vpop.permute.xlu0 %3072
        %3074 = vrot.lane.b32.xlu0 %v2397, 126
        %v3075 = vpop.permute.xlu0 %3074
        %3076 = vrot.lane.b32.xlu0 %v2396, 126
        %v3077 = vpop.permute.xlu0 %3076
        %3078 = vrot.lane.b32.xlu0 %v2398, 126
        %v3079 = vpop.permute.xlu0 %3078
        %v3080 = vsel %vm1009, %v3073, %v3077
        %v3081 = vsel %vm1009, %v3075, %v3079
        %v3082 = vsel %vm1009, %v3077, %v3073
        %v3083 = vsel %vm1009, %v3079, %v3075
        %s3084 = scalar_lea.vmem [#allocation5], 2400
        %v3085 = vld [vmem:[%s3084] sm:$0xff]
        %v3086 = vld [vmem:[%s3084 + $0x8] sm:$0xff]
        %v3087 = vld [vmem:[%s3084 + $0x10] sm:$0xff]
        %v3088 = vld [vmem:[%s3084 + $0x18] sm:$0xff]
        %v3089 = vmul.f32 %v3080, %v3085
        %v3090 = vmul.f32 %v3082, %v3086
        %v3091 = vmul.f32 %v3081, %v3087
        %v3092 = vmul.f32 %v3083, %v3088
        %v3093 = vadd.f32 %v3005, %v3089
        %v3094 = vadd.f32 %v3006, %v3090
        %v3095 = vadd.f32 %v3007, %v3091
        %v3096 = vadd.f32 %v3008, %v3092
        %3097 = vrot.lane.b32.xlu0 %v2395, 125
        %v3098 = vpop.permute.xlu0 %3097
        %3099 = vrot.lane.b32.xlu0 %v2397, 125
        %v3100 = vpop.permute.xlu0 %3099
        %3101 = vrot.lane.b32.xlu0 %v2396, 125
        %v3102 = vpop.permute.xlu0 %3101
        %3103 = vrot.lane.b32.xlu0 %v2398, 125
        %v3104 = vpop.permute.xlu0 %3103
        %v3105 = vsel %vm1035, %v3098, %v3102
        %v3106 = vsel %vm1035, %v3100, %v3104
        %v3107 = vsel %vm1035, %v3102, %v3098
        %v3108 = vsel %vm1035, %v3104, %v3100
        %s3109 = scalar_lea.vmem [#allocation5], 2432
        %v3110 = vld [vmem:[%s3109] sm:$0xff]
        %v3111 = vld [vmem:[%s3109 + $0x8] sm:$0xff]
        %v3112 = vld [vmem:[%s3109 + $0x10] sm:$0xff]
        %v3113 = vld [vmem:[%s3109 + $0x18] sm:$0xff]
        %v3114 = vmul.f32 %v3105, %v3110
        %v3115 = vmul.f32 %v3107, %v3111
        %v3116 = vmul.f32 %v3106, %v3112
        %v3117 = vmul.f32 %v3108, %v3113
        %v3118 = vadd.f32 %v3030, %v3114
        %v3119 = vadd.f32 %v3031, %v3115
        %v3120 = vadd.f32 %v3032, %v3116
        %v3121 = vadd.f32 %v3033, %v3117
        %3122 = vrot.lane.b32.xlu0 %v2395, 115
        %v3123 = vpop.permute.xlu0 %3122
        %3124 = vrot.lane.b32.xlu0 %v2397, 115
        %v3125 = vpop.permute.xlu0 %3124
        %3126 = vrot.lane.b32.xlu0 %v2396, 115
        %v3127 = vpop.permute.xlu0 %3126
        %3128 = vrot.lane.b32.xlu0 %v2398, 115
        %v3129 = vpop.permute.xlu0 %3128
        %v3130 = vsel %vm1061, %v3123, %v3127
        %v3131 = vsel %vm1061, %v3125, %v3129
        %v3132 = vsel %vm1061, %v3127, %v3123
        %v3133 = vsel %vm1061, %v3129, %v3125
        %s3134 = scalar_lea.vmem [#allocation5], 2464
        %v3135 = vld [vmem:[%s3134] sm:$0xff]
        %v3136 = vld [vmem:[%s3134 + $0x8] sm:$0xff]
        %v3137 = vld [vmem:[%s3134 + $0x10] sm:$0xff]
        %v3138 = vld [vmem:[%s3134 + $0x18] sm:$0xff]
        %v3139 = vmul.f32 %v3130, %v3135
        %v3140 = vmul.f32 %v3132, %v3136
        %v3141 = vmul.f32 %v3131, %v3137
        %v3142 = vmul.f32 %v3133, %v3138
        %v3143 = vadd.f32 %v3043, %v3139
        %v3144 = vadd.f32 %v3044, %v3140
        %v3145 = vadd.f32 %v3045, %v3141
        %v3146 = vadd.f32 %v3046, %v3142
        %3147 = vrot.lane.b32.xlu0 %v2395, 114
        %v3148 = vpop.permute.xlu0 %3147
        %3149 = vrot.lane.b32.xlu0 %v2397, 114
        %v3150 = vpop.permute.xlu0 %3149
        %3151 = vrot.lane.b32.xlu0 %v2396, 114
        %v3152 = vpop.permute.xlu0 %3151
        %3153 = vrot.lane.b32.xlu0 %v2398, 114
        %v3154 = vpop.permute.xlu0 %3153
        %v3155 = vsel %vm1087, %v3148, %v3152
        %v3156 = vsel %vm1087, %v3150, %v3154
        %v3157 = vsel %vm1087, %v3152, %v3148
        %v3158 = vsel %vm1087, %v3154, %v3150
        %s3159 = scalar_lea.vmem [#allocation5], 2496
        %v3160 = vld [vmem:[%s3159] sm:$0xff]
        %v3161 = vld [vmem:[%s3159 + $0x8] sm:$0xff]
        %v3162 = vld [vmem:[%s3159 + $0x10] sm:$0xff]
        %v3163 = vld [vmem:[%s3159 + $0x18] sm:$0xff]
        %v3164 = vmul.f32 %v3155, %v3160
        %v3165 = vmul.f32 %v3157, %v3161
        %v3166 = vmul.f32 %v3156, %v3162
        %v3167 = vmul.f32 %v3158, %v3163
        %v3168 = vadd.f32 %v3068, %v3164
        %v3169 = vadd.f32 %v3069, %v3165
        %v3170 = vadd.f32 %v3070, %v3166
        %v3171 = vadd.f32 %v3071, %v3167
        %3172 = vrot.lane.b32.xlu0 %v2395, 113
        %v3173 = vpop.permute.xlu0 %3172
        %3174 = vrot.lane.b32.xlu0 %v2397, 113
        %v3175 = vpop.permute.xlu0 %3174
        %3176 = vrot.lane.b32.xlu0 %v2396, 113
        %v3177 = vpop.permute.xlu0 %3176
        %3178 = vrot.lane.b32.xlu0 %v2398, 113
        %v3179 = vpop.permute.xlu0 %3178
        %v3180 = vsel %vm1113, %v3173, %v3177
        %v3181 = vsel %vm1113, %v3175, %v3179
        %v3182 = vsel %vm1113, %v3177, %v3173
        %v3183 = vsel %vm1113, %v3179, %v3175
        %s3184 = scalar_lea.vmem [#allocation5], 2528
        %v3185 = vld [vmem:[%s3184] sm:$0xff]
        %v3186 = vld [vmem:[%s3184 + $0x8] sm:$0xff]
        %v3187 = vld [vmem:[%s3184 + $0x10] sm:$0xff]
        %v3188 = vld [vmem:[%s3184 + $0x18] sm:$0xff]
        %v3189 = vmul.f32 %v3180, %v3185
        %v3190 = vmul.f32 %v3182, %v3186
        %v3191 = vmul.f32 %v3181, %v3187
        %v3192 = vmul.f32 %v3183, %v3188
        %v3193 = vadd.f32 %v3093, %v3189
        %v3194 = vadd.f32 %v3094, %v3190
        %v3195 = vadd.f32 %v3095, %v3191
        %v3196 = vadd.f32 %v3096, %v3192
        %3197 = vrot.lane.b32.xlu0 %v2395, 112
        %v3198 = vpop.permute.xlu0 %3197
        %3199 = vrot.lane.b32.xlu0 %v2397, 112
        %v3200 = vpop.permute.xlu0 %3199
        %3201 = vrot.lane.b32.xlu0 %v2396, 112
        %v3202 = vpop.permute.xlu0 %3201
        %3203 = vrot.lane.b32.xlu0 %v2398, 112
        %v3204 = vpop.permute.xlu0 %3203
        %v3205 = vsel %vm1139, %v3198, %v3202
        %v3206 = vsel %vm1139, %v3200, %v3204
        %v3207 = vsel %vm1139, %v3202, %v3198
        %v3208 = vsel %vm1139, %v3204, %v3200
        %s3209 = scalar_lea.vmem [#allocation5], 2560
        %v3210 = vld [vmem:[%s3209] sm:$0xff]
        %v3211 = vld [vmem:[%s3209 + $0x8] sm:$0xff]
        %v3212 = vld [vmem:[%s3209 + $0x10] sm:$0xff]
        %v3213 = vld [vmem:[%s3209 + $0x18] sm:$0xff]
        %v3214 = vmul.f32 %v3205, %v3210
        %v3215 = vmul.f32 %v3207, %v3211
        %v3216 = vmul.f32 %v3206, %v3212
        %v3217 = vmul.f32 %v3208, %v3213
        %v3218 = vadd.f32 %v3118, %v3214
        %v3219 = vadd.f32 %v3119, %v3215
        %v3220 = vadd.f32 %v3120, %v3216
        %v3221 = vadd.f32 %v3121, %v3217
        %3222 = vrot.lane.b32.xlu0 %v2395, 111
        %v3223 = vpop.permute.xlu0 %3222
        %3224 = vrot.lane.b32.xlu0 %v2397, 111
        %v3225 = vpop.permute.xlu0 %3224
        %3226 = vrot.lane.b32.xlu0 %v2396, 111
        %v3227 = vpop.permute.xlu0 %3226
        %3228 = vrot.lane.b32.xlu0 %v2398, 111
        %v3229 = vpop.permute.xlu0 %3228
        %v3230 = vsel %vm1165, %v3223, %v3227
        %v3231 = vsel %vm1165, %v3225, %v3229
        %v3232 = vsel %vm1165, %v3227, %v3223
        %v3233 = vsel %vm1165, %v3229, %v3225
        %s3234 = scalar_lea.vmem [#allocation5], 2592
        %v3235 = vld [vmem:[%s3234] sm:$0xff]
        %v3236 = vld [vmem:[%s3234 + $0x8] sm:$0xff]
        %v3237 = vld [vmem:[%s3234 + $0x10] sm:$0xff]
        %v3238 = vld [vmem:[%s3234 + $0x18] sm:$0xff]
        %v3239 = vmul.f32 %v3230, %v3235
        %v3240 = vmul.f32 %v3232, %v3236
        %v3241 = vmul.f32 %v3231, %v3237
        %v3242 = vmul.f32 %v3233, %v3238
        %v3243 = vadd.f32 %v3143, %v3239
        %v3244 = vadd.f32 %v3144, %v3240
        %v3245 = vadd.f32 %v3145, %v3241
        %v3246 = vadd.f32 %v3146, %v3242
        %3247 = vrot.lane.b32.xlu0 %v2395, 110
        %v3248 = vpop.permute.xlu0 %3247
        %3249 = vrot.lane.b32.xlu0 %v2397, 110
        %v3250 = vpop.permute.xlu0 %3249
        %3251 = vrot.lane.b32.xlu0 %v2396, 110
        %v3252 = vpop.permute.xlu0 %3251
        %3253 = vrot.lane.b32.xlu0 %v2398, 110
        %v3254 = vpop.permute.xlu0 %3253
        %v3255 = vsel %vm1191, %v3248, %v3252
        %v3256 = vsel %vm1191, %v3250, %v3254
        %v3257 = vsel %vm1191, %v3252, %v3248
        %v3258 = vsel %vm1191, %v3254, %v3250
        %s3259 = scalar_lea.vmem [#allocation5], 2624
        %v3260 = vld [vmem:[%s3259] sm:$0xff]
        %v3261 = vld [vmem:[%s3259 + $0x8] sm:$0xff]
        %v3262 = vld [vmem:[%s3259 + $0x10] sm:$0xff]
        %v3263 = vld [vmem:[%s3259 + $0x18] sm:$0xff]
        %v3264 = vmul.f32 %v3255, %v3260
        %v3265 = vmul.f32 %v3257, %v3261
        %v3266 = vmul.f32 %v3256, %v3262
        %v3267 = vmul.f32 %v3258, %v3263
        %v3268 = vadd.f32 %v3168, %v3264
        %v3269 = vadd.f32 %v3169, %v3265
        %v3270 = vadd.f32 %v3170, %v3266
        %v3271 = vadd.f32 %v3171, %v3267
        %3272 = vrot.lane.b32.xlu0 %v2395, 109
        %v3273 = vpop.permute.xlu0 %3272
        %3274 = vrot.lane.b32.xlu0 %v2397, 109
        %v3275 = vpop.permute.xlu0 %3274
        %3276 = vrot.lane.b32.xlu0 %v2396, 109
        %v3277 = vpop.permute.xlu0 %3276
        %3278 = vrot.lane.b32.xlu0 %v2398, 109
        %v3279 = vpop.permute.xlu0 %3278
        %v3280 = vsel %vm1217, %v3273, %v3277
        %v3281 = vsel %vm1217, %v3275, %v3279
        %v3282 = vsel %vm1217, %v3277, %v3273
        %v3283 = vsel %vm1217, %v3279, %v3275
        %s3284 = scalar_lea.vmem [#allocation5], 2656
        %v3285 = vld [vmem:[%s3284] sm:$0xff]
        %v3286 = vld [vmem:[%s3284 + $0x8] sm:$0xff]
        %v3287 = vld [vmem:[%s3284 + $0x10] sm:$0xff]
        %v3288 = vld [vmem:[%s3284 + $0x18] sm:$0xff]
        %v3289 = vmul.f32 %v3280, %v3285
        %v3290 = vmul.f32 %v3282, %v3286
        %v3291 = vmul.f32 %v3281, %v3287
        %v3292 = vmul.f32 %v3283, %v3288
        %v3293 = vadd.f32 %v3193, %v3289
        %v3294 = vadd.f32 %v3194, %v3290
        %v3295 = vadd.f32 %v3195, %v3291
        %v3296 = vadd.f32 %v3196, %v3292
        %3297 = vrot.lane.b32.xlu0 %v2395, 99
        %v3298 = vpop.permute.xlu0 %3297
        %3299 = vrot.lane.b32.xlu0 %v2397, 99
        %v3300 = vpop.permute.xlu0 %3299
        %3301 = vrot.lane.b32.xlu0 %v2396, 99
        %v3302 = vpop.permute.xlu0 %3301
        %3303 = vrot.lane.b32.xlu0 %v2398, 99
        %v3304 = vpop.permute.xlu0 %3303
        %v3305 = vsel %vm1243, %v3298, %v3302
        %v3306 = vsel %vm1243, %v3300, %v3304
        %v3307 = vsel %vm1243, %v3302, %v3298
        %v3308 = vsel %vm1243, %v3304, %v3300
        %s3309 = scalar_lea.vmem [#allocation5], 2688
        %v3310 = vld [vmem:[%s3309] sm:$0xff]
        %v3311 = vld [vmem:[%s3309 + $0x8] sm:$0xff]
        %v3312 = vld [vmem:[%s3309 + $0x10] sm:$0xff]
        %v3313 = vld [vmem:[%s3309 + $0x18] sm:$0xff]
        %v3314 = vmul.f32 %v3305, %v3310
        %v3315 = vmul.f32 %v3307, %v3311
        %v3316 = vmul.f32 %v3306, %v3312
        %v3317 = vmul.f32 %v3308, %v3313
        %v3318 = vadd.f32 %v3218, %v3314
        %v3319 = vadd.f32 %v3219, %v3315
        %v3320 = vadd.f32 %v3220, %v3316
        %v3321 = vadd.f32 %v3221, %v3317
        %3322 = vrot.lane.b32.xlu0 %v2395, 98
        %v3323 = vpop.permute.xlu0 %3322
        %3324 = vrot.lane.b32.xlu0 %v2397, 98
        %v3325 = vpop.permute.xlu0 %3324
        %3326 = vrot.lane.b32.xlu0 %v2396, 98
        %v3327 = vpop.permute.xlu0 %3326
        %3328 = vrot.lane.b32.xlu0 %v2398, 98
        %v3329 = vpop.permute.xlu0 %3328
        %v3330 = vsel %vm1269, %v3323, %v3327
        %v3331 = vsel %vm1269, %v3325, %v3329
        %v3332 = vsel %vm1269, %v3327, %v3323
        %v3333 = vsel %vm1269, %v3329, %v3325
        %s3334 = scalar_lea.vmem [#allocation5], 2720
        %v3335 = vld [vmem:[%s3334] sm:$0xff]
        %v3336 = vld [vmem:[%s3334 + $0x8] sm:$0xff]
        %v3337 = vld [vmem:[%s3334 + $0x10] sm:$0xff]
        %v3338 = vld [vmem:[%s3334 + $0x18] sm:$0xff]
        %v3339 = vmul.f32 %v3330, %v3335
        %v3340 = vmul.f32 %v3332, %v3336
        %v3341 = vmul.f32 %v3331, %v3337
        %v3342 = vmul.f32 %v3333, %v3338
        %v3343 = vadd.f32 %v3243, %v3339
        %v3344 = vadd.f32 %v3244, %v3340
        %v3345 = vadd.f32 %v3245, %v3341
        %v3346 = vadd.f32 %v3246, %v3342
        %3347 = vrot.lane.b32.xlu0 %v2395, 97
        %v3348 = vpop.permute.xlu0 %3347
        %3349 = vrot.lane.b32.xlu0 %v2397, 97
        %v3350 = vpop.permute.xlu0 %3349
        %3351 = vrot.lane.b32.xlu0 %v2396, 97
        %v3352 = vpop.permute.xlu0 %3351
        %3353 = vrot.lane.b32.xlu0 %v2398, 97
        %v3354 = vpop.permute.xlu0 %3353
        %v3355 = vsel %vm1295, %v3348, %v3352
        %v3356 = vsel %vm1295, %v3350, %v3354
        %v3357 = vsel %vm1295, %v3352, %v3348
        %v3358 = vsel %vm1295, %v3354, %v3350
        %s3359 = scalar_lea.vmem [#allocation5], 2752
        %v3360 = vld [vmem:[%s3359] sm:$0xff]
        %v3361 = vld [vmem:[%s3359 + $0x8] sm:$0xff]
        %v3362 = vld [vmem:[%s3359 + $0x10] sm:$0xff]
        %v3363 = vld [vmem:[%s3359 + $0x18] sm:$0xff]
        %v3364 = vmul.f32 %v3355, %v3360
        %v3365 = vmul.f32 %v3357, %v3361
        %v3366 = vmul.f32 %v3356, %v3362
        %v3367 = vmul.f32 %v3358, %v3363
        %v3368 = vadd.f32 %v3268, %v3364
        %v3369 = vadd.f32 %v3269, %v3365
        %v3370 = vadd.f32 %v3270, %v3366
        %v3371 = vadd.f32 %v3271, %v3367
        %3372 = vrot.lane.b32.xlu0 %v2395, 96
        %v3373 = vpop.permute.xlu0 %3372
        %3374 = vrot.lane.b32.xlu0 %v2397, 96
        %v3375 = vpop.permute.xlu0 %3374
        %3376 = vrot.lane.b32.xlu0 %v2396, 96
        %v3377 = vpop.permute.xlu0 %3376
        %3378 = vrot.lane.b32.xlu0 %v2398, 96
        %v3379 = vpop.permute.xlu0 %3378
        %v3380 = vsel %vm1321, %v3373, %v3377
        %v3381 = vsel %vm1321, %v3375, %v3379
        %v3382 = vsel %vm1321, %v3377, %v3373
        %v3383 = vsel %vm1321, %v3379, %v3375
        %s3384 = scalar_lea.vmem [#allocation5], 2784
        %v3385 = vld [vmem:[%s3384] sm:$0xff]
        %v3386 = vld [vmem:[%s3384 + $0x8] sm:$0xff]
        %v3387 = vld [vmem:[%s3384 + $0x10] sm:$0xff]
        %v3388 = vld [vmem:[%s3384 + $0x18] sm:$0xff]
        %v3389 = vmul.f32 %v3380, %v3385
        %v3390 = vmul.f32 %v3382, %v3386
        %v3391 = vmul.f32 %v3381, %v3387
        %v3392 = vmul.f32 %v3383, %v3388
        %v3393 = vadd.f32 %v3293, %v3389
        %v3394 = vadd.f32 %v3294, %v3390
        %v3395 = vadd.f32 %v3295, %v3391
        %v3396 = vadd.f32 %v3296, %v3392
        %3397 = vrot.lane.b32.xlu0 %v2395, 95
        %v3398 = vpop.permute.xlu0 %3397
        %3399 = vrot.lane.b32.xlu0 %v2397, 95
        %v3400 = vpop.permute.xlu0 %3399
        %3401 = vrot.lane.b32.xlu0 %v2396, 95
        %v3402 = vpop.permute.xlu0 %3401
        %3403 = vrot.lane.b32.xlu0 %v2398, 95
        %v3404 = vpop.permute.xlu0 %3403
        %v3405 = vsel %vm1347, %v3398, %v3402
        %v3406 = vsel %vm1347, %v3400, %v3404
        %v3407 = vsel %vm1347, %v3402, %v3398
        %v3408 = vsel %vm1347, %v3404, %v3400
        %s3409 = scalar_lea.vmem [#allocation5], 2816
        %v3410 = vld [vmem:[%s3409] sm:$0xff]
        %v3411 = vld [vmem:[%s3409 + $0x8] sm:$0xff]
        %v3412 = vld [vmem:[%s3409 + $0x10] sm:$0xff]
        %v3413 = vld [vmem:[%s3409 + $0x18] sm:$0xff]
        %v3414 = vmul.f32 %v3405, %v3410
        %v3415 = vmul.f32 %v3407, %v3411
        %v3416 = vmul.f32 %v3406, %v3412
        %v3417 = vmul.f32 %v3408, %v3413
        %v3418 = vadd.f32 %v3318, %v3414
        %v3419 = vadd.f32 %v3319, %v3415
        %v3420 = vadd.f32 %v3320, %v3416
        %v3421 = vadd.f32 %v3321, %v3417
        %3422 = vrot.lane.b32.xlu0 %v2395, 94
        %v3423 = vpop.permute.xlu0 %3422
        %3424 = vrot.lane.b32.xlu0 %v2397, 94
        %v3425 = vpop.permute.xlu0 %3424
        %3426 = vrot.lane.b32.xlu0 %v2396, 94
        %v3427 = vpop.permute.xlu0 %3426
        %3428 = vrot.lane.b32.xlu0 %v2398, 94
        %v3429 = vpop.permute.xlu0 %3428
        %v3430 = vsel %vm1373, %v3423, %v3427
        %v3431 = vsel %vm1373, %v3425, %v3429
        %v3432 = vsel %vm1373, %v3427, %v3423
        %v3433 = vsel %vm1373, %v3429, %v3425
        %s3434 = scalar_lea.vmem [#allocation5], 2848
        %v3435 = vld [vmem:[%s3434] sm:$0xff]
        %v3436 = vld [vmem:[%s3434 + $0x8] sm:$0xff]
        %v3437 = vld [vmem:[%s3434 + $0x10] sm:$0xff]
        %v3438 = vld [vmem:[%s3434 + $0x18] sm:$0xff]
        %v3439 = vmul.f32 %v3430, %v3435
        %v3440 = vmul.f32 %v3432, %v3436
        %v3441 = vmul.f32 %v3431, %v3437
        %v3442 = vmul.f32 %v3433, %v3438
        %v3443 = vadd.f32 %v3343, %v3439
        %v3444 = vadd.f32 %v3344, %v3440
        %v3445 = vadd.f32 %v3345, %v3441
        %v3446 = vadd.f32 %v3346, %v3442
        %3447 = vrot.lane.b32.xlu0 %v2395, 93
        %v3448 = vpop.permute.xlu0 %3447
        %3449 = vrot.lane.b32.xlu0 %v2397, 93
        %v3450 = vpop.permute.xlu0 %3449
        %3451 = vrot.lane.b32.xlu0 %v2396, 93
        %v3452 = vpop.permute.xlu0 %3451
        %3453 = vrot.lane.b32.xlu0 %v2398, 93
        %v3454 = vpop.permute.xlu0 %3453
        %v3455 = vsel %vm1399, %v3448, %v3452
        %v3456 = vsel %vm1399, %v3450, %v3454
        %v3457 = vsel %vm1399, %v3452, %v3448
        %v3458 = vsel %vm1399, %v3454, %v3450
        %s3459 = scalar_lea.vmem [#allocation5], 2880
        %v3460 = vld [vmem:[%s3459] sm:$0xff]
        %v3461 = vld [vmem:[%s3459 + $0x8] sm:$0xff]
        %v3462 = vld [vmem:[%s3459 + $0x10] sm:$0xff]
        %v3463 = vld [vmem:[%s3459 + $0x18] sm:$0xff]
        %v3464 = vmul.f32 %v3455, %v3460
        %v3465 = vmul.f32 %v3457, %v3461
        %v3466 = vmul.f32 %v3456, %v3462
        %v3467 = vmul.f32 %v3458, %v3463
        %v3468 = vadd.f32 %v3368, %v3464
        %v3469 = vadd.f32 %v3369, %v3465
        %v3470 = vadd.f32 %v3370, %v3466
        %v3471 = vadd.f32 %v3371, %v3467
        %3472 = vrot.lane.b32.xlu0 %v2395, 83
        %v3473 = vpop.permute.xlu0 %3472
        %3474 = vrot.lane.b32.xlu0 %v2397, 83
        %v3475 = vpop.permute.xlu0 %3474
        %3476 = vrot.lane.b32.xlu0 %v2396, 83
        %v3477 = vpop.permute.xlu0 %3476
        %3478 = vrot.lane.b32.xlu0 %v2398, 83
        %v3479 = vpop.permute.xlu0 %3478
        %v3480 = vsel %vm1425, %v3473, %v3477
        %v3481 = vsel %vm1425, %v3475, %v3479
        %v3482 = vsel %vm1425, %v3477, %v3473
        %v3483 = vsel %vm1425, %v3479, %v3475
        %s3484 = scalar_lea.vmem [#allocation5], 2912
        %v3485 = vld [vmem:[%s3484] sm:$0xff]
        %v3486 = vld [vmem:[%s3484 + $0x8] sm:$0xff]
        %v3487 = vld [vmem:[%s3484 + $0x10] sm:$0xff]
        %v3488 = vld [vmem:[%s3484 + $0x18] sm:$0xff]
        %v3489 = vmul.f32 %v3480, %v3485
        %v3490 = vmul.f32 %v3482, %v3486
        %v3491 = vmul.f32 %v3481, %v3487
        %v3492 = vmul.f32 %v3483, %v3488
        %v3493 = vadd.f32 %v3393, %v3489
        %v3494 = vadd.f32 %v3394, %v3490
        %v3495 = vadd.f32 %v3395, %v3491
        %v3496 = vadd.f32 %v3396, %v3492
        %3497 = vrot.lane.b32.xlu0 %v2395, 82
        %v3498 = vpop.permute.xlu0 %3497
        %3499 = vrot.lane.b32.xlu0 %v2397, 82
        %v3500 = vpop.permute.xlu0 %3499
        %3501 = vrot.lane.b32.xlu0 %v2396, 82
        %v3502 = vpop.permute.xlu0 %3501
        %3503 = vrot.lane.b32.xlu0 %v2398, 82
        %v3504 = vpop.permute.xlu0 %3503
        %v3505 = vsel %vm1451, %v3498, %v3502
        %v3506 = vsel %vm1451, %v3500, %v3504
        %v3507 = vsel %vm1451, %v3502, %v3498
        %v3508 = vsel %vm1451, %v3504, %v3500
        %s3509 = scalar_lea.vmem [#allocation5], 2944
        %v3510 = vld [vmem:[%s3509] sm:$0xff]
        %v3511 = vld [vmem:[%s3509 + $0x8] sm:$0xff]
        %v3512 = vld [vmem:[%s3509 + $0x10] sm:$0xff]
        %v3513 = vld [vmem:[%s3509 + $0x18] sm:$0xff]
        %v3514 = vmul.f32 %v3505, %v3510
        %v3515 = vmul.f32 %v3507, %v3511
        %v3516 = vmul.f32 %v3506, %v3512
        %v3517 = vmul.f32 %v3508, %v3513
        %v3518 = vadd.f32 %v3418, %v3514
        %v3519 = vadd.f32 %v3419, %v3515
        %v3520 = vadd.f32 %v3420, %v3516
        %v3521 = vadd.f32 %v3421, %v3517
        %3522 = vrot.lane.b32.xlu0 %v2395, 81
        %v3523 = vpop.permute.xlu0 %3522
        %3524 = vrot.lane.b32.xlu0 %v2397, 81
        %v3525 = vpop.permute.xlu0 %3524
        %3526 = vrot.lane.b32.xlu0 %v2396, 81
        %v3527 = vpop.permute.xlu0 %3526
        %3528 = vrot.lane.b32.xlu0 %v2398, 81
        %v3529 = vpop.permute.xlu0 %3528
        %v3530 = vsel %vm1477, %v3523, %v3527
        %v3531 = vsel %vm1477, %v3525, %v3529
        %v3532 = vsel %vm1477, %v3527, %v3523
        %v3533 = vsel %vm1477, %v3529, %v3525
        %s3534 = scalar_lea.vmem [#allocation5], 2976
        %v3535 = vld [vmem:[%s3534] sm:$0xff]
        %v3536 = vld [vmem:[%s3534 + $0x8] sm:$0xff]
        %v3537 = vld [vmem:[%s3534 + $0x10] sm:$0xff]
        %v3538 = vld [vmem:[%s3534 + $0x18] sm:$0xff]
        %v3539 = vmul.f32 %v3530, %v3535
        %v3540 = vmul.f32 %v3532, %v3536
        %v3541 = vmul.f32 %v3531, %v3537
        %v3542 = vmul.f32 %v3533, %v3538
        %v3543 = vadd.f32 %v3443, %v3539
        %v3544 = vadd.f32 %v3444, %v3540
        %v3545 = vadd.f32 %v3445, %v3541
        %v3546 = vadd.f32 %v3446, %v3542
        %3547 = vrot.lane.b32.xlu0 %v2395, 80
        %v3548 = vpop.permute.xlu0 %3547
        %3549 = vrot.lane.b32.xlu0 %v2397, 80
        %v3550 = vpop.permute.xlu0 %3549
        %3551 = vrot.lane.b32.xlu0 %v2396, 80
        %v3552 = vpop.permute.xlu0 %3551
        %3553 = vrot.lane.b32.xlu0 %v2398, 80
        %v3554 = vpop.permute.xlu0 %3553
        %v3555 = vsel %vm1503, %v3548, %v3552
        %v3556 = vsel %vm1503, %v3550, %v3554
        %v3557 = vsel %vm1503, %v3552, %v3548
        %v3558 = vsel %vm1503, %v3554, %v3550
        %s3559 = scalar_lea.vmem [#allocation5], 3008
        %v3560 = vld [vmem:[%s3559] sm:$0xff]
        %v3561 = vld [vmem:[%s3559 + $0x8] sm:$0xff]
        %v3562 = vld [vmem:[%s3559 + $0x10] sm:$0xff]
        %v3563 = vld [vmem:[%s3559 + $0x18] sm:$0xff]
        %v3564 = vmul.f32 %v3555, %v3560
        %v3565 = vmul.f32 %v3557, %v3561
        %v3566 = vmul.f32 %v3556, %v3562
        %v3567 = vmul.f32 %v3558, %v3563
        %v3568 = vadd.f32 %v3468, %v3564
        %v3569 = vadd.f32 %v3469, %v3565
        %v3570 = vadd.f32 %v3470, %v3566
        %v3571 = vadd.f32 %v3471, %v3567
        %3572 = vrot.lane.b32.xlu0 %v2395, 79
        %v3573 = vpop.permute.xlu0 %3572
        %3574 = vrot.lane.b32.xlu0 %v2397, 79
        %v3575 = vpop.permute.xlu0 %3574
        %3576 = vrot.lane.b32.xlu0 %v2396, 79
        %v3577 = vpop.permute.xlu0 %3576
        %3578 = vrot.lane.b32.xlu0 %v2398, 79
        %v3579 = vpop.permute.xlu0 %3578
        %v3580 = vsel %vm1529, %v3573, %v3577
        %v3581 = vsel %vm1529, %v3575, %v3579
        %v3582 = vsel %vm1529, %v3577, %v3573
        %v3583 = vsel %vm1529, %v3579, %v3575
        %s3584 = scalar_lea.vmem [#allocation5], 3040
        %v3585 = vld [vmem:[%s3584] sm:$0xff]
        %v3586 = vld [vmem:[%s3584 + $0x8] sm:$0xff]
        %v3587 = vld [vmem:[%s3584 + $0x10] sm:$0xff]
        %v3588 = vld [vmem:[%s3584 + $0x18] sm:$0xff]
        %v3589 = vmul.f32 %v3580, %v3585
        %v3590 = vmul.f32 %v3582, %v3586
        %v3591 = vmul.f32 %v3581, %v3587
        %v3592 = vmul.f32 %v3583, %v3588
        %v3593 = vadd.f32 %v3493, %v3589
        %v3594 = vadd.f32 %v3494, %v3590
        %v3595 = vadd.f32 %v3495, %v3591
        %v3596 = vadd.f32 %v3496, %v3592
        %3597 = vrot.lane.b32.xlu0 %v2395, 78
        %v3598 = vpop.permute.xlu0 %3597
        %3599 = vrot.lane.b32.xlu0 %v2397, 78
        %v3600 = vpop.permute.xlu0 %3599
        %3601 = vrot.lane.b32.xlu0 %v2396, 78
        %v3602 = vpop.permute.xlu0 %3601
        %3603 = vrot.lane.b32.xlu0 %v2398, 78
        %v3604 = vpop.permute.xlu0 %3603
        %v3605 = vsel %vm1555, %v3598, %v3602
        %v3606 = vsel %vm1555, %v3600, %v3604
        %v3607 = vsel %vm1555, %v3602, %v3598
        %v3608 = vsel %vm1555, %v3604, %v3600
        %s3609 = scalar_lea.vmem [#allocation5], 3072
        %v3610 = vld [vmem:[%s3609] sm:$0xff]
        %v3611 = vld [vmem:[%s3609 + $0x8] sm:$0xff]
        %v3612 = vld [vmem:[%s3609 + $0x10] sm:$0xff]
        %v3613 = vld [vmem:[%s3609 + $0x18] sm:$0xff]
        %v3614 = vmul.f32 %v3605, %v3610
        %v3615 = vmul.f32 %v3607, %v3611
        %v3616 = vmul.f32 %v3606, %v3612
        %v3617 = vmul.f32 %v3608, %v3613
        %v3618 = vadd.f32 %v3518, %v3614
        %v3619 = vadd.f32 %v3519, %v3615
        %v3620 = vadd.f32 %v3520, %v3616
        %v3621 = vadd.f32 %v3521, %v3617
        %3622 = vrot.lane.b32.xlu0 %v2395, 77
        %v3623 = vpop.permute.xlu0 %3622
        %3624 = vrot.lane.b32.xlu0 %v2397, 77
        %v3625 = vpop.permute.xlu0 %3624
        %3626 = vrot.lane.b32.xlu0 %v2396, 77
        %v3627 = vpop.permute.xlu0 %3626
        %3628 = vrot.lane.b32.xlu0 %v2398, 77
        %v3629 = vpop.permute.xlu0 %3628
        %v3630 = vsel %vm1581, %v3623, %v3627
        %v3631 = vsel %vm1581, %v3625, %v3629
        %v3632 = vsel %vm1581, %v3627, %v3623
        %v3633 = vsel %vm1581, %v3629, %v3625
        %s3634 = scalar_lea.vmem [#allocation5], 3104
        %v3635 = vld [vmem:[%s3634] sm:$0xff]
        %v3636 = vld [vmem:[%s3634 + $0x8] sm:$0xff]
        %v3637 = vld [vmem:[%s3634 + $0x10] sm:$0xff]
        %v3638 = vld [vmem:[%s3634 + $0x18] sm:$0xff]
        %v3639 = vmul.f32 %v3630, %v3635
        %v3640 = vmul.f32 %v3632, %v3636
        %v3641 = vmul.f32 %v3631, %v3637
        %v3642 = vmul.f32 %v3633, %v3638
        %v3643 = vadd.f32 %v3543, %v3639
        %v3644 = vadd.f32 %v3544, %v3640
        %v3645 = vadd.f32 %v3545, %v3641
        %v3646 = vadd.f32 %v3546, %v3642
        %v3647 = vadd.f32 %v3643, %v3568
        %v3648 = vadd.f32 %v3644, %v3569
        %v3649 = vadd.f32 %v3645, %v3570
        %v3650 = vadd.f32 %v3646, %v3571
        %v3651 = vadd.f32 %v3593, %v3618
        %v3652 = vadd.f32 %v3594, %v3619
        %v3653 = vadd.f32 %v3595, %v3620
        %v3654 = vadd.f32 %v3596, %v3621
        %v3655 = vadd.f32 %v3647, %v3651
        %v3656 = vadd.f32 %v3648, %v3652
        %v3657 = vadd.f32 %v3649, %v3653
        %v3658 = vadd.f32 %v3650, %v3654
        %3660 = vset.pattern.permute.xlu0 0
        %3661 = vperm.xlu0 %3660, %v2400
        %v3662 = vpop.permute.xlu0 %3661
        %3665 = vset.pattern.permute.xlu0 0
        %3666 = vperm.xlu0 %3665, %v2401
        %v3667 = vpop.permute.xlu0 %3666
        %v3669 = vadd.f32 %v3655, %v3662
        %v3670 = vadd.f32 %v3656, %v3662
        %v3671 = vadd.f32 %v3657, %v3667
        %v3672 = vadd.f32 %v3658, %v3667
        %v3673 = vrot.slane %v3669, 4
        %v3674 = vadd.f32 %v3669, %v3673
        %v3675 = vrot.slane %v3674, 2
        %v3676 = vadd.f32 %v3674, %v3675
        %v3677 = vrot.slane %v3676, 1
        %v3678 = vadd.f32 %v3676, %v3677
        %v3679 = vrot.slane %v3670, 4
        %v3680 = vadd.f32 %v3670, %v3679
        %v3681 = vrot.slane %v3680, 2
        %v3682 = vadd.f32 %v3680, %v3681
        %v3683 = vrot.slane %v3682, 1
        %v3684 = vadd.f32 %v3682, %v3683
        %v3685 = vmul.f32 %v3678, %v1637
        %v3686 = vmul.f32 %v3684, %v1637
        %v3687 = vsub.f32 %v3669, %v3685
        %v3688 = vsub.f32 %v3670, %v3686
        %v3689 = vmul.f32 %v3687, %v3687
        %v3690 = vmul.f32 %v3688, %v3688
        %v3691 = vrot.slane %v3689, 4
        %v3692 = vadd.f32 %v3689, %v3691
        %v3693 = vrot.slane %v3692, 2
        %v3694 = vadd.f32 %v3692, %v3693
        %v3695 = vrot.slane %v3694, 1
        %v3696 = vadd.f32 %v3694, %v3695
        %v3697 = vrot.slane %v3690, 4
        %v3698 = vadd.f32 %v3690, %v3697
        %v3699 = vrot.slane %v3698, 2
        %v3700 = vadd.f32 %v3698, %v3699
        %v3701 = vrot.slane %v3700, 1
        %v3702 = vadd.f32 %v3700, %v3701
        %v3703 = vmul.f32 %v3696, %v1637
        %v3704 = vmul.f32 %v3702, %v1637
        %v3705 = vadd.f32 %v3703, 1e-05
        %v3706 = vadd.f32 %v3704, 1e-05
        %v3707 = vrsqrt.pop %v3705
        %v3708 = vrsqrt.pop %v3706
        %v3709 = vmul.f32 %v3687, %v3707
        %v3710 = vmul.f32 %v3688, %v3708
        %v3711 = vrot.slane %v3671, 4
        %v3712 = vadd.f32 %v3671, %v3711
        %v3713 = vrot.slane %v3712, 2
        %v3714 = vadd.f32 %v3712, %v3713
        %v3715 = vrot.slane %v3714, 1
        %v3716 = vadd.f32 %v3714, %v3715
        %v3717 = vrot.slane %v3672, 4
        %v3718 = vadd.f32 %v3672, %v3717
        %v3719 = vrot.slane %v3718, 2
        %v3720 = vadd.f32 %v3718, %v3719
        %v3721 = vrot.slane %v3720, 1
        %v3722 = vadd.f32 %v3720, %v3721
        %v3723 = vmul.f32 %v3716, %v1637
        %v3724 = vmul.f32 %v3722, %v1637
        %v3725 = vsub.f32 %v3671, %v3723
        %v3726 = vsub.f32 %v3672, %v3724
        %v3727 = vmul.f32 %v3725, %v3725
        %v3728 = vmul.f32 %v3726, %v3726
        %v3729 = vrot.slane %v3727, 4
        %v3730 = vadd.f32 %v3727, %v3729
        %v3731 = vrot.slane %v3730, 2
        %v3732 = vadd.f32 %v3730, %v3731
        %v3733 = vrot.slane %v3732, 1
        %v3734 = vadd.f32 %v3732, %v3733
        %v3735 = vrot.slane %v3728, 4
        %v3736 = vadd.f32 %v3728, %v3735
        %v3737 = vrot.slane %v3736, 2
        %v3738 = vadd.f32 %v3736, %v3737
        %v3739 = vrot.slane %v3738, 1
        %v3740 = vadd.f32 %v3738, %v3739
        %v3741 = vmul.f32 %v3734, %v1637
        %v3742 = vmul.f32 %v3740, %v1637
        %v3743 = vadd.f32 %v3741, 1e-05
        %v3744 = vadd.f32 %v3742, 1e-05
        %v3745 = vrsqrt.pop %v3743
        %v3746 = vrsqrt.pop %v3744
        %v3747 = vmul.f32 %v3725, %v3745
        %v3748 = vmul.f32 %v3726, %v3746
        %3750 = vset.pattern.permute.xlu0 0
        %3751 = vperm.xlu0 %3750, %v2403
        %v3752 = vpop.permute.xlu0 %3751
        %3755 = vset.pattern.permute.xlu0 0
        %3756 = vperm.xlu0 %3755, %v2404
        %v3757 = vpop.permute.xlu0 %3756
        %v3759 = vmul.f32 %v3709, %v3752
        %v3760 = vmul.f32 %v3710, %v3752
        %v3761 = vmul.f32 %v3747, %v3757
        %v3762 = vmul.f32 %v3748, %v3757
        %3764 = vset.pattern.permute.xlu0 0
        %3765 = vperm.xlu0 %3764, %v2406
        %v3766 = vpop.permute.xlu0 %3765
        %3769 = vset.pattern.permute.xlu0 0
        %3770 = vperm.xlu0 %3769, %v2407
        %v3771 = vpop.permute.xlu0 %3770
        %v3773 = vadd.f32 %v3759, %v3766
        %v3774 = vadd.f32 %v3760, %v3766
        %v3775 = vadd.f32 %v3761, %v3771
        %v3776 = vadd.f32 %v3762, %v3771
        %3778 = vset.pattern.permute.xlu0 0
        %3779 = vperm.xlu0 %3778, %v2412
        %v3780 = vpop.permute.xlu0 %3779
        %3783 = vset.pattern.permute.xlu0 0
        %3784 = vperm.xlu0 %3783, %v2413
        %v3785 = vpop.permute.xlu0 %3784
        %3788 = vset.pattern.permute.xlu0 0
        %3789 = vperm.xlu0 %3788, %v2414
        %v3790 = vpop.permute.xlu0 %3789
        %3793 = vset.pattern.permute.xlu0 0
        %3794 = vperm.xlu0 %3793, %v2415
        %v3795 = vpop.permute.xlu0 %3794
        %3798 = vset.pattern.permute.xlu0 0
        %3799 = vperm.xlu0 %3798, %v2416
        %v3800 = vpop.permute.xlu0 %3799
        %3803 = vset.pattern.permute.xlu0 0
        %3804 = vperm.xlu0 %3803, %v2417
        %v3805 = vpop.permute.xlu0 %3804
        %3808 = vset.pattern.permute.xlu0 0
        %3809 = vperm.xlu0 %3808, %v2418
        %v3810 = vpop.permute.xlu0 %3809
        %3813 = vset.pattern.permute.xlu0 0
        %3814 = vperm.xlu0 %3813, %v2419
        %v3815 = vpop.permute.xlu0 %3814
        %v3818 = vsel %vm1770, %v2439, 0
        %v3821 = vsel %vm1770, %v2440, 0
        %v3824 = vsel %vm1770, %v2441, 0
        %v3827 = vsel %vm1770, %v2442, 0
        %v3830 = vsel %vm1770, %v2443, 0
        %v3833 = vsel %vm1770, %v2444, 0
        %v3836 = vsel %vm1770, %v2445, 0
        %v3839 = vsel %vm1770, %v2446, 0
        %3841 = vmatprep.subr.mxu0 %v3774
        %3842 = vmatpush1.msra.mxu0 %v3773
        %3843 = vmatprep.subr.mxu0 %v3776
        %3844 = vmatpush1.msra.mxu0 %v3775
        %3845 = vmatprep.subr.mxu0 0.0
        %3846 = vmatpush1.msra.mxu0 0.0
        %3847 = vmatprep.subr.mxu0 0.0
        %3848 = vmatpush1.msra.mxu0 0.0
        %3849 = vmatprep.subr.mxu0 0.0
        %3850 = vmatpush1.msra.mxu0 0.0
        %3851 = vmatprep.subr.mxu0 0.0
        %3852 = vmatpush1.msra.mxu0 0.0
        %3853 = vmatprep.subr.mxu0 0.0
        %3854 = vmatpush1.msra.mxu0 0.0
        %3855 = vmatprep.subr.mxu0 0.0
        %3856 = vmatpush1.msra.mxu0 0.0
        %3857 = vmatprep.subr.mxu0 0.0
        %3858 = vmatpush1.msra.mxu0 0.0
        %3859 = vmatprep.subr.mxu0 0.0
        %3860 = vmatpush1.msra.mxu0 0.0
        %3861 = vmatprep.subr.mxu0 0.0
        %3862 = vmatpush1.msra.mxu0 0.0
        %3863 = vmatprep.subr.mxu0 0.0
        %3864 = vmatpush1.msra.mxu0 0.0
        %3865 = vmatprep.subr.mxu0 0.0
        %3866 = vmatpush1.msra.mxu0 0.0
        %3867 = vmatprep.subr.mxu0 0.0
        %3868 = vmatpush1.msra.mxu0 0.0
        %3869 = vmatprep.subr.mxu0 0.0
        %3870 = vmatpush1.msra.mxu0 0.0
        %3871 = vmatprep.subr.mxu0 0.0
        %3872 = vmatpush1.msra.mxu0 0.0
        %3873 = vmatprep.subr.mxu0 0.0
        %3874 = vmatpush1.msra.mxu0 0.0
        %3875 = vmatprep.subr.mxu0 0.0
        %3876 = vmatpush1.msra.mxu0 0.0
        %3877 = vmatprep.subr.mxu0 0.0
        %3878 = vmatpush1.msra.mxu0 0.0
        %3879 = vmatprep.subr.mxu0 0.0
        %3880 = vmatpush1.msra.mxu0 0.0
        %3881 = vmatprep.subr.mxu0 0.0
        %3882 = vmatpush1.msra.mxu0 0.0
        %3883 = vmatprep.subr.mxu0 0.0
        %3884 = vmatpush1.msra.mxu0 0.0
        %3885 = vmatprep.subr.mxu0 0.0
        %3886 = vmatpush1.msra.mxu0 0.0
        %3887 = vmatprep.subr.mxu0 0.0
        %3888 = vmatpush1.msra.mxu0 0.0
        %3889 = vmatprep.subr.mxu0 0.0
        %3890 = vmatpush1.msra.mxu0 0.0
        %3891 = vmatprep.subr.mxu0 0.0
        %3892 = vmatpush1.msra.mxu0 0.0
        %3893 = vmatprep.subr.mxu0 0.0
        %3894 = vmatpush1.msra.mxu0 0.0
        %3895 = vmatprep.subr.mxu0 0.0
        %3896 = vmatpush1.msra.mxu0 0.0
        %3897 = vmatprep.subr.mxu0 0.0
        %3898 = vmatpush1.msra.mxu0 0.0
        %3899 = vmatprep.subr.mxu0 0.0
        %3900 = vmatpush1.msra.mxu0 0.0
        %3901 = vmatprep.subr.mxu0 0.0
        %3902 = vmatpush1.msra.mxu0 0.0
        %3903 = vmatprep.subr.mxu0 0.0
        %3904 = vmatpush1.msra.mxu0 0.0
        %3905 = vmatprep.mubr.f32.mxu0 0.0
        %3906 = vmatmul.mubr.f32.gmra.mrb[0].mxu0 %v3818
        %v3907 = vpop.f32.mrb[0].mxu0
        %v3908 = vadd.f32 %v3780, %v3907
        %v3909 = vpop.f32.mrb[0].mxu0
        %v3910 = vadd.f32 %v3780, %v3909
        %3911 = vmatprep.mubr.f32.mxu0 0.0
        %3912 = vmatmul.mubr.f32.gmra.mrb[0].mxu0 %v3821
        %v3913 = vpop.f32.mrb[0].mxu0
        %v3914 = vadd.f32 %v3785, %v3913
        %v3915 = vpop.f32.mrb[0].mxu0
        %v3916 = vadd.f32 %v3785, %v3915
        %3917 = vmatprep.mubr.f32.mxu0 0.0
        %3918 = vmatmul.mubr.f32.gmra.mrb[0].mxu0 %v3824
        %v3919 = vpop.f32.mrb[0].mxu0
        %v3920 = vadd.f32 %v3790, %v3919
        %v3921 = vpop.f32.mrb[0].mxu0
        %v3922 = vadd.f32 %v3790, %v3921
        %3923 = vmatprep.mubr.f32.mxu0 0.0
        %3924 = vmatmul.mubr.f32.gmra.mrb[0].mxu0 %v3827
        %v3925 = vpop.f32.mrb[0].mxu0
        %v3926 = vadd.f32 %v3795, %v3925
        %v3927 = vpop.f32.mrb[0].mxu0
        %v3928 = vadd.f32 %v3795, %v3927
        %3929 = vmatprep.mubr.f32.mxu0 0.0
        %3930 = vmatmul.mubr.f32.gmra.mrb[0].mxu0 %v3830
        %v3931 = vpop.f32.mrb[0].mxu0
        %v3932 = vadd.f32 %v3800, %v3931
        %v3933 = vpop.f32.mrb[0].mxu0
        %v3934 = vadd.f32 %v3800, %v3933
        %3935 = vmatprep.mubr.f32.mxu0 0.0
        %3936 = vmatmul.mubr.f32.gmra.mrb[0].mxu0 %v3833
        %v3937 = vpop.f32.mrb[0].mxu0
        %v3938 = vadd.f32 %v3805, %v3937
        %v3939 = vpop.f32.mrb[0].mxu0
        %v3940 = vadd.f32 %v3805, %v3939
        %3941 = vmatprep.mubr.f32.mxu0 0.0
        %3942 = vmatmul.mubr.f32.gmra.mrb[0].mxu0 %v3836
        %v3943 = vpop.f32.mrb[0].mxu0
        %v3944 = vadd.f32 %v3810, %v3943
        %v3945 = vpop.f32.mrb[0].mxu0
        %v3946 = vadd.f32 %v3810, %v3945
        %3947 = vmatprep.mubr.f32.mxu0 0.0
        %3948 = vmatmul.mubr.f32.gmra.mrb[0].mxu0 %v3839
        %v3949 = vpop.f32.mrb[0].mxu0
        %v3950 = vadd.f32 %v3815, %v3949
        %v3951 = vpop.f32.mrb[0].mxu0
        %v3952 = vadd.f32 %v3815, %v3951
        %3953 = vdwg.mxu0
        %v3954 = vmul.f32 %v3908, 0.5
        %v3955 = vmul.f32 %v3910, 0.5
        %v3956 = vmul.f32 %v3914, 0.5
        %v3957 = vmul.f32 %v3916, 0.5
        %v3958 = vmul.f32 %v3920, 0.5
        %v3959 = vmul.f32 %v3922, 0.5
        %v3960 = vmul.f32 %v3926, 0.5
        %v3961 = vmul.f32 %v3928, 0.5
        %v3962 = vmul.f32 %v3932, 0.5
        %v3963 = vmul.f32 %v3934, 0.5
        %v3964 = vmul.f32 %v3938, 0.5
        %v3965 = vmul.f32 %v3940, 0.5
        %v3966 = vmul.f32 %v3944, 0.5
        %v3967 = vmul.f32 %v3946, 0.5
        %v3968 = vmul.f32 %v3950, 0.5
        %v3969 = vmul.f32 %v3952, 0.5
        %v3970 = vmul.f32 %v3908, 0.70710677
        %v3971 = vmul.f32 %v3910, 0.70710677
        %v3972 = vmul.f32 %v3914, 0.70710677
        %v3973 = vmul.f32 %v3916, 0.70710677
        %v3974 = vmul.f32 %v3920, 0.70710677
        %v3975 = vmul.f32 %v3922, 0.70710677
        %v3976 = vmul.f32 %v3926, 0.70710677
        %v3977 = vmul.f32 %v3928, 0.70710677
        %v3978 = vmul.f32 %v3932, 0.70710677
        %v3979 = vmul.f32 %v3934, 0.70710677
        %v3980 = vmul.f32 %v3938, 0.70710677
        %v3981 = vmul.f32 %v3940, 0.70710677
        %v3982 = vmul.f32 %v3944, 0.70710677
        %v3983 = vmul.f32 %v3946, 0.70710677
        %v3984 = vmul.f32 %v3950, 0.70710677
        %v3985 = vmul.f32 %v3952, 0.70710677
        %v3986 = verf.f32.pop %v3970
        %v3987 = verf.f32.pop %v3971
        %v3988 = verf.f32.pop %v3972
        %v3989 = verf.f32.pop %v3973
        %v3990 = verf.f32.pop %v3974
        %v3991 = verf.f32.pop %v3975
        %v3992 = verf.f32.pop %v3976
        %v3993 = verf.f32.pop %v3977
        %v3994 = verf.f32.pop %v3978
        %v3995 = verf.f32.pop %v3979
        %v3996 = verf.f32.pop %v3980
        %v3997 = verf.f32.pop %v3981
        %v3998 = verf.f32.pop %v3982
        %v3999 = verf.f32.pop %v3983
        %v4000 = verf.f32.pop %v3984
        %v4001 = verf.f32.pop %v3985
        %v4002 = vadd.f32 %v3986, 1.0
        %v4003 = vadd.f32 %v3987, 1.0
        %v4004 = vadd.f32 %v3988, 1.0
        %v4005 = vadd.f32 %v3989, 1.0
        %v4006 = vadd.f32 %v3990, 1.0
        %v4007 = vadd.f32 %v3991, 1.0
        %v4008 = vadd.f32 %v3992, 1.0
        %v4009 = vadd.f32 %v3993, 1.0
        %v4010 = vadd.f32 %v3994, 1.0
        %v4011 = vadd.f32 %v3995, 1.0
        %v4012 = vadd.f32 %v3996, 1.0
        %v4013 = vadd.f32 %v3997, 1.0
        %v4014 = vadd.f32 %v3998, 1.0
        %v4015 = vadd.f32 %v3999, 1.0
        %v4016 = vadd.f32 %v4000, 1.0
        %v4017 = vadd.f32 %v4001, 1.0
        %v4018 = vmul.f32 %v3954, %v4002
        %v4019 = vmul.f32 %v3955, %v4003
        %v4020 = vmul.f32 %v3956, %v4004
        %v4021 = vmul.f32 %v3957, %v4005
        %v4022 = vmul.f32 %v3958, %v4006
        %v4023 = vmul.f32 %v3959, %v4007
        %v4024 = vmul.f32 %v3960, %v4008
        %v4025 = vmul.f32 %v3961, %v4009
        %v4026 = vmul.f32 %v3962, %v4010
        %v4027 = vmul.f32 %v3963, %v4011
        %v4028 = vmul.f32 %v3964, %v4012
        %v4029 = vmul.f32 %v3965, %v4013
        %v4030 = vmul.f32 %v3966, %v4014
        %v4031 = vmul.f32 %v3967, %v4015
        %v4032 = vmul.f32 %v3968, %v4016
        %v4033 = vmul.f32 %v3969, %v4017
        %v4034 = vmul.f32 %v4018, %v4018
        %v4035 = vmul.f32 %v4019, %v4019
        %v4036 = vmul.f32 %v4020, %v4020
        %v4037 = vmul.f32 %v4021, %v4021
        %v4038 = vmul.f32 %v4022, %v4022
        %v4039 = vmul.f32 %v4023, %v4023
        %v4040 = vmul.f32 %v4024, %v4024
        %v4041 = vmul.f32 %v4025, %v4025
        %v4042 = vmul.f32 %v4026, %v4026
        %v4043 = vmul.f32 %v4027, %v4027
        %v4044 = vmul.f32 %v4028, %v4028
        %v4045 = vmul.f32 %v4029, %v4029
        %v4046 = vmul.f32 %v4030, %v4030
        %v4047 = vmul.f32 %v4031, %v4031
        %v4048 = vmul.f32 %v4032, %v4032
        %v4049 = vmul.f32 %v4033, %v4033
        %v4050 = vadd.f32 %v4034, %v4035
        %4051 = vadd.xlane.f32.xlu0 %v4050
        %v4052 = vpop.xlane.xlu0 %4051
        %v4053 = vadd.f32 %v4036, %v4037
        %4054 = vadd.xlane.f32.xlu0 %v4053
        %v4055 = vpop.xlane.xlu0 %4054
        %v4056 = vadd.f32 %v4038, %v4039
        %4057 = vadd.xlane.f32.xlu0 %v4056
        %v4058 = vpop.xlane.xlu0 %4057
        %v4059 = vadd.f32 %v4040, %v4041
        %4060 = vadd.xlane.f32.xlu0 %v4059
        %v4061 = vpop.xlane.xlu0 %4060
        %v4062 = vadd.f32 %v4042, %v4043
        %4063 = vadd.xlane.f32.xlu0 %v4062
        %v4064 = vpop.xlane.xlu0 %4063
        %v4065 = vadd.f32 %v4044, %v4045
        %4066 = vadd.xlane.f32.xlu0 %v4065
        %v4067 = vpop.xlane.xlu0 %4066
        %v4068 = vadd.f32 %v4046, %v4047
        %4069 = vadd.xlane.f32.xlu0 %v4068
        %v4070 = vpop.xlane.xlu0 %4069
        %v4071 = vadd.f32 %v4048, %v4049
        %4072 = vadd.xlane.f32.xlu0 %v4071
        %v4073 = vpop.xlane.xlu0 %4072
        %v4074 = vrsqrt.pop %v4052
        %v4075 = vmul.f32 %v4052, %v4074
        %vm4076 = vcmp.eq.f32.partialorder %v4052, inf
        %v4077 = vsel %vm4076, %v4052, %v4075
        %vm4078 = vcmp.eq.f32.partialorder %v4052, 0.0
        %v4079 = vand.u32 %v4052, 2147483648
        %v4080 = vsel %vm4078, %v4079, %v4077
        %v4081 = vrsqrt.pop %v4055
        %v4082 = vmul.f32 %v4055, %v4081
        %vm4083 = vcmp.eq.f32.partialorder %v4055, inf
        %v4084 = vsel %vm4083, %v4055, %v4082
        %vm4085 = vcmp.eq.f32.partialorder %v4055, 0.0
        %v4086 = vand.u32 %v4055, 2147483648
        %v4087 = vsel %vm4085, %v4086, %v4084
        %v4088 = vrsqrt.pop %v4058
        %v4089 = vmul.f32 %v4058, %v4088
        %vm4090 = vcmp.eq.f32.partialorder %v4058, inf
        %v4091 = vsel %vm4090, %v4058, %v4089
        %vm4092 = vcmp.eq.f32.partialorder %v4058, 0.0
        %v4093 = vand.u32 %v4058, 2147483648
        %v4094 = vsel %vm4092, %v4093, %v4091
        %v4095 = vrsqrt.pop %v4061
        %v4096 = vmul.f32 %v4061, %v4095
        %vm4097 = vcmp.eq.f32.partialorder %v4061, inf
        %v4098 = vsel %vm4097, %v4061, %v4096
        %vm4099 = vcmp.eq.f32.partialorder %v4061, 0.0
        %v4100 = vand.u32 %v4061, 2147483648
        %v4101 = vsel %vm4099, %v4100, %v4098
        %v4102 = vrsqrt.pop %v4064
        %v4103 = vmul.f32 %v4064, %v4102
        %vm4104 = vcmp.eq.f32.partialorder %v4064, inf
        %v4105 = vsel %vm4104, %v4064, %v4103
        %vm4106 = vcmp.eq.f32.partialorder %v4064, 0.0
        %v4107 = vand.u32 %v4064, 2147483648
        %v4108 = vsel %vm4106, %v4107, %v4105
        %v4109 = vrsqrt.pop %v4067
        %v4110 = vmul.f32 %v4067, %v4109
        %vm4111 = vcmp.eq.f32.partialorder %v4067, inf
        %v4112 = vsel %vm4111, %v4067, %v4110
        %vm4113 = vcmp.eq.f32.partialorder %v4067, 0.0
        %v4114 = vand.u32 %v4067, 2147483648
        %v4115 = vsel %vm4113, %v4114, %v4112
        %v4116 = vrsqrt.pop %v4070
        %v4117 = vmul.f32 %v4070, %v4116
        %vm4118 = vcmp.eq.f32.partialorder %v4070, inf
        %v4119 = vsel %vm4118, %v4070, %v4117
        %vm4120 = vcmp.eq.f32.partialorder %v4070, 0.0
        %v4121 = vand.u32 %v4070, 2147483648
        %v4122 = vsel %vm4120, %v4121, %v4119
        %v4123 = vrsqrt.pop %v4073
        %v4124 = vmul.f32 %v4073, %v4123
        %vm4125 = vcmp.eq.f32.partialorder %v4073, inf
        %v4126 = vsel %vm4125, %v4073, %v4124
        %vm4127 = vcmp.eq.f32.partialorder %v4073, 0.0
        %v4128 = vand.u32 %v4073, 2147483648
        %v4129 = vsel %vm4127, %v4128, %v4126
        %v4130 = vadd.f32 %v4080, %v4087
        %v4131 = vadd.f32 %v4130, %v4094
        %v4132 = vadd.f32 %v4131, %v4101
        %v4133 = vrot.slane %v4132, 4
        %v4134 = vadd.f32 %v4132, %v4133
        %v4135 = vrot.slane %v4134, 2
        %v4136 = vadd.f32 %v4134, %v4135
        %v4137 = vrot.slane %v4136, 1
        %v4138 = vadd.f32 %v4136, %v4137
        %v4139 = vmul.f32 %v4138, %v2093
        %v4140 = vadd.f32 %v4108, %v4115
        %v4141 = vadd.f32 %v4140, %v4122
        %v4142 = vadd.f32 %v4141, %v4129
        %v4143 = vrot.slane %v4142, 4
        %v4144 = vadd.f32 %v4142, %v4143
        %v4145 = vrot.slane %v4144, 2
        %v4146 = vadd.f32 %v4144, %v4145
        %v4147 = vrot.slane %v4146, 1
        %v4148 = vadd.f32 %v4146, %v4147
        %v4149 = vmul.f32 %v4148, %v2093
        %v4150 = vadd.f32 %v4139, 1e-06
        %v4151 = vadd.f32 %v4149, 1e-06
        %v4152 = vrcp.pop %v4150
        %v4153 = vmul.f32 %v4080, %v4152
        %v4154 = vmul.f32 %v4087, %v4152
        %v4155 = vmul.f32 %v4094, %v4152
        %v4156 = vmul.f32 %v4101, %v4152
        %v4157 = vrcp.pop %v4151
        %v4158 = vmul.f32 %v4108, %v4157
        %v4159 = vmul.f32 %v4115, %v4157
        %v4160 = vmul.f32 %v4122, %v4157
        %v4161 = vmul.f32 %v4129, %v4157
        %4163 = vset.pattern.permute.xlu0 0
        %4164 = vperm.xlu0 %4163, %v4153
        %v4165 = vpop.permute.xlu0 %4164
        %4168 = vset.pattern.permute.xlu0 0
        %4169 = vperm.xlu0 %4168, %v4154
        %v4170 = vpop.permute.xlu0 %4169
        %4173 = vset.pattern.permute.xlu0 0
        %4174 = vperm.xlu0 %4173, %v4155
        %v4175 = vpop.permute.xlu0 %4174
        %4178 = vset.pattern.permute.xlu0 0
        %4179 = vperm.xlu0 %4178, %v4156
        %v4180 = vpop.permute.xlu0 %4179
        %4183 = vset.pattern.permute.xlu0 0
        %4184 = vperm.xlu0 %4183, %v4158
        %v4185 = vpop.permute.xlu0 %4184
        %4188 = vset.pattern.permute.xlu0 0
        %4189 = vperm.xlu0 %4188, %v4159
        %v4190 = vpop.permute.xlu0 %4189
        %4193 = vset.pattern.permute.xlu0 0
        %4194 = vperm.xlu0 %4193, %v4160
        %v4195 = vpop.permute.xlu0 %4194
        %4198 = vset.pattern.permute.xlu0 0
        %4199 = vperm.xlu0 %4198, %v4161
        %v4200 = vpop.permute.xlu0 %4199
        %v4202 = vmul.f32 %v4018, %v4165
        %v4203 = vmul.f32 %v4019, %v4165
        %v4204 = vmul.f32 %v4020, %v4170
        %v4205 = vmul.f32 %v4021, %v4170
        %v4206 = vmul.f32 %v4022, %v4175
        %v4207 = vmul.f32 %v4023, %v4175
        %v4208 = vmul.f32 %v4024, %v4180
        %v4209 = vmul.f32 %v4025, %v4180
        %v4210 = vmul.f32 %v4026, %v4185
        %v4211 = vmul.f32 %v4027, %v4185
        %v4212 = vmul.f32 %v4028, %v4190
        %v4213 = vmul.f32 %v4029, %v4190
        %v4214 = vmul.f32 %v4030, %v4195
        %v4215 = vmul.f32 %v4031, %v4195
        %v4216 = vmul.f32 %v4032, %v4200
        %v4217 = vmul.f32 %v4033, %v4200
        %4219 = vset.pattern.permute.xlu0 0
        %4220 = vperm.xlu0 %4219, %v2421
        %v4221 = vpop.permute.xlu0 %4220
        %4224 = vset.pattern.permute.xlu0 0
        %4225 = vperm.xlu0 %4224, %v2422
        %v4226 = vpop.permute.xlu0 %4225
        %4229 = vset.pattern.permute.xlu0 0
        %4230 = vperm.xlu0 %4229, %v2423
        %v4231 = vpop.permute.xlu0 %4230
        %4234 = vset.pattern.permute.xlu0 0
        %4235 = vperm.xlu0 %4234, %v2424
        %v4236 = vpop.permute.xlu0 %4235
        %4239 = vset.pattern.permute.xlu0 0
        %4240 = vperm.xlu0 %4239, %v2425
        %v4241 = vpop.permute.xlu0 %4240
        %4244 = vset.pattern.permute.xlu0 0
        %4245 = vperm.xlu0 %4244, %v2426
        %v4246 = vpop.permute.xlu0 %4245
        %4249 = vset.pattern.permute.xlu0 0
        %4250 = vperm.xlu0 %4249, %v2427
        %v4251 = vpop.permute.xlu0 %4250
        %4254 = vset.pattern.permute.xlu0 0
        %4255 = vperm.xlu0 %4254, %v2428
        %v4256 = vpop.permute.xlu0 %4255
        %v4258 = vmul.f32 %v4221, %v4202
        %v4259 = vmul.f32 %v4221, %v4203
        %v4260 = vmul.f32 %v4226, %v4204
        %v4261 = vmul.f32 %v4226, %v4205
        %v4262 = vmul.f32 %v4231, %v4206
        %v4263 = vmul.f32 %v4231, %v4207
        %v4264 = vmul.f32 %v4236, %v4208
        %v4265 = vmul.f32 %v4236, %v4209
        %v4266 = vmul.f32 %v4241, %v4210
        %v4267 = vmul.f32 %v4241, %v4211
        %v4268 = vmul.f32 %v4246, %v4212
        %v4269 = vmul.f32 %v4246, %v4213
        %v4270 = vmul.f32 %v4251, %v4214
        %v4271 = vmul.f32 %v4251, %v4215
        %v4272 = vmul.f32 %v4256, %v4216
        %v4273 = vmul.f32 %v4256, %v4217
        %4275 = vset.pattern.permute.xlu0 0
        %4276 = vperm.xlu0 %4275, %v2430
        %v4277 = vpop.permute.xlu0 %4276
        %4280 = vset.pattern.permute.xlu0 0
        %4281 = vperm.xlu0 %4280, %v2431
        %v4282 = vpop.permute.xlu0 %4281
        %4285 = vset.pattern.permute.xlu0 0
        %4286 = vperm.xlu0 %4285, %v2432
        %v4287 = vpop.permute.xlu0 %4286
        %4290 = vset.pattern.permute.xlu0 0
        %4291 = vperm.xlu0 %4290, %v2433
        %v4292 = vpop.permute.xlu0 %4291
        %4295 = vset.pattern.permute.xlu0 0
        %4296 = vperm.xlu0 %4295, %v2434
        %v4297 = vpop.permute.xlu0 %4296
        %4300 = vset.pattern.permute.xlu0 0
        %4301 = vperm.xlu0 %4300, %v2435
        %v4302 = vpop.permute.xlu0 %4301
        %4305 = vset.pattern.permute.xlu0 0
        %4306 = vperm.xlu0 %4305, %v2436
        %v4307 = vpop.permute.xlu0 %4306
        %4310 = vset.pattern.permute.xlu0 0
        %4311 = vperm.xlu0 %4310, %v2437
        %v4312 = vpop.permute.xlu0 %4311
        %v4314 = vadd.f32 %v4258, %v4277
        %v4315 = vadd.f32 %v4259, %v4277
        %v4316 = vadd.f32 %v4260, %v4282
        %v4317 = vadd.f32 %v4261, %v4282
        %v4318 = vadd.f32 %v4262, %v4287
        %v4319 = vadd.f32 %v4263, %v4287
        %v4320 = vadd.f32 %v4264, %v4292
        %v4321 = vadd.f32 %v4265, %v4292
        %v4322 = vadd.f32 %v4266, %v4297
        %v4323 = vadd.f32 %v4267, %v4297
        %v4324 = vadd.f32 %v4268, %v4302
        %v4325 = vadd.f32 %v4269, %v4302
        %v4326 = vadd.f32 %v4270, %v4307
        %v4327 = vadd.f32 %v4271, %v4307
        %v4328 = vadd.f32 %v4272, %v4312
        %v4329 = vadd.f32 %v4273, %v4312
        %v4330 = vadd.f32 %v4314, %v4018
        %v4331 = vadd.f32 %v4315, %v4019
        %v4332 = vadd.f32 %v4316, %v4020
        %v4333 = vadd.f32 %v4317, %v4021
        %v4334 = vadd.f32 %v4318, %v4022
        %v4335 = vadd.f32 %v4319, %v4023
        %v4336 = vadd.f32 %v4320, %v4024
        %v4337 = vadd.f32 %v4321, %v4025
        %v4338 = vadd.f32 %v4322, %v4026
        %v4339 = vadd.f32 %v4323, %v4027
        %v4340 = vadd.f32 %v4324, %v4028
        %v4341 = vadd.f32 %v4325, %v4029
        %v4342 = vadd.f32 %v4326, %v4030
        %v4343 = vadd.f32 %v4327, %v4031
        %v4344 = vadd.f32 %v4328, %v4032
        %v4345 = vadd.f32 %v4329, %v4033
        %4347 = vset.pattern.permute.xlu0 0
        %4348 = vperm.xlu0 %4347, %v2409
        %v4349 = vpop.permute.xlu0 %4348
        %4352 = vset.pattern.permute.xlu0 0
        %4353 = vperm.xlu0 %4352, %v2410
        %v4354 = vpop.permute.xlu0 %4353
        %v4357 = vsel %vm2311, %v2448, 0
        %v4360 = vsel %vm2311, %v2449, 0
        %4362 = vmatprep.subr.mxu0 %v4331
        %4363 = vmatpush1.msra.mxu0 %v4330
        %4364 = vmatprep.subr.mxu0 %v4333
        %4365 = vmatpush1.msra.mxu0 %v4332
        %4366 = vmatprep.subr.mxu0 %v4335
        %4367 = vmatpush1.msra.mxu0 %v4334
        %4368 = vmatprep.subr.mxu0 %v4337
        %4369 = vmatpush1.msra.mxu0 %v4336
        %4370 = vmatprep.subr.mxu0 %v4339
        %4371 = vmatpush1.msra.mxu0 %v4338
        %4372 = vmatprep.subr.mxu0 %v4341
        %4373 = vmatpush1.msra.mxu0 %v4340
        %4374 = vmatprep.subr.mxu0 %v4343
        %4375 = vmatpush1.msra.mxu0 %v4342
        %4376 = vmatprep.subr.mxu0 %v4345
        %4377 = vmatpush1.msra.mxu0 %v4344
        %4378 = vmatprep.subr.mxu0 0.0
        %4379 = vmatpush1.msra.mxu0 0.0
        %4380 = vmatprep.subr.mxu0 0.0
        %4381 = vmatpush1.msra.mxu0 0.0
        %4382 = vmatprep.subr.mxu0 0.0
        %4383 = vmatpush1.msra.mxu0 0.0
        %4384 = vmatprep.subr.mxu0 0.0
        %4385 = vmatpush1.msra.mxu0 0.0
        %4386 = vmatprep.subr.mxu0 0.0
        %4387 = vmatpush1.msra.mxu0 0.0
        %4388 = vmatprep.subr.mxu0 0.0
        %4389 = vmatpush1.msra.mxu0 0.0
        %4390 = vmatprep.subr.mxu0 0.0
        %4391 = vmatpush1.msra.mxu0 0.0
        %4392 = vmatprep.subr.mxu0 0.0
        %4393 = vmatpush1.msra.mxu0 0.0
        %4394 = vmatprep.subr.mxu0 0.0
        %4395 = vmatpush1.msra.mxu0 0.0
        %4396 = vmatprep.subr.mxu0 0.0
        %4397 = vmatpush1.msra.mxu0 0.0
        %4398 = vmatprep.subr.mxu0 0.0
        %4399 = vmatpush1.msra.mxu0 0.0
        %4400 = vmatprep.subr.mxu0 0.0
        %4401 = vmatpush1.msra.mxu0 0.0
        %4402 = vmatprep.subr.mxu0 0.0
        %4403 = vmatpush1.msra.mxu0 0.0
        %4404 = vmatprep.subr.mxu0 0.0
        %4405 = vmatpush1.msra.mxu0 0.0
        %4406 = vmatprep.subr.mxu0 0.0
        %4407 = vmatpush1.msra.mxu0 0.0
        %4408 = vmatprep.subr.mxu0 0.0
        %4409 = vmatpush1.msra.mxu0 0.0
        %4410 = vmatprep.subr.mxu0 0.0
        %4411 = vmatpush1.msra.mxu0 0.0
        %4412 = vmatprep.subr.mxu0 0.0
        %4413 = vmatpush1.msra.mxu0 0.0
        %4414 = vmatprep.subr.mxu0 0.0
        %4415 = vmatpush1.msra.mxu0 0.0
        %4416 = vmatprep.subr.mxu0 0.0
        %4417 = vmatpush1.msra.mxu0 0.0
        %4418 = vmatprep.subr.mxu0 0.0
        %4419 = vmatpush1.msra.mxu0 0.0
        %4420 = vmatprep.subr.mxu0 0.0
        %4421 = vmatpush1.msra.mxu0 0.0
        %4422 = vmatprep.subr.mxu0 0.0
        %4423 = vmatpush1.msra.mxu0 0.0
        %4424 = vmatprep.subr.mxu0 0.0
        %4425 = vmatpush1.msra.mxu0 0.0
        %4426 = vmatprep.mubr.f32.mxu0 0.0
        %4427 = vmatmul.mubr.f32.gmra.mrb[0].mxu0 %v4357
        %v4428 = vpop.f32.mrb[0].mxu0
        %v4429 = vadd.f32 %v4349, %v4428
        %v4430 = vpop.f32.mrb[0].mxu0
        %v4431 = vadd.f32 %v4349, %v4430
        %4432 = vmatprep.mubr.f32.mxu0 0.0
        %4433 = vmatmul.mubr.f32.gmra.mrb[0].mxu0 %v4360
        %v4434 = vpop.f32.mrb[0].mxu0
        %v4435 = vadd.f32 %v4354, %v4434
        %v4436 = vpop.f32.mrb[0].mxu0
        %v4437 = vadd.f32 %v4354, %v4436
        %4438 = vdwg.mxu0
        %v4439 = vadd.f32 %v4429, %v2395
        %v4440 = vadd.f32 %v4431, %v2396
        %v4441 = vadd.f32 %v4435, %v2397
        %v4442 = vadd.f32 %v4437, %v2398
        %4443 = vst [vmem:[%s299] sm:$0xff] %v4439
        %4444 = vst [vmem:[%s299 + $0x8] sm:$0xff] %v4440
        %4445 = vst [vmem:[%s299 + $0x10] sm:$0xff] %v4441
        %4446 = vst [vmem:[%s299 + $0x18] sm:$0xff] %v4442
        %s4447 = sand.u32 %s163, 1
        %s4448 = scalar_lea.sflag [#allocation4], %s4447
        %s4449 = sand.u32 %s163, 1
        %s4450 = smul.addr %s4449, 32
        %s4451 = scalar_lea.vmem [#allocation8], %s4450
        // Predicated region
        $region57: #{tpu_custom_call.1} parent=43 // pred_check
          %p4452 = pneg %p173
        $region58: #{tpu_custom_call.1} parent=43 // pred_check_branch
          %4454 = sbr.rel (%p4452) target = $region60
        $region59: #{tpu_custom_call.1} parent=43 // pred_region
          %s4455 = smul.u32 2, %s24
          %s4457 = ssub.s32 512, 512
          %4458 = vsyncadd %s4448, %s4457
          %s4459 = smul.addr %s4455, 2
          %s4460 = smul.addr %s4459, 128
          %s4461 = scalar_lea.hbm %s6, %s4460
          %s4462 = sshll.u32 %s4451, 4
          %s4463 = int_to_ptr.vmem [resolvable:$true] %s4462
          %4468 = dma.vmem_to_hbm [thread:$0]  %s4463, 512, %s4461, %s4448, 256, 256, 16
        $region60: #{tpu_custom_call.1} parent=43 // pred_fallthru
          _
      $region44: #{tpu_custom_call.1} parent=5 // pred_fallthru
        _
      %p4469 = scmp.le.s32.totalorder 2, %s19
      // Predicated region
      $region61: #{tpu_custom_call.1} parent=5 // pred_check
        %p4470 = pneg %p4469
      $region62: #{tpu_custom_call.1} parent=5 // pred_check_branch
        %4472 = sbr.rel (%p4470) target = $region64
      $region63: #{tpu_custom_call.1} parent=5 // pred_region
        %s4473 = ssub.s32 %s19, 2
        // Predicated region
        $region65: #{tpu_custom_call.1} parent=63 // pred_check
          %p4474 = pneg %p179
        $region66: #{tpu_custom_call.1} parent=63 // pred_check_branch
          %4476 = sbr.rel (%p4474) target = $region68
        $region67: #{tpu_custom_call.1} parent=63 // pred_region
          %s4477 = sand.u32 %s164, 1
          %s4478 = scalar_lea.sflag [#allocation4], %s4477
          %s4479 = sand.u32 %s164, 1
          %s4480 = smul.addr %s4479, 32
          %s4481 = scalar_lea.vmem [#allocation8], %s4480
          %4482 = dma.done %s4478, 512
        $region68: #{tpu_custom_call.1} parent=63 // pred_fallthru
          _
      $region64: #{tpu_custom_call.1} parent=5 // pred_fallthru
        _
    $region6: #{tpu_custom_call.1} parent=1 // loop_footer
      %s23 = sadd.s32 1, %s19
    $region7: #{tpu_custom_call.1} parent=1 // loop_footer_branch
      %18 = sbr.rel target = $region3
    $region8: #{tpu_custom_call.1} parent=1 // loop_exit
      _
    %4483 = vsyncpa [#allocation3], 1
    %s4484 = scalar_lea.sflag [#allocation3], 1
    %4485 = vsyncpa %s4484, 1
    %4486 = vsyncpa [#allocation6], 1
    %4487 = vsyncpa [#allocation4], 1
    %s4488 = scalar_lea.sflag [#allocation4], 1
    %4489 = vsyncpa %s4488, 1

</llo_original>
